<compile_context>
chip_gen: v7x
topology: tpu7x:2x2x1
jax: 0.10.0
libtpu: 0.0.40
codegen_flags: <defaults>
</compile_context>

<pallas_src>
import functools

import jax
import jax.numpy as jnp
from jax.experimental import pallas as pl
from jax.experimental.pallas import tpu as pltpu


IN_CH = 3
NUM_CLASS = 3
SEG_CLASSES = 2
INTER = 32
NCLS_PAD = 128          # classify output padded to a full lane width
SEG_PAD = 128           # fused (lung|infected) seg output padded to full lane width
BB_COUT = 16 + 24 + 576  # fused backbone projection output channels


# ----------------------------------------------------------------------------
# Pallas kernels
# ----------------------------------------------------------------------------
def _pick_tile_m(m):
    for t in (2048, 1024, 512, 256, 128):
        if m % t == 0:
            return t
    return m


def _linear_act_kernel(x_ref, w_ref, b_ref, o_ref, *, activation):
    """y = act(x @ w + b); bf16 MXU inputs, f32 accumulate/elementwise."""
    y = jnp.dot(x_ref[...].astype(jnp.bfloat16), w_ref[...],
                preferred_element_type=jnp.float32)
    y = y + b_ref[...]
    if activation == "relu":
        y = jnp.maximum(y, 0.0)
    elif activation == "hardswish":
        y = y * jnp.clip(y + 3.0, 0.0, 6.0) * (1.0 / 6.0)
    o_ref[...] = y.astype(o_ref.dtype)


def pallas_linear(x2d, w, b, activation=None):
    """Tiled (over rows) matmul kernel; weights stay VMEM-resident."""
    m, cin = x2d.shape
    cout = w.shape[1]
    tm = _pick_tile_m(m)
    return pl.pallas_call(
        functools.partial(_linear_act_kernel, activation=activation),
        out_shape=jax.ShapeDtypeStruct((m, cout), jnp.float32),
        grid=(m // tm,),
        in_specs=[
            pl.BlockSpec((tm, cin), lambda i: (i, 0)),
            pl.BlockSpec((cin, cout), lambda i: (0, 0)),
            pl.BlockSpec((1, cout), lambda i: (0, 0)),
        ],
        out_specs=pl.BlockSpec((tm, cout), lambda i: (i, 0)),
        compiler_params=pltpu.CompilerParams(
            dimension_semantics=("parallel",)),
    )(x2d, w, b)


def _gate_classify_kernel(x_ref, wc_ref, bc_ref, ws_ref, bs_ref,
                          w1_ref, b1_ref, w2_ref, b2_ref,
                          gated_ref, cls_ref):
    """One batch element per grid step.

    LR-ASPP high branch for BOTH heads (channels 0:32 lung, 32:64 infected):
        cbr   = relu(x @ Wc + bc)
        s     = sigmoid(mean_HW(x) @ Ws + bs)
        gated = cbr * s                      (broadcast over HW)
    Classify branch (exact):
        y = (hardswish(mean_HW(x) @ W1 + b1)) @ W2 + b2
    The global average pool is a single in-kernel XLU reduce shared by both.
    """
    x = x_ref[0]                                    # (HW, 576) f32
    xb = x.astype(jnp.bfloat16)

    cbr = jnp.dot(xb, wc_ref[...], preferred_element_type=jnp.float32)
    cbr = jnp.maximum(cbr + bc_ref[...], 0.0)       # (HW, 2*INTER)

    pooled = jnp.mean(x, axis=0, keepdims=True)     # (1, 576)
    pooled_b = pooled.astype(jnp.bfloat16)

    s = jnp.dot(pooled_b, ws_ref[...], preferred_element_type=jnp.float32)
    s = jax.nn.sigmoid(s + bs_ref[...])             # (1, 2*INTER)
    gated_ref[0] = (cbr * s).astype(gated_ref.dtype)

    h = jnp.dot(pooled_b, w1_ref[...], preferred_element_type=jnp.float32)
    h = h + b1_ref[...]
    h = h * jnp.clip(h + 3.0, 0.0, 6.0) * (1.0 / 6.0)   # Hardswish
    y = jnp.dot(h.astype(jnp.bfloat16), w2_ref[...],
                preferred_element_type=jnp.float32) + b2_ref[...]
    cls_ref[0] = y.astype(cls_ref.dtype)


def pallas_gate_classify(x3_seq, p):
    """x3_seq: (N, HW3, 576). Returns gated (N, HW3, 64), cls (N, 1, 128)."""
    n, hw, c = x3_seq.shape
    k = p["wc"].shape[1]
    const2 = lambda i: (0, 0)
    return pl.pallas_call(
        _gate_classify_kernel,
        out_shape=(
            jax.ShapeDtypeStruct((n, hw, k), jnp.float32),
            jax.ShapeDtypeStruct((n, 1, NCLS_PAD), jnp.float32),
        ),
        grid=(n,),
        in_specs=[
            pl.BlockSpec((1, hw, c), lambda i: (i, 0, 0)),
            pl.BlockSpec(p["wc"].shape, const2),
            pl.BlockSpec(p["bc"].shape, const2),
            pl.BlockSpec(p["ws"].shape, const2),
            pl.BlockSpec(p["bs"].shape, const2),
            pl.BlockSpec(p["cls_w1"].shape, const2),
            pl.BlockSpec(p["cls_b1"].shape, const2),
            pl.BlockSpec(p["cls_w2"].shape, const2),
            pl.BlockSpec(p["cls_b2"].shape, const2),
        ],
        out_specs=(
            pl.BlockSpec((1, hw, k), lambda i: (i, 0, 0)),
            pl.BlockSpec((1, 1, NCLS_PAD), lambda i: (i, 0, 0)),
        ),
        compiler_params=pltpu.CompilerParams(
            dimension_semantics=("parallel",)),
    )(x3_seq, p["wc"], p["bc"], p["ws"], p["bs"],
      p["cls_w1"], p["cls_b1"], p["cls_w2"], p["cls_b2"])


# ----------------------------------------------------------------------------
# Glue helpers (plain JAX)
# ----------------------------------------------------------------------------
def _avg_pool_nhwc(x, stride):
    n, h, w, c = x.shape
    return x.reshape(n, h // stride, stride, w // stride, stride, c).mean(
        axis=(2, 4))


# ----------------------------------------------------------------------------
# Parameters
# ----------------------------------------------------------------------------
def init_params(key):
    keys = jax.random.split(key, 40)
    it = iter(keys)

    def w(shape, scale=0.05):
        return (scale * jax.random.normal(next(it), shape)).astype(jnp.float32)

    # TODO(synk): backbone is an opaque constructor arg in the reference;
    # deterministic avgpool + 1x1-projection stand-in (widths 16/24/576).
    bb_ws = [w((IN_CH, 16)), w((IN_CH, 24)), w((IN_CH, 576))]
    bb_bs = [w((1, 16)), w((1, 24)), w((1, 576))]
    bb_w = jnp.zeros((8, BB_COUT), jnp.float32)          # Cin padded 3 -> 8
    col = 0
    for wi in bb_ws:
        bb_w = bb_w.at[:IN_CH, col:col + wi.shape[1]].set(wi)
        col += wi.shape[1]
    bb_b = jnp.concatenate(bb_bs, axis=1)

    # TODO(synk): lung_head / infected_head are opaque constructor args;
    # LR-ASPP-style heads used as stand-ins, fused along the channel axis.
    def head():
        return dict(
            wc=w((576, INTER)), bc=w((1, INTER)),
            ws=w((576, INTER)), bs=w((1, INTER)),
            w_high=w((INTER, SEG_CLASSES)), b_high=w((1, SEG_CLASSES)),
            w_low2=w((24, SEG_CLASSES)), b_low2=w((1, SEG_CLASSES)),
            w_low1=w((16, SEG_CLASSES)), b_low1=w((1, SEG_CLASSES)),
        )

    lung, infected = head(), head()
    wc = jnp.concatenate([lung["wc"], infected["wc"]], axis=1)    # (576, 64)
    bc = jnp.concatenate([lung["bc"], infected["bc"]], axis=1)
    ws_ = jnp.concatenate([lung["ws"], infected["ws"]], axis=1)
    bs_ = jnp.concatenate([lung["bs"], infected["bs"]], axis=1)

    # Fused output conv over concat([gated_lung|gated_inf|x2|x1], channels).
    cin_seg = 2 * INTER + 24 + 16
    sc = SEG_CLASSES
    seg_w = jnp.zeros((cin_seg, SEG_PAD), jnp.float32)
    seg_w = seg_w.at[0:INTER, 0:sc].set(lung["w_high"])
    seg_w = seg_w.at[INTER:2 * INTER, sc:2 * sc].set(infected["w_high"])
    seg_w = seg_w.at[2 * INTER:2 * INTER + 24, 0:sc].set(lung["w_low2"])
    seg_w = seg_w.at[2 * INTER:2 * INTER + 24, sc:2 * sc].set(infected["w_low2"])
    seg_w = seg_w.at[2 * INTER + 24:, 0:sc].set(lung["w_low1"])
    seg_w = seg_w.at[2 * INTER + 24:, sc:2 * sc].set(infected["w_low1"])
    seg_b = jnp.zeros((1, SEG_PAD), jnp.float32)
    seg_b = seg_b.at[:, 0:sc].set(lung["b_high"] + lung["b_low2"]
                                  + lung["b_low1"])
    seg_b = seg_b.at[:, sc:2 * sc].set(infected["b_high"] + infected["b_low2"]
                                       + infected["b_low1"])

    # classify_branch: Linear(576,1024) -> Hardswish -> Linear(1024,3) (exact).
    cls_w1, cls_b1 = w((576, 1024)), w((1, 1024))
    cls_w2_raw, cls_b2_raw = w((1024, NUM_CLASS)), w((1, NUM_CLASS))
    cls_w2 = jnp.zeros((1024, NCLS_PAD), jnp.float32).at[:, :NUM_CLASS].set(
        cls_w2_raw)
    cls_b2 = jnp.zeros((1, NCLS_PAD), jnp.float32).at[:, :NUM_CLASS].set(
        cls_b2_raw)

    bf16 = lambda a: a.astype(jnp.bfloat16)
    return dict(
        bb_w=bf16(bb_w), bb_b=bb_b,
        wc=bf16(wc), bc=bc, ws=bf16(ws_), bs=bs_,
        seg_w=bf16(seg_w), seg_b=seg_b,
        cls_w1=bf16(cls_w1), cls_b1=cls_b1,
        cls_w2=bf16(cls_w2), cls_b2=cls_b2,
    )


# ----------------------------------------------------------------------------
# Forward
# ----------------------------------------------------------------------------
@jax.jit
def forward(params, x):
    """x: NCHW float32, e.g. (2, 3, 32, 32)."""
    n, cin, H, W = x.shape
    x_nhwc = jnp.transpose(x, (0, 2, 3, 1))

    # ---- backbone stand-in: avgpools (strides 4/8/16) + ONE fused 1x1 kernel
    h1, w1 = H // 4, W // 4
    h2, w2 = H // 8, W // 8
    h3, w3 = H // 16, W // 16
    p4 = _avg_pool_nhwc(x_nhwc, 4).reshape(n * h1 * w1, cin)
    p8 = _avg_pool_nhwc(x_nhwc, 8).reshape(n * h2 * w2, cin)
    p16 = _avg_pool_nhwc(x_nhwc, 16).reshape(n * h3 * w3, cin)
    pcat = jnp.concatenate([p4, p8, p16], axis=0)
    pcat = jnp.pad(pcat, ((0, 0), (0, 8 - cin)))           # K=3 -> 8 sublanes
    feats = pallas_linear(pcat, params["bb_w"], params["bb_b"], "relu")
    m1, m2 = n * h1 * w1, n * h2 * w2
    x1 = feats[:m1, 0:16].reshape(n, h1, w1, 16)
    x2 = feats[m1:m1 + m2, 16:40].reshape(n, h2, w2, 24)
    x3 = feats[m1 + m2:, 40:BB_COUT].reshape(n, h3, w3, 576)

    # ---- fused LR-ASPP gate (both heads) + classify branch: one kernel ----
    gate_out, cls_out = pallas_gate_classify(
        x3.reshape(n, h3 * w3, 576), params)
    y = cls_out.reshape(n, NCLS_PAD)[:, :NUM_CLASS]

    # ---- fused per-head output convs: concat inputs, one matmul kernel ----
    gated = gate_out.reshape(n, h3, w3, 2 * INTER)
    gated_up = jax.image.resize(gated, (n, h2, w2, 2 * INTER), "bilinear")
    x1_rs = jax.image.resize(x1, (n, h2, w2, 16), "bilinear")  # shared by heads
    fuse_in = jnp.concatenate([gated_up, x2, x1_rs], axis=-1)
    fuse_in = fuse_in.reshape(n * h2 * w2, 2 * INTER + 24 + 16)
    seg = pallas_linear(fuse_in, params["seg_w"], params["seg_b"], None)
    seg = seg[:, :2 * SEG_CLASSES].reshape(n, h2, w2, 2 * SEG_CLASSES)

    seg_up = jax.image.resize(seg, (n, H, W, 2 * SEG_CLASSES), "bilinear")
    lung_output = jnp.transpose(seg_up[..., :SEG_CLASSES], (0, 3, 1, 2))
    infect_output = jnp.transpose(seg_up[..., SEG_CLASSES:], (0, 3, 1, 2))

    return y, lung_output, infect_output


# ----------------------------------------------------------------------------
if __name__ == "__main__":
    key = jax.random.PRNGKey(0)
    pkey, xkey = jax.random.split(key)
    params = init_params(pkey)

    x = jax.random.normal(xkey, (2, 3, 32, 32), dtype=jnp.float32)

    y, lung, infect = forward(params, x)
    jax.block_until_ready((y, lung, infect))

    assert y.shape == (2, NUM_CLASS)
    assert lung.shape == (2, SEG_CLASSES, 32, 32)
    assert infect.shape == (2, SEG_CLASSES, 32, 32)
    print("KERNEL_OK")
</pallas_src>

<mosaic_0001>
module attributes {stable_mosaic.version = 11 : i64} {
  func.func @_linear_act_kernel(%arg0: i32, %arg1: memref<168x8xf32, #tpu.memory_space<vmem>>, %arg2: memref<8x616xbf16, #tpu.memory_space<vmem>>, %arg3: memref<1x616xf32, #tpu.memory_space<vmem>>, %arg4: memref<168x616xf32, #tpu.memory_space<vmem>>) attributes {dimension_semantics = [#tpu.dimension_semantics<parallel>], iteration_bounds = array<i64: 1>, scalar_prefetch = 0 : i64, scratch_operands = 0 : i64, tpu.core_type = #tpu.core_type<tc>, window_params = [{transform_indices = @transform_0, window_bounds = array<i64: 168, 8>}, {pipeline_mode = #tpu.pipeline_mode<synchronous>, transform_indices = @transform_1, window_bounds = array<i64: 8, 616>}, {pipeline_mode = #tpu.pipeline_mode<synchronous>, transform_indices = @transform_2, window_bounds = array<i64: 1, 616>}, {transform_indices = @transform_3, window_bounds = array<i64: 168, 616>}]} {
    %c0 = arith.constant 0 : index
    %c0_0 = arith.constant 0 : index
    %0 = vector.load %arg1[%c0, %c0_0] : memref<168x8xf32, #tpu.memory_space<vmem>>, vector<168x8xf32>
    %1 = arith.truncf %0 : vector<168x8xf32> to vector<168x8xbf16>
    %c0_1 = arith.constant 0 : index
    %c0_2 = arith.constant 0 : index
    %2 = vector.load %arg2[%c0_1, %c0_2] : memref<8x616xbf16, #tpu.memory_space<vmem>>, vector<8x616xbf16>
    %cst = arith.constant dense<0.000000e+00> : vector<168x616xf32>
    %3 = tpu.matmul %1, %2, %cst {dimension_numbers = #tpu.dot_dimension_numbers<[1], [0], [0], [1], [0, 0, 1, 1], [], []>} : vector<168x8xbf16>, vector<8x616xbf16>, vector<168x616xf32> -> vector<168x616xf32>
    %c0_3 = arith.constant 0 : index
    %c0_4 = arith.constant 0 : index
    %4 = vector.load %arg3[%c0_3, %c0_4] : memref<1x616xf32, #tpu.memory_space<vmem>>, vector<1x616xf32>
    %5 = vector.broadcast %4 : vector<1x616xf32> to vector<168x616xf32>
    %6 = arith.addf %3, %5 : vector<168x616xf32>
    %cst_5 = arith.constant 0.000000e+00 : f32
    %7 = vector.broadcast %cst_5 : f32 to vector<168x616xf32>
    %8 = arith.maximumf %6, %7 : vector<168x616xf32>
    %c0_6 = arith.constant 0 : index
    %c0_7 = arith.constant 0 : index
    %9 = vector.load %arg4[%c0_6, %c0_7] : memref<168x616xf32, #tpu.memory_space<vmem>>, vector<168x616xf32>
    tpu.vector_store %arg4[%c0_6, %c0_7], %8 {strides = array<i32>} : memref<168x616xf32, #tpu.memory_space<vmem>>, vector<168x616xf32>,
    return
  }
  func.func @transform_0(%arg0: i32) -> (i32, i32) {
    %c0_i32 = arith.constant 0 : i32
    %c0_i32_0 = arith.constant 0 : i32
    return %arg0, %c0_i32 : i32, i32
  }
  func.func @transform_1(%arg0: i32) -> (i32, i32) {
    %c0_i32 = arith.constant 0 : i32
    %c0_i32_0 = arith.constant 0 : i32
    %c0_i32_1 = arith.constant 0 : i32
    return %c0_i32, %c0_i32_0 : i32, i32
  }
  func.func @transform_2(%arg0: i32) -> (i32, i32) {
    %c0_i32 = arith.constant 0 : i32
    %c0_i32_0 = arith.constant 0 : i32
    %c0_i32_1 = arith.constant 0 : i32
    return %c0_i32, %c0_i32_0 : i32, i32
  }
  func.func @transform_3(%arg0: i32) -> (i32, i32) {
    %c0_i32 = arith.constant 0 : i32
    %c0_i32_0 = arith.constant 0 : i32
    return %arg0, %c0_i32 : i32, i32
  }
}

module attributes {stable_mosaic.version = 11 : i64} {
  func.func @_gate_classify_kernel(%arg0: i32, %arg1: memref<1x4x576xf32, #tpu.memory_space<vmem>>, %arg2: memref<576x64xbf16, #tpu.memory_space<vmem>>, %arg3: memref<1x64xf32, #tpu.memory_space<vmem>>, %arg4: memref<576x64xbf16, #tpu.memory_space<vmem>>, %arg5: memref<1x64xf32, #tpu.memory_space<vmem>>, %arg6: memref<576x1024xbf16, #tpu.memory_space<vmem>>, %arg7: memref<1x1024xf32, #tpu.memory_space<vmem>>, %arg8: memref<1024x128xbf16, #tpu.memory_space<vmem>>, %arg9: memref<1x128xf32, #tpu.memory_space<vmem>>, %arg10: memref<1x4x64xf32, #tpu.memory_space<vmem>>, %arg11: memref<1x1x128xf32, #tpu.memory_space<vmem>>) attributes {dimension_semantics = [#tpu.dimension_semantics<parallel>], iteration_bounds = array<i64: 2>, scalar_prefetch = 0 : i64, scratch_operands = 0 : i64, tpu.core_type = #tpu.core_type<tc>, window_params = [{transform_indices = @transform_0, window_bounds = array<i64: 1, 4, 576>}, {pipeline_mode = #tpu.pipeline_mode<synchronous>, transform_indices = @transform_1, window_bounds = array<i64: 576, 64>}, {pipeline_mode = #tpu.pipeline_mode<synchronous>, transform_indices = @transform_2, window_bounds = array<i64: 1, 64>}, {pipeline_mode = #tpu.pipeline_mode<synchronous>, transform_indices = @transform_3, window_bounds = array<i64: 576, 64>}, {pipeline_mode = #tpu.pipeline_mode<synchronous>, transform_indices = @transform_4, window_bounds = array<i64: 1, 64>}, {pipeline_mode = #tpu.pipeline_mode<synchronous>, transform_indices = @transform_5, window_bounds = array<i64: 576, 1024>}, {pipeline_mode = #tpu.pipeline_mode<synchronous>, transform_indices = @transform_6, window_bounds = array<i64: 1, 1024>}, {pipeline_mode = #tpu.pipeline_mode<synchronous>, transform_indices = @transform_7, window_bounds = array<i64: 1024, 128>}, {pipeline_mode = #tpu.pipeline_mode<synchronous>, transform_indices = @transform_8, window_bounds = array<i64: 1, 128>}, {transform_indices = @transform_9, window_bounds = array<i64: 1, 4, 64>}, {transform_indices = @transform_10, window_bounds = array<i64: 1, 1, 128>}]} {
    %c0 = arith.constant 0 : index
    %c0_0 = arith.constant 0 : index
    %c0_1 = arith.constant 0 : index
    %0 = vector.load %arg1[%c0, %c0_0, %c0_1] : memref<1x4x576xf32, #tpu.memory_space<vmem>>, vector<1x4x576xf32>
    %1 = vector.shape_cast %0 : vector<1x4x576xf32> to vector<4x576xf32>
    %2 = arith.truncf %1 : vector<4x576xf32> to vector<4x576xbf16>
    %c0_2 = arith.constant 0 : index
    %c0_3 = arith.constant 0 : index
    %3 = vector.load %arg2[%c0_2, %c0_3] : memref<576x64xbf16, #tpu.memory_space<vmem>>, vector<576x64xbf16>
    %cst = arith.constant dense<0.000000e+00> : vector<4x64xf32>
    %4 = tpu.matmul %2, %3, %cst {dimension_numbers = #tpu.dot_dimension_numbers<[1], [0], [0], [1], [0, 0, 1, 1], [], []>} : vector<4x576xbf16>, vector<576x64xbf16>, vector<4x64xf32> -> vector<4x64xf32>
    %c0_4 = arith.constant 0 : index
    %c0_5 = arith.constant 0 : index
    %5 = vector.load %arg3[%c0_4, %c0_5] : memref<1x64xf32, #tpu.memory_space<vmem>>, vector<1x64xf32>
    %6 = vector.broadcast %5 : vector<1x64xf32> to vector<4x64xf32>
    %7 = arith.addf %4, %6 : vector<4x64xf32>
    %cst_6 = arith.constant 0.000000e+00 : f32
    %8 = vector.broadcast %cst_6 : f32 to vector<4x64xf32>
    %9 = arith.maximumf %7, %8 : vector<4x64xf32>
    %cst_7 = arith.constant dense<0.000000e+00> : vector<576xf32>
    %10 = vector.multi_reduction <add>, %1, %cst_7 [0] : vector<4x576xf32> to vector<576xf32>
    %11 = vector.shape_cast %10 : vector<576xf32> to vector<1x576xf32>
    %cst_8 = arith.constant 4.000000e+00 : f32
    %12 = vector.broadcast %cst_8 : f32 to vector<1x576xf32>
    %13 = arith.divf %11, %12 : vector<1x576xf32>
    %14 = arith.truncf %13 : vector<1x576xf32> to vector<1x576xbf16>
    %c0_9 = arith.constant 0 : index
    %c0_10 = arith.constant 0 : index
    %15 = vector.load %arg4[%c0_9, %c0_10] : memref<576x64xbf16, #tpu.memory_space<vmem>>, vector<576x64xbf16>
    %cst_11 = arith.constant dense<0.000000e+00> : vector<1x64xf32>
    %16 = tpu.matmul %14, %15, %cst_11 {dimension_numbers = #tpu.dot_dimension_numbers<[1], [0], [0], [1], [0, 0, 1, 1], [], []>} : vector<1x576xbf16>, vector<576x64xbf16>, vector<1x64xf32> -> vector<1x64xf32>
    %c0_12 = arith.constant 0 : index
    %c0_13 = arith.constant 0 : index
    %17 = vector.load %arg5[%c0_12, %c0_13] : memref<1x64xf32, #tpu.memory_space<vmem>>, vector<1x64xf32>
    %18 = arith.addf %16, %17 : vector<1x64xf32>
    %19 = arith.negf %18 : vector<1x64xf32>
    %20 = math.exp %19 : vector<1x64xf32>
    %cst_14 = arith.constant 1.000000e+00 : f32
    %21 = vector.broadcast %cst_14 : f32 to vector<1x64xf32>
    %22 = arith.addf %21, %20 : vector<1x64xf32>
    %23 = arith.divf %21, %22 : vector<1x64xf32>
    %24 = vector.broadcast %23 : vector<1x64xf32> to vector<4x64xf32>
    %25 = arith.mulf %9, %24 : vector<4x64xf32>
    %c0_15 = arith.constant 0 : index
    %c0_16 = arith.constant 0 : index
    %c0_17 = arith.constant 0 : index
    %26 = vector.load %arg10[%c0_15, %c0_16, %c0_17] : memref<1x4x64xf32, #tpu.memory_space<vmem>>, vector<1x4x64xf32>
    %27 = vector.shape_cast %26 : vector<1x4x64xf32> to vector<4x64xf32>
    %28 = vector.shape_cast %25 : vector<4x64xf32> to vector<1x4x64xf32>
    tpu.vector_store %arg10[%c0_15, %c0_16, %c0_17], %28 {strides = array<i32>} : memref<1x4x64xf32, #tpu.memory_space<vmem>>, vector<1x4x64xf32>,
    %c0_18 = arith.constant 0 : index
    %c0_19 = arith.constant 0 : index
    %29 = vector.load %arg6[%c0_18, %c0_19] : memref<576x1024xbf16, #tpu.memory_space<vmem>>, vector<576x1024xbf16>
    %cst_20 = arith.constant dense<0.000000e+00> : vector<1x1024xf32>
    %30 = tpu.matmul %14, %29, %cst_20 {dimension_numbers = #tpu.dot_dimension_numbers<[1], [0], [0], [1], [0, 0, 1, 1], [], []>} : vector<1x576xbf16>, vector<576x1024xbf16>, vector<1x1024xf32> -> vector<1x1024xf32>
    %c0_21 = arith.constant 0 : index
    %c0_22 = arith.constant 0 : index
    %31 = vector.load %arg7[%c0_21, %c0_22] : memref<1x1024xf32, #tpu.memory_space<vmem>>, vector<1x1024xf32>
    %32 = arith.addf %30, %31 : vector<1x1024xf32>
    %cst_23 = arith.constant 3.000000e+00 : f32
    %33 = vector.broadcast %cst_23 : f32 to vector<1x1024xf32>
    %34 = arith.addf %32, %33 : vector<1x1024xf32>
    %cst_24 = arith.constant 0.000000e+00 : f32
    %cst_25 = arith.constant 6.000000e+00 : f32
    %35 = vector.broadcast %cst_24 : f32 to vector<1x1024xf32>
    %36 = arith.maximumf %35, %34 : vector<1x1024xf32>
    %37 = vector.broadcast %cst_25 : f32 to vector<1x1024xf32>
    %38 = arith.minimumf %37, %36 : vector<1x1024xf32>
    %39 = arith.mulf %32, %38 : vector<1x1024xf32>
    %cst_26 = arith.constant 0.166666672 : f32
    %40 = vector.broadcast %cst_26 : f32 to vector<1x1024xf32>
    %41 = arith.mulf %39, %40 : vector<1x1024xf32>
    %42 = arith.truncf %41 : vector<1x1024xf32> to vector<1x1024xbf16>
    %c0_27 = arith.constant 0 : index
    %c0_28 = arith.constant 0 : index
    %43 = vector.load %arg8[%c0_27, %c0_28] : memref<1024x128xbf16, #tpu.memory_space<vmem>>, vector<1024x128xbf16>
    %cst_29 = arith.constant dense<0.000000e+00> : vector<1x128xf32>
    %44 = tpu.matmul %42, %43, %cst_29 {dimension_numbers = #tpu.dot_dimension_numbers<[1], [0], [0], [1], [0, 0, 1, 1], [], []>} : vector<1x1024xbf16>, vector<1024x128xbf16>, vector<1x128xf32> -> vector<1x128xf32>
    %c0_30 = arith.constant 0 : index
    %c0_31 = arith.constant 0 : index
    %45 = vector.load %arg9[%c0_30, %c0_31] : memref<1x128xf32, #tpu.memory_space<vmem>>, vector<1x128xf32>
    %46 = arith.addf %44, %45 : vector<1x128xf32>
    %c0_32 = arith.constant 0 : index
    %c0_33 = arith.constant 0 : index
    %c0_34 = arith.constant 0 : index
    %47 = vector.load %arg11[%c0_32, %c0_33, %c0_34] : memref<1x1x128xf32, #tpu.memory_space<vmem>>, vector<1x1x128xf32>
    %48 = vector.shape_cast %47 : vector<1x1x128xf32> to vector<1x128xf32>
    %49 = vector.shape_cast %46 : vector<1x128xf32> to vector<1x1x128xf32>
    tpu.vector_store %arg11[%c0_32, %c0_33, %c0_34], %49 {strides = array<i32>} : memref<1x1x128xf32, #tpu.memory_space<vmem>>, vector<1x1x128xf32>,
    return
  }
  func.func @transform_0(%arg0: i32) -> (i32, i32, i32) {
    %c0_i32 = arith.constant 0 : i32
    %c0_i32_0 = arith.constant 0 : i32
    %c0_i32_1 = arith.constant 0 : i32
    return %arg0, %c0_i32, %c0_i32_0 : i32, i32, i32
  }
  func.func @transform_1(%arg0: i32) -> (i32, i32) {
    %c0_i32 = arith.constant 0 : i32
    %c0_i32_0 = arith.constant 0 : i32
    %c0_i32_1 = arith.constant 0 : i32
    return %c0_i32, %c0_i32_0 : i32, i32
  }
  func.func @transform_2(%arg0: i32) -> (i32, i32) {
    %c0_i32 = arith.constant 0 : i32
    %c0_i32_0 = arith.constant 0 : i32
    %c0_i32_1 = arith.constant 0 : i32
    return %c0_i32, %c0_i32_0 : i32, i32
  }
  func.func @transform_3(%arg0: i32) -> (i32, i32) {
    %c0_i32 = arith.constant 0 : i32
    %c0_i32_0 = arith.constant 0 : i32
    %c0_i32_1 = arith.constant 0 : i32
    return %c0_i32, %c0_i32_0 : i32, i32
  }
  func.func @transform_4(%arg0: i32) -> (i32, i32) {
    %c0_i32 = arith.constant 0 : i32
    %c0_i32_0 = arith.constant 0 : i32
    %c0_i32_1 = arith.constant 0 : i32
    return %c0_i32, %c0_i32_0 : i32, i32
  }
  func.func @transform_5(%arg0: i32) -> (i32, i32) {
    %c0_i32 = arith.constant 0 : i32
    %c0_i32_0 = arith.constant 0 : i32
    %c0_i32_1 = arith.constant 0 : i32
    return %c0_i32, %c0_i32_0 : i32, i32
  }
  func.func @transform_6(%arg0: i32) -> (i32, i32) {
    %c0_i32 = arith.constant 0 : i32
    %c0_i32_0 = arith.constant 0 : i32
    %c0_i32_1 = arith.constant 0 : i32
    return %c0_i32, %c0_i32_0 : i32, i32
  }
  func.func @transform_7(%arg0: i32) -> (i32, i32) {
    %c0_i32 = arith.constant 0 : i32
    %c0_i32_0 = arith.constant 0 : i32
    %c0_i32_1 = arith.constant 0 : i32
    return %c0_i32, %c0_i32_0 : i32, i32
  }
  func.func @transform_8(%arg0: i32) -> (i32, i32) {
    %c0_i32 = arith.constant 0 : i32
    %c0_i32_0 = arith.constant 0 : i32
    %c0_i32_1 = arith.constant 0 : i32
    return %c0_i32, %c0_i32_0 : i32, i32
  }
  func.func @transform_9(%arg0: i32) -> (i32, i32, i32) {
    %c0_i32 = arith.constant 0 : i32
    %c0_i32_0 = arith.constant 0 : i32
    %c0_i32_1 = arith.constant 0 : i32
    return %arg0, %c0_i32, %c0_i32_0 : i32, i32, i32
  }
  func.func @transform_10(%arg0: i32) -> (i32, i32, i32) {
    %c0_i32 = arith.constant 0 : i32
    %c0_i32_0 = arith.constant 0 : i32
    %c0_i32_1 = arith.constant 0 : i32
    return %arg0, %c0_i32, %c0_i32_0 : i32, i32, i32
  }
}

module attributes {stable_mosaic.version = 11 : i64} {
  func.func @_linear_act_kernel(%arg0: i32, %arg1: memref<32x104xf32, #tpu.memory_space<vmem>>, %arg2: memref<104x128xbf16, #tpu.memory_space<vmem>>, %arg3: memref<1x128xf32, #tpu.memory_space<vmem>>, %arg4: memref<32x128xf32, #tpu.memory_space<vmem>>) attributes {dimension_semantics = [#tpu.dimension_semantics<parallel>], iteration_bounds = array<i64: 1>, scalar_prefetch = 0 : i64, scratch_operands = 0 : i64, tpu.core_type = #tpu.core_type<tc>, window_params = [{transform_indices = @transform_0, window_bounds = array<i64: 32, 104>}, {pipeline_mode = #tpu.pipeline_mode<synchronous>, transform_indices = @transform_1, window_bounds = array<i64: 104, 128>}, {pipeline_mode = #tpu.pipeline_mode<synchronous>, transform_indices = @transform_2, window_bounds = array<i64: 1, 128>}, {transform_indices = @transform_3, window_bounds = array<i64: 32, 128>}]} {
    %c0 = arith.constant 0 : index
    %c0_0 = arith.constant 0 : index
    %0 = vector.load %arg1[%c0, %c0_0] : memref<32x104xf32, #tpu.memory_space<vmem>>, vector<32x104xf32>
    %1 = arith.truncf %0 : vector<32x104xf32> to vector<32x104xbf16>
    %c0_1 = arith.constant 0 : index
    %c0_2 = arith.constant 0 : index
    %2 = vector.load %arg2[%c0_1, %c0_2] : memref<104x128xbf16, #tpu.memory_space<vmem>>, vector<104x128xbf16>
    %cst = arith.constant dense<0.000000e+00> : vector<32x128xf32>
    %3 = tpu.matmul %1, %2, %cst {dimension_numbers = #tpu.dot_dimension_numbers<[1], [0], [0], [1], [0, 0, 1, 1], [], []>} : vector<32x104xbf16>, vector<104x128xbf16>, vector<32x128xf32> -> vector<32x128xf32>
    %c0_3 = arith.constant 0 : index
    %c0_4 = arith.constant 0 : index
    %4 = vector.load %arg3[%c0_3, %c0_4] : memref<1x128xf32, #tpu.memory_space<vmem>>, vector<1x128xf32>
    %5 = vector.broadcast %4 : vector<1x128xf32> to vector<32x128xf32>
    %6 = arith.addf %3, %5 : vector<32x128xf32>
    %c0_5 = arith.constant 0 : index
    %c0_6 = arith.constant 0 : index
    %7 = vector.load %arg4[%c0_5, %c0_6] : memref<32x128xf32, #tpu.memory_space<vmem>>, vector<32x128xf32>
    tpu.vector_store %arg4[%c0_5, %c0_6], %6 {strides = array<i32>} : memref<32x128xf32, #tpu.memory_space<vmem>>, vector<32x128xf32>,
    return
  }
  func.func @transform_0(%arg0: i32) -> (i32, i32) {
    %c0_i32 = arith.constant 0 : i32
    %c0_i32_0 = arith.constant 0 : i32
    return %arg0, %c0_i32 : i32, i32
  }
  func.func @transform_1(%arg0: i32) -> (i32, i32) {
    %c0_i32 = arith.constant 0 : i32
    %c0_i32_0 = arith.constant 0 : i32
    %c0_i32_1 = arith.constant 0 : i32
    return %c0_i32, %c0_i32_0 : i32, i32
  }
  func.func @transform_2(%arg0: i32) -> (i32, i32) {
    %c0_i32 = arith.constant 0 : i32
    %c0_i32_0 = arith.constant 0 : i32
    %c0_i32_1 = arith.constant 0 : i32
    return %c0_i32, %c0_i32_0 : i32, i32
  }
  func.func @transform_3(%arg0: i32) -> (i32, i32) {
    %c0_i32 = arith.constant 0 : i32
    %c0_i32_0 = arith.constant 0 : i32
    return %arg0, %c0_i32 : i32, i32
  }
}

</mosaic_0001>

<llo_original>
// kernel: forward.3
$region0: #{forward.3}
  #allocation0 [shape = 'u32[]', space=smem, size = 0x4, offset = 0x4, fixed_abs, tag = 'smem constant byte address 0x4 - core index']
  #allocation1 [shape = 'u32[144,128]{1,0:T(1,128)}', space=vmem, size = 0x12000, scoped, tag = 'internal scratch']
  %s0 = inlined_call_operand.vmem [shape: f32[168,8], index: 0, kind: input, shape index: {}]
  %s1 = inlined_call_operand.vmem [shape: bf16[8,616], index: 1, kind: input, shape index: {}]
  %s2 = inlined_call_operand.vmem [shape: f32[1,616], index: 2, kind: input, shape index: {}]
  %s3 = inlined_call_operand.vmem [shape: f32[168,616], index: 3, kind: output, shape index: {}]
  %s4 = sld [smem:[#allocation0]]
  $region22: #{forward.3} parent=0
    _
  %s6 = ssub.s32 1, %s4
  %s7 = scalar_select 0, %s6, %s4
  // Predicated region
  $region2: #{forward.3} parent=0 // pred_check
    _
  $region3: #{forward.3} parent=0 // pred_check_branch
    %9 = sbr.rel (0) target = $region5
  $region4: #{forward.3} parent=0 // pred_region
    _
  $region5: #{forward.3} parent=0 // pred_fallthru
    _
  // Predicated region
  $region6: #{forward.3} parent=0 // pred_check
    _
  $region7: #{forward.3} parent=0 // pred_check_branch
    %11 = sbr.rel (0) target = $region9
  $region8: #{forward.3} parent=0 // pred_region
    _
  $region9: #{forward.3} parent=0 // pred_fallthru
    _
  // Predicated region
  $region10: #{forward.3} parent=0 // pred_check
    _
  $region11: #{forward.3} parent=0 // pred_check_branch
    %13 = sbr.rel (0) target = $region13
  $region12: #{forward.3} parent=0 // pred_region
    _
  $region13: #{forward.3} parent=0 // pred_fallthru
    _
  %v15 = vld [vmem:[%s0] sm:$0xff]
  %v16 = vld [vmem:[%s0 + $0x8] sm:$0xff]
  %v17 = vld [vmem:[%s0 + $0x10] sm:$0xff]
  %v18 = vld [vmem:[%s0 + $0x18] sm:$0xff]
  %v19 = vld [vmem:[%s0 + $0x20] sm:$0xff]
  %v20 = vld [vmem:[%s0 + $0x28] sm:$0xff]
  %v21 = vld [vmem:[%s0 + $0x30] sm:$0xff]
  %v22 = vld [vmem:[%s0 + $0x38] sm:$0xff]
  %v23 = vld [vmem:[%s0 + $0x40] sm:$0xff]
  %v24 = vld [vmem:[%s0 + $0x48] sm:$0xff]
  %v25 = vld [vmem:[%s0 + $0x50] sm:$0xff]
  %v26 = vld [vmem:[%s0 + $0x58] sm:$0xff]
  %v27 = vld [vmem:[%s0 + $0x60] sm:$0xff]
  %v28 = vld [vmem:[%s0 + $0x68] sm:$0xff]
  %v29 = vld [vmem:[%s0 + $0x70] sm:$0xff]
  %v30 = vld [vmem:[%s0 + $0x78] sm:$0xff]
  %v31 = vld [vmem:[%s0 + $0x80] sm:$0xff]
  %v32 = vld [vmem:[%s0 + $0x88] sm:$0xff]
  %v33 = vld [vmem:[%s0 + $0x90] sm:$0xff]
  %v34 = vld [vmem:[%s0 + $0x98] sm:$0xff]
  %v35 = vld [vmem:[%s0 + $0xa0] sm:$0xff]
  %v36 = vpack.c.bf16 %v16, %v15
  %v37 = vpack.c.bf16 %v18, %v17
  %v38 = vpack.c.bf16 %v20, %v19
  %v39 = vpack.c.bf16 %v22, %v21
  %v40 = vpack.c.bf16 %v24, %v23
  %v41 = vpack.c.bf16 %v26, %v25
  %v42 = vpack.c.bf16 %v28, %v27
  %v43 = vpack.c.bf16 %v30, %v29
  %v44 = vpack.c.bf16 %v32, %v31
  %v45 = vpack.c.bf16 %v34, %v33
  %v46 = vpack.c.bf16 %v35, %v35
  %v47 = vld [vmem:[%s1] sm:$0xff]
  %v48 = vld [vmem:[%s1 + $0x8] sm:$0xff]
  %v49 = vld [vmem:[%s1 + $0x10] sm:$0xf]
  %v50 = vld [vmem:[%s2] sm:$0x1f]
  %v52 = vlaneseq
  %v53 = vshrl.u32 %v52, 7
  %v54 = vsub.s32 0, %v53
  %v55 = vrot.slane %v50, %v54
  %v56 = vlaneseq
  %v57 = vshrl.u32 %v56, 7
  %v58 = vsub.s32 1, %v57
  %v59 = vrot.slane %v50, %v58
  %v60 = vlaneseq
  %v61 = vshrl.u32 %v60, 7
  %v62 = vsub.s32 2, %v61
  %v63 = vrot.slane %v50, %v62
  %v64 = vlaneseq
  %v65 = vshrl.u32 %v64, 7
  %v66 = vsub.s32 3, %v65
  %v67 = vrot.slane %v50, %v66
  %v68 = vlaneseq
  %v69 = vshrl.u32 %v68, 7
  %v70 = vsub.s32 4, %v69
  %v71 = vrot.slane %v50, %v70
  %v80 = vunpack.c.l.b16 %v47
  %v81 = vunpack.c.h.b16 %v47
  %v82 = vunpack.c.l.b16 %v48
  %v83 = vunpack.c.h.b16 %v48
  %v84 = vunpack.c.l.b16 %v49
  %v85 = vpack.c.b16 %v80, %v80
  %v86 = vpack.c.b16 %v81, %v81
  %v87 = vpack.c.b16 %v82, %v82
  %v88 = vpack.c.b16 %v83, %v83
  %v89 = vpack.c.b16 %v84, %v84
  %vm90 = vcmask 64512
  %v92 = vsel %vm90, %v36, 0
  %v95 = vsel %vm90, %v37, 0
  %v98 = vsel %vm90, %v38, 0
  %v101 = vsel %vm90, %v39, 0
  %v104 = vsel %vm90, %v40, 0
  %v107 = vsel %vm90, %v41, 0
  %v110 = vsel %vm90, %v42, 0
  %v113 = vsel %vm90, %v43, 0
  %v116 = vsel %vm90, %v44, 0
  %v119 = vsel %vm90, %v45, 0
  %v122 = vsel %vm90, %v46, 0
  %vm124 = vcmask 1043456
  %v126 = vsel %vm124, %v85, 0
  %v129 = vsel %vm124, %v86, 0
  %v132 = vsel %vm124, %v87, 0
  %v135 = vsel %vm124, %v88, 0
  %v138 = vsel %vm124, %v89, 0
  %140 = vmatprep.subr.bf16.mxu0 %v129
  %141 = vmatpush1.bf16.msra.mxu0 %v126
  %142 = vmatprep.subr.bf16.mxu0 0
  %143 = vmatpush1.bf16.msra.mxu0 0
  %144 = vmatprep.subr.bf16.mxu0 0
  %145 = vmatpush1.bf16.msra.mxu0 0
  %146 = vmatprep.subr.bf16.mxu0 0
  %147 = vmatpush1.bf16.msra.mxu0 0
  %148 = vmatprep.subr.bf16.mxu0 0
  %149 = vmatpush1.bf16.msra.mxu0 0
  %150 = vmatprep.subr.bf16.mxu0 0
  %151 = vmatpush1.bf16.msra.mxu0 0
  %152 = vmatprep.subr.bf16.mxu0 0
  %153 = vmatpush1.bf16.msra.mxu0 0
  %154 = vmatprep.subr.bf16.mxu0 0
  %155 = vmatpush1.bf16.msra.mxu0 0
  %156 = vmatprep.subr.bf16.mxu0 0
  %157 = vmatpush1.bf16.msra.mxu0 0
  %158 = vmatprep.subr.bf16.mxu0 0
  %159 = vmatpush1.bf16.msra.mxu0 0
  %160 = vmatprep.subr.bf16.mxu0 0
  %161 = vmatpush1.bf16.msra.mxu0 0
  %162 = vmatprep.subr.bf16.mxu0 0
  %163 = vmatpush1.bf16.msra.mxu0 0
  %164 = vmatprep.subr.bf16.mxu0 0
  %165 = vmatpush1.bf16.msra.mxu0 0
  %166 = vmatprep.subr.bf16.mxu0 0
  %167 = vmatpush1.bf16.msra.mxu0 0
  %168 = vmatprep.subr.bf16.mxu0 0
  %169 = vmatpush1.bf16.msra.mxu0 0
  %170 = vmatprep.subr.bf16.mxu0 0
  %171 = vmatpush1.bf16.msra.mxu0 0
  %172 = vmatprep.mubr.bf16.mxu0 0
  %173 = vmatmul.mubr.bf16.gmra.mrb[0].mxu0 %v92
  %v174 = vpop.f32.mrb[0].mxu0
  %v175 = vadd.f32 %v55, %v174
  %v176 = vpop.f32.mrb[0].mxu0
  %v177 = vadd.f32 %v59, %v176
  %v178 = vpop.f32.mrb[0].mxu0
  %v179 = vadd.f32 %v55, %v178
  %v180 = vpop.f32.mrb[0].mxu0
  %v181 = vadd.f32 %v59, %v180
  %182 = vmatprep.mubr.bf16.mxu0 0
  %183 = vmatmul.mubr.bf16.gmra.mrb[0].mxu0 %v95
  %v184 = vpop.f32.mrb[0].mxu0
  %v185 = vadd.f32 %v55, %v184
  %v186 = vpop.f32.mrb[0].mxu0
  %v187 = vadd.f32 %v59, %v186
  %v188 = vpop.f32.mrb[0].mxu0
  %v189 = vadd.f32 %v55, %v188
  %v190 = vpop.f32.mrb[0].mxu0
  %v191 = vadd.f32 %v59, %v190
  %192 = vmatprep.mubr.bf16.mxu0 0
  %193 = vmatmul.mubr.bf16.gmra.mrb[0].mxu0 %v98
  %v194 = vpop.f32.mrb[0].mxu0
  %v195 = vadd.f32 %v55, %v194
  %v196 = vpop.f32.mrb[0].mxu0
  %v197 = vadd.f32 %v59, %v196
  %v198 = vpop.f32.mrb[0].mxu0
  %v199 = vadd.f32 %v55, %v198
  %v200 = vpop.f32.mrb[0].mxu0
  %v201 = vadd.f32 %v59, %v200
  %202 = vmatprep.mubr.bf16.mxu0 0
  %203 = vmatmul.mubr.bf16.gmra.mrb[0].mxu0 %v101
  %v204 = vpop.f32.mrb[0].mxu0
  %v205 = vadd.f32 %v55, %v204
  %v206 = vpop.f32.mrb[0].mxu0
  %v207 = vadd.f32 %v59, %v206
  %v208 = vpop.f32.mrb[0].mxu0
  %v209 = vadd.f32 %v55, %v208
  %v210 = vpop.f32.mrb[0].mxu0
  %v211 = vadd.f32 %v59, %v210
  %212 = vmatprep.mubr.bf16.mxu0 0
  %213 = vmatmul.mubr.bf16.gmra.mrb[0].mxu0 %v104
  %v214 = vpop.f32.mrb[0].mxu0
  %v215 = vadd.f32 %v55, %v214
  %v216 = vpop.f32.mrb[0].mxu0
  %v217 = vadd.f32 %v59, %v216
  %v218 = vpop.f32.mrb[0].mxu0
  %v219 = vadd.f32 %v55, %v218
  %v220 = vpop.f32.mrb[0].mxu0
  %v221 = vadd.f32 %v59, %v220
  %222 = vmatprep.mubr.bf16.mxu0 0
  %223 = vmatmul.mubr.bf16.gmra.mrb[0].mxu0 %v107
  %v224 = vpop.f32.mrb[0].mxu0
  %v225 = vadd.f32 %v55, %v224
  %v226 = vpop.f32.mrb[0].mxu0
  %v227 = vadd.f32 %v59, %v226
  %v228 = vpop.f32.mrb[0].mxu0
  %v229 = vadd.f32 %v55, %v228
  %v230 = vpop.f32.mrb[0].mxu0
  %v231 = vadd.f32 %v59, %v230
  %232 = vmatprep.mubr.bf16.mxu0 0
  %233 = vmatmul.mubr.bf16.gmra.mrb[0].mxu0 %v110
  %v234 = vpop.f32.mrb[0].mxu0
  %v235 = vadd.f32 %v55, %v234
  %v236 = vpop.f32.mrb[0].mxu0
  %v237 = vadd.f32 %v59, %v236
  %v238 = vpop.f32.mrb[0].mxu0
  %v239 = vadd.f32 %v55, %v238
  %v240 = vpop.f32.mrb[0].mxu0
  %v241 = vadd.f32 %v59, %v240
  %242 = vmatprep.mubr.bf16.mxu0 0
  %243 = vmatmul.mubr.bf16.gmra.mrb[0].mxu0 %v113
  %v244 = vpop.f32.mrb[0].mxu0
  %v245 = vadd.f32 %v55, %v244
  %v246 = vpop.f32.mrb[0].mxu0
  %v247 = vadd.f32 %v59, %v246
  %v248 = vpop.f32.mrb[0].mxu0
  %v249 = vadd.f32 %v55, %v248
  %v250 = vpop.f32.mrb[0].mxu0
  %v251 = vadd.f32 %v59, %v250
  %252 = vmatprep.mubr.bf16.mxu0 0
  %253 = vmatmul.mubr.bf16.gmra.mrb[0].mxu0 %v116
  %v254 = vpop.f32.mrb[0].mxu0
  %v255 = vadd.f32 %v55, %v254
  %v256 = vpop.f32.mrb[0].mxu0
  %v257 = vadd.f32 %v59, %v256
  %v258 = vpop.f32.mrb[0].mxu0
  %v259 = vadd.f32 %v55, %v258
  %v260 = vpop.f32.mrb[0].mxu0
  %v261 = vadd.f32 %v59, %v260
  %262 = vmatprep.mubr.bf16.mxu0 0
  %263 = vmatmul.mubr.bf16.gmra.mrb[0].mxu0 %v119
  %v264 = vpop.f32.mrb[0].mxu0
  %v265 = vadd.f32 %v55, %v264
  %v266 = vpop.f32.mrb[0].mxu0
  %v267 = vadd.f32 %v59, %v266
  %v268 = vpop.f32.mrb[0].mxu0
  %v269 = vadd.f32 %v55, %v268
  %v270 = vpop.f32.mrb[0].mxu0
  %v271 = vadd.f32 %v59, %v270
  %272 = vmatprep.mubr.bf16.mxu0 0
  %273 = vmatmul.mubr.bf16.gmra.mrb[0].mxu0 %v122
  %v274 = vpop.f32.mrb[0].mxu0
  %v275 = vadd.f32 %v55, %v274
  %v276 = vpop.f32.mrb[0].mxu0
  %v277 = vadd.f32 %v59, %v276
  %v278 = vpop.f32.mrb[0].mxu0
  %v279 = vpop.f32.mrb[0].mxu0
  %280 = vdwg.mxu0
  %281 = vmatprep.subr.bf16.mxu0 %v135
  %282 = vmatpush1.bf16.msra.mxu0 %v132
  %283 = vmatprep.subr.bf16.mxu0 0
  %284 = vmatpush1.bf16.msra.mxu0 0
  %285 = vmatprep.subr.bf16.mxu0 0
  %286 = vmatpush1.bf16.msra.mxu0 0
  %287 = vmatprep.subr.bf16.mxu0 0
  %288 = vmatpush1.bf16.msra.mxu0 0
  %289 = vmatprep.subr.bf16.mxu0 0
  %290 = vmatpush1.bf16.msra.mxu0 0
  %291 = vmatprep.subr.bf16.mxu0 0
  %292 = vmatpush1.bf16.msra.mxu0 0
  %293 = vmatprep.subr.bf16.mxu0 0
  %294 = vmatpush1.bf16.msra.mxu0 0
  %295 = vmatprep.subr.bf16.mxu0 0
  %296 = vmatpush1.bf16.msra.mxu0 0
  %297 = vmatprep.subr.bf16.mxu0 0
  %298 = vmatpush1.bf16.msra.mxu0 0
  %299 = vmatprep.subr.bf16.mxu0 0
  %300 = vmatpush1.bf16.msra.mxu0 0
  %301 = vmatprep.subr.bf16.mxu0 0
  %302 = vmatpush1.bf16.msra.mxu0 0
  %303 = vmatprep.subr.bf16.mxu0 0
  %304 = vmatpush1.bf16.msra.mxu0 0
  %305 = vmatprep.subr.bf16.mxu0 0
  %306 = vmatpush1.bf16.msra.mxu0 0
  %307 = vmatprep.subr.bf16.mxu0 0
  %308 = vmatpush1.bf16.msra.mxu0 0
  %309 = vmatprep.subr.bf16.mxu0 0
  %310 = vmatpush1.bf16.msra.mxu0 0
  %311 = vmatprep.subr.bf16.mxu0 0
  %312 = vmatpush1.bf16.msra.mxu0 0
  %313 = vmatprep.mubr.bf16.mxu0 0
  %314 = vmatmul.mubr.bf16.gmra.mrb[0].mxu0 %v92
  %v315 = vpop.f32.mrb[0].mxu0
  %v316 = vadd.f32 %v63, %v315
  %v317 = vpop.f32.mrb[0].mxu0
  %v318 = vadd.f32 %v67, %v317
  %v319 = vpop.f32.mrb[0].mxu0
  %v320 = vadd.f32 %v63, %v319
  %v321 = vpop.f32.mrb[0].mxu0
  %v322 = vadd.f32 %v67, %v321
  %323 = vmatprep.mubr.bf16.mxu0 0
  %324 = vmatmul.mubr.bf16.gmra.mrb[0].mxu0 %v95
  %v325 = vpop.f32.mrb[0].mxu0
  %v326 = vadd.f32 %v63, %v325
  %v327 = vpop.f32.mrb[0].mxu0
  %v328 = vadd.f32 %v67, %v327
  %v329 = vpop.f32.mrb[0].mxu0
  %v330 = vadd.f32 %v63, %v329
  %v331 = vpop.f32.mrb[0].mxu0
  %v332 = vadd.f32 %v67, %v331
  %333 = vmatprep.mubr.bf16.mxu0 0
  %334 = vmatmul.mubr.bf16.gmra.mrb[0].mxu0 %v98
  %v335 = vpop.f32.mrb[0].mxu0
  %v336 = vadd.f32 %v63, %v335
  %v337 = vpop.f32.mrb[0].mxu0
  %v338 = vadd.f32 %v67, %v337
  %v339 = vpop.f32.mrb[0].mxu0
  %v340 = vadd.f32 %v63, %v339
  %v341 = vpop.f32.mrb[0].mxu0
  %v342 = vadd.f32 %v67, %v341
  %343 = vmatprep.mubr.bf16.mxu0 0
  %344 = vmatmul.mubr.bf16.gmra.mrb[0].mxu0 %v101
  %v345 = vpop.f32.mrb[0].mxu0
  %v346 = vadd.f32 %v63, %v345
  %v347 = vpop.f32.mrb[0].mxu0
  %v348 = vadd.f32 %v67, %v347
  %v349 = vpop.f32.mrb[0].mxu0
  %v350 = vadd.f32 %v63, %v349
  %v351 = vpop.f32.mrb[0].mxu0
  %v352 = vadd.f32 %v67, %v351
  %353 = vmatprep.mubr.bf16.mxu0 0
  %354 = vmatmul.mubr.bf16.gmra.mrb[0].mxu0 %v104
  %v355 = vpop.f32.mrb[0].mxu0
  %v356 = vadd.f32 %v63, %v355
  %v357 = vpop.f32.mrb[0].mxu0
  %v358 = vadd.f32 %v67, %v357
  %v359 = vpop.f32.mrb[0].mxu0
  %v360 = vadd.f32 %v63, %v359
  %v361 = vpop.f32.mrb[0].mxu0
  %v362 = vadd.f32 %v67, %v361
  %363 = vmatprep.mubr.bf16.mxu0 0
  %364 = vmatmul.mubr.bf16.gmra.mrb[0].mxu0 %v107
  %v365 = vpop.f32.mrb[0].mxu0
  %v366 = vadd.f32 %v63, %v365
  %v367 = vpop.f32.mrb[0].mxu0
  %v368 = vadd.f32 %v67, %v367
  %v369 = vpop.f32.mrb[0].mxu0
  %v370 = vadd.f32 %v63, %v369
  %v371 = vpop.f32.mrb[0].mxu0
  %v372 = vadd.f32 %v67, %v371
  %373 = vmatprep.mubr.bf16.mxu0 0
  %374 = vmatmul.mubr.bf16.gmra.mrb[0].mxu0 %v110
  %v375 = vpop.f32.mrb[0].mxu0
  %v376 = vadd.f32 %v63, %v375
  %v377 = vpop.f32.mrb[0].mxu0
  %v378 = vadd.f32 %v67, %v377
  %v379 = vpop.f32.mrb[0].mxu0
  %v380 = vadd.f32 %v63, %v379
  %v381 = vpop.f32.mrb[0].mxu0
  %v382 = vadd.f32 %v67, %v381
  %383 = vmatprep.mubr.bf16.mxu0 0
  %384 = vmatmul.mubr.bf16.gmra.mrb[0].mxu0 %v113
  %v385 = vpop.f32.mrb[0].mxu0
  %v386 = vadd.f32 %v63, %v385
  %v387 = vpop.f32.mrb[0].mxu0
  %v388 = vadd.f32 %v67, %v387
  %v389 = vpop.f32.mrb[0].mxu0
  %v390 = vadd.f32 %v63, %v389
  %v391 = vpop.f32.mrb[0].mxu0
  %v392 = vadd.f32 %v67, %v391
  %393 = vmatprep.mubr.bf16.mxu0 0
  %394 = vmatmul.mubr.bf16.gmra.mrb[0].mxu0 %v116
  %v395 = vpop.f32.mrb[0].mxu0
  %v396 = vadd.f32 %v63, %v395
  %v397 = vpop.f32.mrb[0].mxu0
  %v398 = vadd.f32 %v67, %v397
  %v399 = vpop.f32.mrb[0].mxu0
  %v400 = vadd.f32 %v63, %v399
  %v401 = vpop.f32.mrb[0].mxu0
  %v402 = vadd.f32 %v67, %v401
  %403 = vmatprep.mubr.bf16.mxu0 0
  %404 = vmatmul.mubr.bf16.gmra.mrb[0].mxu0 %v119
  %v405 = vpop.f32.mrb[0].mxu0
  %v406 = vadd.f32 %v63, %v405
  %v407 = vpop.f32.mrb[0].mxu0
  %v408 = vadd.f32 %v67, %v407
  %v409 = vpop.f32.mrb[0].mxu0
  %v410 = vadd.f32 %v63, %v409
  %v411 = vpop.f32.mrb[0].mxu0
  %v412 = vadd.f32 %v67, %v411
  %413 = vmatprep.mubr.bf16.mxu0 0
  %414 = vmatmul.mubr.bf16.gmra.mrb[0].mxu0 %v122
  %v415 = vpop.f32.mrb[0].mxu0
  %v416 = vadd.f32 %v63, %v415
  %v417 = vpop.f32.mrb[0].mxu0
  %v418 = vadd.f32 %v67, %v417
  %v419 = vpop.f32.mrb[0].mxu0
  %v420 = vpop.f32.mrb[0].mxu0
  %421 = vdwg.mxu0
  %422 = vmatprep.subr.bf16.mxu0 0
  %423 = vmatpush1.bf16.msra.mxu0 %v138
  %424 = vmatprep.subr.bf16.mxu0 0
  %425 = vmatpush1.bf16.msra.mxu0 0
  %426 = vmatprep.subr.bf16.mxu0 0
  %427 = vmatpush1.bf16.msra.mxu0 0
  %428 = vmatprep.subr.bf16.mxu0 0
  %429 = vmatpush1.bf16.msra.mxu0 0
  %430 = vmatprep.subr.bf16.mxu0 0
  %431 = vmatpush1.bf16.msra.mxu0 0
  %432 = vmatprep.subr.bf16.mxu0 0
  %433 = vmatpush1.bf16.msra.mxu0 0
  %434 = vmatprep.subr.bf16.mxu0 0
  %435 = vmatpush1.bf16.msra.mxu0 0
  %436 = vmatprep.subr.bf16.mxu0 0
  %437 = vmatpush1.bf16.msra.mxu0 0
  %438 = vmatprep.subr.bf16.mxu0 0
  %439 = vmatpush1.bf16.msra.mxu0 0
  %440 = vmatprep.subr.bf16.mxu0 0
  %441 = vmatpush1.bf16.msra.mxu0 0
  %442 = vmatprep.subr.bf16.mxu0 0
  %443 = vmatpush1.bf16.msra.mxu0 0
  %444 = vmatprep.subr.bf16.mxu0 0
  %445 = vmatpush1.bf16.msra.mxu0 0
  %446 = vmatprep.subr.bf16.mxu0 0
  %447 = vmatpush1.bf16.msra.mxu0 0
  %448 = vmatprep.subr.bf16.mxu0 0
  %449 = vmatpush1.bf16.msra.mxu0 0
  %450 = vmatprep.subr.bf16.mxu0 0
  %451 = vmatpush1.bf16.msra.mxu0 0
  %452 = vmatprep.subr.bf16.mxu0 0
  %453 = vmatpush1.bf16.msra.mxu0 0
  %454 = vmatprep.mubr.bf16.mxu0 0
  %455 = vmatmul.mubr.bf16.gmra.mrb[0].mxu0 %v92
  %v456 = vpop.f32.mrb[0].mxu0
  %v457 = vadd.f32 %v71, %v456
  %v458 = vpop.f32.mrb[0].mxu0
  %v459 = vpop.f32.mrb[0].mxu0
  %v460 = vadd.f32 %v71, %v459
  %v461 = vpop.f32.mrb[0].mxu0
  %462 = vmatprep.mubr.bf16.mxu0 0
  %463 = vmatmul.mubr.bf16.gmra.mrb[0].mxu0 %v95
  %v464 = vpop.f32.mrb[0].mxu0
  %v465 = vadd.f32 %v71, %v464
  %v466 = vpop.f32.mrb[0].mxu0
  %v467 = vpop.f32.mrb[0].mxu0
  %v468 = vadd.f32 %v71, %v467
  %v469 = vpop.f32.mrb[0].mxu0
  %470 = vmatprep.mubr.bf16.mxu0 0
  %471 = vmatmul.mubr.bf16.gmra.mrb[0].mxu0 %v98
  %v472 = vpop.f32.mrb[0].mxu0
  %v473 = vadd.f32 %v71, %v472
  %v474 = vpop.f32.mrb[0].mxu0
  %v475 = vpop.f32.mrb[0].mxu0
  %v476 = vadd.f32 %v71, %v475
  %v477 = vpop.f32.mrb[0].mxu0
  %478 = vmatprep.mubr.bf16.mxu0 0
  %479 = vmatmul.mubr.bf16.gmra.mrb[0].mxu0 %v101
  %v480 = vpop.f32.mrb[0].mxu0
  %v481 = vadd.f32 %v71, %v480
  %v482 = vpop.f32.mrb[0].mxu0
  %v483 = vpop.f32.mrb[0].mxu0
  %v484 = vadd.f32 %v71, %v483
  %v485 = vpop.f32.mrb[0].mxu0
  %486 = vmatprep.mubr.bf16.mxu0 0
  %487 = vmatmul.mubr.bf16.gmra.mrb[0].mxu0 %v104
  %v488 = vpop.f32.mrb[0].mxu0
  %v489 = vadd.f32 %v71, %v488
  %v490 = vpop.f32.mrb[0].mxu0
  %v491 = vpop.f32.mrb[0].mxu0
  %v492 = vadd.f32 %v71, %v491
  %v493 = vpop.f32.mrb[0].mxu0
  %494 = vmatprep.mubr.bf16.mxu0 0
  %495 = vmatmul.mubr.bf16.gmra.mrb[0].mxu0 %v107
  %v496 = vpop.f32.mrb[0].mxu0
  %v497 = vadd.f32 %v71, %v496
  %v498 = vpop.f32.mrb[0].mxu0
  %v499 = vpop.f32.mrb[0].mxu0
  %v500 = vadd.f32 %v71, %v499
  %v501 = vpop.f32.mrb[0].mxu0
  %502 = vmatprep.mubr.bf16.mxu0 0
  %503 = vmatmul.mubr.bf16.gmra.mrb[0].mxu0 %v110
  %v504 = vpop.f32.mrb[0].mxu0
  %v505 = vadd.f32 %v71, %v504
  %v506 = vpop.f32.mrb[0].mxu0
  %v507 = vpop.f32.mrb[0].mxu0
  %v508 = vadd.f32 %v71, %v507
  %v509 = vpop.f32.mrb[0].mxu0
  %510 = vmatprep.mubr.bf16.mxu0 0
  %511 = vmatmul.mubr.bf16.gmra.mrb[0].mxu0 %v113
  %v512 = vpop.f32.mrb[0].mxu0
  %v513 = vadd.f32 %v71, %v512
  %v514 = vpop.f32.mrb[0].mxu0
  %v515 = vpop.f32.mrb[0].mxu0
  %v516 = vadd.f32 %v71, %v515
  %v517 = vpop.f32.mrb[0].mxu0
  %518 = vmatprep.mubr.bf16.mxu0 0
  %519 = vmatmul.mubr.bf16.gmra.mrb[0].mxu0 %v116
  %v520 = vpop.f32.mrb[0].mxu0
  %v521 = vadd.f32 %v71, %v520
  %v522 = vpop.f32.mrb[0].mxu0
  %v523 = vpop.f32.mrb[0].mxu0
  %v524 = vadd.f32 %v71, %v523
  %v525 = vpop.f32.mrb[0].mxu0
  %526 = vmatprep.mubr.bf16.mxu0 0
  %527 = vmatmul.mubr.bf16.gmra.mrb[0].mxu0 %v119
  %v528 = vpop.f32.mrb[0].mxu0
  %v529 = vadd.f32 %v71, %v528
  %v530 = vpop.f32.mrb[0].mxu0
  %v531 = vpop.f32.mrb[0].mxu0
  %v532 = vadd.f32 %v71, %v531
  %v533 = vpop.f32.mrb[0].mxu0
  %534 = vmatprep.mubr.bf16.mxu0 0
  %535 = vmatmul.mubr.bf16.gmra.mrb[0].mxu0 %v122
  %v536 = vpop.f32.mrb[0].mxu0
  %v537 = vadd.f32 %v71, %v536
  %v538 = vpop.f32.mrb[0].mxu0
  %v539 = vpop.f32.mrb[0].mxu0
  %v540 = vpop.f32.mrb[0].mxu0
  %541 = vdwg.mxu0
  %v542 = vmax.f32 %v175, 0.0
  %v543 = vmax.f32 %v177, 0.0
  %v544 = vmax.f32 %v316, 0.0
  %v545 = vmax.f32 %v318, 0.0
  %v546 = vmax.f32 %v457, 0.0
  %v547 = vmax.f32 %v179, 0.0
  %v548 = vmax.f32 %v181, 0.0
  %v549 = vmax.f32 %v320, 0.0
  %v550 = vmax.f32 %v322, 0.0
  %v551 = vmax.f32 %v460, 0.0
  %v552 = vmax.f32 %v185, 0.0
  %v553 = vmax.f32 %v187, 0.0
  %v554 = vmax.f32 %v326, 0.0
  %v555 = vmax.f32 %v328, 0.0
  %v556 = vmax.f32 %v465, 0.0
  %v557 = vmax.f32 %v189, 0.0
  %v558 = vmax.f32 %v191, 0.0
  %v559 = vmax.f32 %v330, 0.0
  %v560 = vmax.f32 %v332, 0.0
  %v561 = vmax.f32 %v468, 0.0
  %v562 = vmax.f32 %v195, 0.0
  %v563 = vmax.f32 %v197, 0.0
  %v564 = vmax.f32 %v336, 0.0
  %v565 = vmax.f32 %v338, 0.0
  %v566 = vmax.f32 %v473, 0.0
  %v567 = vmax.f32 %v199, 0.0
  %v568 = vmax.f32 %v201, 0.0
  %v569 = vmax.f32 %v340, 0.0
  %v570 = vmax.f32 %v342, 0.0
  %v571 = vmax.f32 %v476, 0.0
  %v572 = vmax.f32 %v205, 0.0
  %v573 = vmax.f32 %v207, 0.0
  %v574 = vmax.f32 %v346, 0.0
  %v575 = vmax.f32 %v348, 0.0
  %v576 = vmax.f32 %v481, 0.0
  %v577 = vmax.f32 %v209, 0.0
  %v578 = vmax.f32 %v211, 0.0
  %v579 = vmax.f32 %v350, 0.0
  %v580 = vmax.f32 %v352, 0.0
  %v581 = vmax.f32 %v484, 0.0
  %v582 = vmax.f32 %v215, 0.0
  %v583 = vmax.f32 %v217, 0.0
  %v584 = vmax.f32 %v356, 0.0
  %v585 = vmax.f32 %v358, 0.0
  %v586 = vmax.f32 %v489, 0.0
  %v587 = vmax.f32 %v219, 0.0
  %v588 = vmax.f32 %v221, 0.0
  %v589 = vmax.f32 %v360, 0.0
  %v590 = vmax.f32 %v362, 0.0
  %v591 = vmax.f32 %v492, 0.0
  %v592 = vmax.f32 %v225, 0.0
  %v593 = vmax.f32 %v227, 0.0
  %v594 = vmax.f32 %v366, 0.0
  %v595 = vmax.f32 %v368, 0.0
  %v596 = vmax.f32 %v497, 0.0
  %v597 = vmax.f32 %v229, 0.0
  %v598 = vmax.f32 %v231, 0.0
  %v599 = vmax.f32 %v370, 0.0
  %v600 = vmax.f32 %v372, 0.0
  %v601 = vmax.f32 %v500, 0.0
  %v602 = vmax.f32 %v235, 0.0
  %v603 = vmax.f32 %v237, 0.0
  %v604 = vmax.f32 %v376, 0.0
  %v605 = vmax.f32 %v378, 0.0
  %v606 = vmax.f32 %v505, 0.0
  %v607 = vmax.f32 %v239, 0.0
  %v608 = vmax.f32 %v241, 0.0
  %v609 = vmax.f32 %v380, 0.0
  %v610 = vmax.f32 %v382, 0.0
  %v611 = vmax.f32 %v508, 0.0
  %v612 = vmax.f32 %v245, 0.0
  %v613 = vmax.f32 %v247, 0.0
  %v614 = vmax.f32 %v386, 0.0
  %v615 = vmax.f32 %v388, 0.0
  %v616 = vmax.f32 %v513, 0.0
  %v617 = vmax.f32 %v249, 0.0
  %v618 = vmax.f32 %v251, 0.0
  %v619 = vmax.f32 %v390, 0.0
  %v620 = vmax.f32 %v392, 0.0
  %v621 = vmax.f32 %v516, 0.0
  %v622 = vmax.f32 %v255, 0.0
  %v623 = vmax.f32 %v257, 0.0
  %v624 = vmax.f32 %v396, 0.0
  %v625 = vmax.f32 %v398, 0.0
  %v626 = vmax.f32 %v521, 0.0
  %v627 = vmax.f32 %v259, 0.0
  %v628 = vmax.f32 %v261, 0.0
  %v629 = vmax.f32 %v400, 0.0
  %v630 = vmax.f32 %v402, 0.0
  %v631 = vmax.f32 %v524, 0.0
  %v632 = vmax.f32 %v265, 0.0
  %v633 = vmax.f32 %v267, 0.0
  %v634 = vmax.f32 %v406, 0.0
  %v635 = vmax.f32 %v408, 0.0
  %v636 = vmax.f32 %v529, 0.0
  %v637 = vmax.f32 %v269, 0.0
  %v638 = vmax.f32 %v271, 0.0
  %v639 = vmax.f32 %v410, 0.0
  %v640 = vmax.f32 %v412, 0.0
  %v641 = vmax.f32 %v532, 0.0
  %v642 = vmax.f32 %v275, 0.0
  %v643 = vmax.f32 %v277, 0.0
  %v644 = vmax.f32 %v416, 0.0
  %v645 = vmax.f32 %v418, 0.0
  %v646 = vmax.f32 %v537, 0.0
  %647 = vst [vmem:[%s3] sm:$0xff] %v542
  %648 = vst [vmem:[%s3 + $0x8] sm:$0xff] %v543
  %649 = vst [vmem:[%s3 + $0x10] sm:$0xff] %v544
  %650 = vst [vmem:[%s3 + $0x18] sm:$0xff] %v545
  %vm651 = vcmask 850944
  %652 = vst.msk [vmem:[%s3 + $0x20] sm:$0xff] %vm651, %v546
  %653 = vst [vmem:[%s3 + $0x28] sm:$0xff] %v547
  %654 = vst [vmem:[%s3 + $0x30] sm:$0xff] %v548
  %655 = vst [vmem:[%s3 + $0x38] sm:$0xff] %v549
  %656 = vst [vmem:[%s3 + $0x40] sm:$0xff] %v550
  %657 = vst.msk [vmem:[%s3 + $0x48] sm:$0xff] %vm651, %v551
  %658 = vst [vmem:[%s3 + $0x50] sm:$0xff] %v552
  %659 = vst [vmem:[%s3 + $0x58] sm:$0xff] %v553
  %660 = vst [vmem:[%s3 + $0x60] sm:$0xff] %v554
  %661 = vst [vmem:[%s3 + $0x68] sm:$0xff] %v555
  %662 = vst.msk [vmem:[%s3 + $0x70] sm:$0xff] %vm651, %v556
  %663 = vst [vmem:[%s3 + $0x78] sm:$0xff] %v557
  %664 = vst [vmem:[%s3 + $0x80] sm:$0xff] %v558
  %665 = vst [vmem:[%s3 + $0x88] sm:$0xff] %v559
  %666 = vst [vmem:[%s3 + $0x90] sm:$0xff] %v560
  %667 = vst.msk [vmem:[%s3 + $0x98] sm:$0xff] %vm651, %v561
  %668 = vst [vmem:[%s3 + $0xa0] sm:$0xff] %v562
  %669 = vst [vmem:[%s3 + $0xa8] sm:$0xff] %v563
  %670 = vst [vmem:[%s3 + $0xb0] sm:$0xff] %v564
  %671 = vst [vmem:[%s3 + $0xb8] sm:$0xff] %v565
  %672 = vst.msk [vmem:[%s3 + $0xc0] sm:$0xff] %vm651, %v566
  %673 = vst [vmem:[%s3 + $0xc8] sm:$0xff] %v567
  %674 = vst [vmem:[%s3 + $0xd0] sm:$0xff] %v568
  %675 = vst [vmem:[%s3 + $0xd8] sm:$0xff] %v569
  %676 = vst [vmem:[%s3 + $0xe0] sm:$0xff] %v570
  %677 = vst.msk [vmem:[%s3 + $0xe8] sm:$0xff] %vm651, %v571
  %678 = vst [vmem:[%s3 + $0xf0] sm:$0xff] %v572
  %679 = vst [vmem:[%s3 + $0xf8] sm:$0xff] %v573
  %680 = vst [vmem:[%s3 + $0x100] sm:$0xff] %v574
  %681 = vst [vmem:[%s3 + $0x108] sm:$0xff] %v575
  %682 = vst.msk [vmem:[%s3 + $0x110] sm:$0xff] %vm651, %v576
  %683 = vst [vmem:[%s3 + $0x118] sm:$0xff] %v577
  %684 = vst [vmem:[%s3 + $0x120] sm:$0xff] %v578
  %685 = vst [vmem:[%s3 + $0x128] sm:$0xff] %v579
  %686 = vst [vmem:[%s3 + $0x130] sm:$0xff] %v580
  %687 = vst.msk [vmem:[%s3 + $0x138] sm:$0xff] %vm651, %v581
  %688 = vst [vmem:[%s3 + $0x140] sm:$0xff] %v582
  %689 = vst [vmem:[%s3 + $0x148] sm:$0xff] %v583
  %690 = vst [vmem:[%s3 + $0x150] sm:$0xff] %v584
  %691 = vst [vmem:[%s3 + $0x158] sm:$0xff] %v585
  %692 = vst.msk [vmem:[%s3 + $0x160] sm:$0xff] %vm651, %v586
  %693 = vst [vmem:[%s3 + $0x168] sm:$0xff] %v587
  %694 = vst [vmem:[%s3 + $0x170] sm:$0xff] %v588
  %695 = vst [vmem:[%s3 + $0x178] sm:$0xff] %v589
  %696 = vst [vmem:[%s3 + $0x180] sm:$0xff] %v590
  %697 = vst.msk [vmem:[%s3 + $0x188] sm:$0xff] %vm651, %v591
  %698 = vst [vmem:[%s3 + $0x190] sm:$0xff] %v592
  %699 = vst [vmem:[%s3 + $0x198] sm:$0xff] %v593
  %700 = vst [vmem:[%s3 + $0x1a0] sm:$0xff] %v594
  %701 = vst [vmem:[%s3 + $0x1a8] sm:$0xff] %v595
  %702 = vst.msk [vmem:[%s3 + $0x1b0] sm:$0xff] %vm651, %v596
  %703 = vst [vmem:[%s3 + $0x1b8] sm:$0xff] %v597
  %704 = vst [vmem:[%s3 + $0x1c0] sm:$0xff] %v598
  %705 = vst [vmem:[%s3 + $0x1c8] sm:$0xff] %v599
  %706 = vst [vmem:[%s3 + $0x1d0] sm:$0xff] %v600
  %707 = vst.msk [vmem:[%s3 + $0x1d8] sm:$0xff] %vm651, %v601
  %708 = vst [vmem:[%s3 + $0x1e0] sm:$0xff] %v602
  %709 = vst [vmem:[%s3 + $0x1e8] sm:$0xff] %v603
  %710 = vst [vmem:[%s3 + $0x1f0] sm:$0xff] %v604
  %711 = vst [vmem:[%s3 + $0x1f8] sm:$0xff] %v605
  %712 = vst.msk [vmem:[%s3 + $0x200] sm:$0xff] %vm651, %v606
  %713 = vst [vmem:[%s3 + $0x208] sm:$0xff] %v607
  %714 = vst [vmem:[%s3 + $0x210] sm:$0xff] %v608
  %715 = vst [vmem:[%s3 + $0x218] sm:$0xff] %v609
  %716 = vst [vmem:[%s3 + $0x220] sm:$0xff] %v610
  %717 = vst.msk [vmem:[%s3 + $0x228] sm:$0xff] %vm651, %v611
  %718 = vst [vmem:[%s3 + $0x230] sm:$0xff] %v612
  %719 = vst [vmem:[%s3 + $0x238] sm:$0xff] %v613
  %720 = vst [vmem:[%s3 + $0x240] sm:$0xff] %v614
  %721 = vst [vmem:[%s3 + $0x248] sm:$0xff] %v615
  %722 = vst.msk [vmem:[%s3 + $0x250] sm:$0xff] %vm651, %v616
  %723 = vst [vmem:[%s3 + $0x258] sm:$0xff] %v617
  %724 = vst [vmem:[%s3 + $0x260] sm:$0xff] %v618
  %725 = vst [vmem:[%s3 + $0x268] sm:$0xff] %v619
  %726 = vst [vmem:[%s3 + $0x270] sm:$0xff] %v620
  %727 = vst.msk [vmem:[%s3 + $0x278] sm:$0xff] %vm651, %v621
  %728 = vst [vmem:[%s3 + $0x280] sm:$0xff] %v622
  %729 = vst [vmem:[%s3 + $0x288] sm:$0xff] %v623
  %730 = vst [vmem:[%s3 + $0x290] sm:$0xff] %v624
  %731 = vst [vmem:[%s3 + $0x298] sm:$0xff] %v625
  %732 = vst.msk [vmem:[%s3 + $0x2a0] sm:$0xff] %vm651, %v626
  %733 = vst [vmem:[%s3 + $0x2a8] sm:$0xff] %v627
  %734 = vst [vmem:[%s3 + $0x2b0] sm:$0xff] %v628
  %735 = vst [vmem:[%s3 + $0x2b8] sm:$0xff] %v629
  %736 = vst [vmem:[%s3 + $0x2c0] sm:$0xff] %v630
  %737 = vst.msk [vmem:[%s3 + $0x2c8] sm:$0xff] %vm651, %v631
  %738 = vst [vmem:[%s3 + $0x2d0] sm:$0xff] %v632
  %739 = vst [vmem:[%s3 + $0x2d8] sm:$0xff] %v633
  %740 = vst [vmem:[%s3 + $0x2e0] sm:$0xff] %v634
  %741 = vst [vmem:[%s3 + $0x2e8] sm:$0xff] %v635
  %742 = vst.msk [vmem:[%s3 + $0x2f0] sm:$0xff] %vm651, %v636
  %743 = vst [vmem:[%s3 + $0x2f8] sm:$0xff] %v637
  %744 = vst [vmem:[%s3 + $0x300] sm:$0xff] %v638
  %745 = vst [vmem:[%s3 + $0x308] sm:$0xff] %v639
  %746 = vst [vmem:[%s3 + $0x310] sm:$0xff] %v640
  %747 = vst.msk [vmem:[%s3 + $0x318] sm:$0xff] %vm651, %v641
  %748 = vst [vmem:[%s3 + $0x320] sm:$0xff] %v642
  %749 = vst [vmem:[%s3 + $0x328] sm:$0xff] %v643
  %750 = vst [vmem:[%s3 + $0x330] sm:$0xff] %v644
  %751 = vst [vmem:[%s3 + $0x338] sm:$0xff] %v645
  %752 = vst.msk [vmem:[%s3 + $0x340] sm:$0xff] %vm651, %v646
  // Predicated region
  $region14: #{forward.3} parent=0 // pred_check
    _
  $region15: #{forward.3} parent=0 // pred_check_branch
    %754 = sbr.rel (0) target = $region17
  $region16: #{forward.3} parent=0 // pred_region
    _
  $region17: #{forward.3} parent=0 // pred_fallthru
    _
  // Predicated region
  $region18: #{forward.3} parent=0 // pred_check
    _
  $region19: #{forward.3} parent=0 // pred_check_branch
    %756 = sbr.rel (0) target = $region21
  $region20: #{forward.3} parent=0 // pred_region
    _
  $region21: #{forward.3} parent=0 // pred_fallthru
    _

// kernel: forward.5
$region0: #{forward.5}
  #allocation0 [shape = 'u32[]', space=smem, size = 0x4, offset = 0x4, fixed_abs, tag = 'smem constant byte address 0x4 - core index']
  #allocation1 [shape = 'u32[144,128]{1,0:T(1,128)}', space=vmem, size = 0x12000, scoped, tag = 'internal scratch']
  %s0 = inlined_call_operand.vmem [shape: f32[32,104], index: 0, kind: input, shape index: {}]
  %s1 = inlined_call_operand.vmem [shape: bf16[104,128], index: 1, kind: input, shape index: {}]
  %s2 = inlined_call_operand.vmem [shape: f32[1,128], index: 2, kind: input, shape index: {}]
  %s3 = inlined_call_operand.vmem [shape: f32[32,128], index: 3, kind: output, shape index: {}]
  %s4 = sld [smem:[#allocation0]]
  $region22: #{forward.5} parent=0
    _
  %s6 = ssub.s32 1, %s4
  %s7 = scalar_select 0, %s6, %s4
  // Predicated region
  $region2: #{forward.5} parent=0 // pred_check
    _
  $region3: #{forward.5} parent=0 // pred_check_branch
    %9 = sbr.rel (0) target = $region5
  $region4: #{forward.5} parent=0 // pred_region
    _
  $region5: #{forward.5} parent=0 // pred_fallthru
    _
  // Predicated region
  $region6: #{forward.5} parent=0 // pred_check
    _
  $region7: #{forward.5} parent=0 // pred_check_branch
    %11 = sbr.rel (0) target = $region9
  $region8: #{forward.5} parent=0 // pred_region
    _
  $region9: #{forward.5} parent=0 // pred_fallthru
    _
  // Predicated region
  $region10: #{forward.5} parent=0 // pred_check
    _
  $region11: #{forward.5} parent=0 // pred_check_branch
    %13 = sbr.rel (0) target = $region13
  $region12: #{forward.5} parent=0 // pred_region
    _
  $region13: #{forward.5} parent=0 // pred_fallthru
    _
  %v15 = vld [vmem:[%s0] sm:$0xff]
  %v16 = vld [vmem:[%s0 + $0x8] sm:$0xff]
  %v17 = vld [vmem:[%s0 + $0x10] sm:$0xff]
  %v18 = vld [vmem:[%s0 + $0x18] sm:$0xff]
  %v19 = vpack.c.bf16 %v16, %v15
  %v20 = vpack.c.bf16 %v18, %v17
  %v21 = vld [vmem:[%s1] sm:$0xf]
  %v22 = vld [vmem:[%s1 + $0x4] sm:$0xf]
  %v23 = vld [vmem:[%s1 + $0x8] sm:$0xf]
  %v24 = vld [vmem:[%s1 + $0xc] sm:$0xf]
  %v25 = vld [vmem:[%s1 + $0x10] sm:$0xf]
  %v26 = vld [vmem:[%s1 + $0x14] sm:$0xf]
  %v27 = vld [vmem:[%s1 + $0x18] sm:$0xf]
  %v28 = vld [vmem:[%s1 + $0x1c] sm:$0xf]
  %v29 = vld [vmem:[%s1 + $0x20] sm:$0xf]
  %v30 = vld [vmem:[%s1 + $0x24] sm:$0xf]
  %v31 = vld [vmem:[%s1 + $0x28] sm:$0xf]
  %v32 = vld [vmem:[%s1 + $0x2c] sm:$0xf]
  %v33 = vld [vmem:[%s1 + $0x30] sm:$0xf]
  %v34 = vld [vmem:[%s2] sm:$0x1]
  %v36 = vlaneseq
  %v37 = vshrl.u32 %v36, 7
  %v38 = vsub.s32 0, %v37
  %v39 = vrot.slane %v34, %v38
  %v54 = vunpack.c.l.b16 %v21
  %v55 = vunpack.c.l.b16 %v22
  %v56 = vunpack.c.l.b16 %v23
  %v57 = vunpack.c.l.b16 %v24
  %v58 = vunpack.c.l.b16 %v25
  %v59 = vunpack.c.l.b16 %v26
  %v60 = vunpack.c.l.b16 %v27
  %v61 = vunpack.c.l.b16 %v28
  %v62 = vunpack.c.l.b16 %v29
  %v63 = vunpack.c.l.b16 %v30
  %v64 = vunpack.c.l.b16 %v31
  %v65 = vunpack.c.l.b16 %v32
  %v66 = vunpack.c.l.b16 %v33
  %v67 = vpack.c.b16 %v55, %v54
  %v68 = vpack.c.b16 %v57, %v56
  %v69 = vpack.c.b16 %v59, %v58
  %v70 = vpack.c.b16 %v61, %v60
  %v71 = vpack.c.b16 %v63, %v62
  %v72 = vpack.c.b16 %v65, %v64
  %v73 = vpack.c.b16 %v66, %v66
  %vm80 = vcmask 850944
  %v82 = vsel %vm80, %v19, 0
  %v85 = vsel %vm80, %v20, 0
  %vm87 = vcmask 1043456
  %v89 = vsel %vm87, %v73, 0
  %91 = vmatprep.subr.bf16.mxu0 0
  %92 = vmatpush1.bf16.msra.mxu0 %v67
  %93 = vmatprep.subr.bf16.mxu0 0
  %94 = vmatpush1.bf16.msra.mxu0 %v68
  %95 = vmatprep.subr.bf16.mxu0 0
  %96 = vmatpush1.bf16.msra.mxu0 %v69
  %97 = vmatprep.subr.bf16.mxu0 0
  %98 = vmatpush1.bf16.msra.mxu0 %v70
  %99 = vmatprep.subr.bf16.mxu0 0
  %100 = vmatpush1.bf16.msra.mxu0 %v71
  %101 = vmatprep.subr.bf16.mxu0 0
  %102 = vmatpush1.bf16.msra.mxu0 %v72
  %103 = vmatprep.subr.bf16.mxu0 0
  %104 = vmatpush1.bf16.msra.mxu0 %v89
  %105 = vmatprep.subr.bf16.mxu0 0
  %106 = vmatpush1.bf16.msra.mxu0 0
  %107 = vmatprep.subr.bf16.mxu0 0
  %108 = vmatpush1.bf16.msra.mxu0 0
  %109 = vmatprep.subr.bf16.mxu0 0
  %110 = vmatpush1.bf16.msra.mxu0 0
  %111 = vmatprep.subr.bf16.mxu0 0
  %112 = vmatpush1.bf16.msra.mxu0 0
  %113 = vmatprep.subr.bf16.mxu0 0
  %114 = vmatpush1.bf16.msra.mxu0 0
  %115 = vmatprep.subr.bf16.mxu0 0
  %116 = vmatpush1.bf16.msra.mxu0 0
  %117 = vmatprep.subr.bf16.mxu0 0
  %118 = vmatpush1.bf16.msra.mxu0 0
  %119 = vmatprep.subr.bf16.mxu0 0
  %120 = vmatpush1.bf16.msra.mxu0 0
  %121 = vmatprep.subr.bf16.mxu0 0
  %122 = vmatpush1.bf16.msra.mxu0 0
  %123 = vmatprep.mubr.bf16.mxu0 0
  %124 = vmatmul.mubr.bf16.gmra.mrb[0].mxu0 %v82
  %v125 = vpop.f32.mrb[0].mxu0
  %v126 = vadd.f32 %v39, %v125
  %v127 = vpop.f32.mrb[0].mxu0
  %v128 = vpop.f32.mrb[0].mxu0
  %v129 = vadd.f32 %v39, %v128
  %v130 = vpop.f32.mrb[0].mxu0
  %131 = vmatprep.mubr.bf16.mxu0 0
  %132 = vmatmul.mubr.bf16.gmra.mrb[0].mxu0 %v85
  %v133 = vpop.f32.mrb[0].mxu0
  %v134 = vadd.f32 %v39, %v133
  %v135 = vpop.f32.mrb[0].mxu0
  %v136 = vpop.f32.mrb[0].mxu0
  %v137 = vadd.f32 %v39, %v136
  %v138 = vpop.f32.mrb[0].mxu0
  %139 = vdwg.mxu0
  %140 = vst [vmem:[%s3] sm:$0xff] %v126
  %141 = vst [vmem:[%s3 + $0x8] sm:$0xff] %v129
  %142 = vst [vmem:[%s3 + $0x10] sm:$0xff] %v134
  %143 = vst [vmem:[%s3 + $0x18] sm:$0xff] %v137
  // Predicated region
  $region14: #{forward.5} parent=0 // pred_check
    _
  $region15: #{forward.5} parent=0 // pred_check_branch
    %145 = sbr.rel (0) target = $region17
  $region16: #{forward.5} parent=0 // pred_region
    _
  $region17: #{forward.5} parent=0 // pred_fallthru
    _
  // Predicated region
  $region18: #{forward.5} parent=0 // pred_check
    _
  $region19: #{forward.5} parent=0 // pred_check_branch
    %147 = sbr.rel (0) target = $region21
  $region20: #{forward.5} parent=0 // pred_region
    _
  $region21: #{forward.5} parent=0 // pred_fallthru
    _

// kernel: forward.4
$region0: #{forward.4}
  #allocation0 [shape = 'u32[]', space=smem, size = 0x4, offset = 0x4, fixed_abs, tag = 'smem constant byte address 0x4 - core index']
  #allocation1 [shape = 'u32[144,128]{1,0:T(1,128)}', space=vmem, size = 0x12000, scoped, tag = 'internal scratch']
  %s0 = inlined_call_operand.vmem [shape: f32[2,4,576], index: 0, kind: input, shape index: {}]
  %s1 = inlined_call_operand.vmem [shape: bf16[576,64], index: 1, kind: input, shape index: {}]
  %s2 = inlined_call_operand.vmem [shape: f32[1,64], index: 2, kind: input, shape index: {}]
  %s3 = inlined_call_operand.vmem [shape: bf16[576,64], index: 3, kind: input, shape index: {}]
  %s4 = inlined_call_operand.vmem [shape: f32[1,64], index: 4, kind: input, shape index: {}]
  %s5 = inlined_call_operand.vmem [shape: bf16[576,1024], index: 5, kind: input, shape index: {}]
  %s6 = inlined_call_operand.vmem [shape: f32[1,1024], index: 6, kind: input, shape index: {}]
  %s7 = inlined_call_operand.vmem [shape: bf16[1024,128], index: 7, kind: input, shape index: {}]
  %s8 = inlined_call_operand.vmem [shape: f32[1,128], index: 8, kind: input, shape index: {}]
  %s9 = inlined_call_operand.vmem [shape: f32[2,4,64], index: 9, kind: output, shape index: {0}]
  %s10 = inlined_call_operand.hbm [shape: f32[2,1,128], index: 10, kind: output, shape index: {1}]
  %11 = xla_tuple %s9, %s10
  %s12 = sld [smem:[#allocation0]]
  $region77: #{forward.4} parent=0
    _
  %s14 = ssub.s32 1, %s12
  %s15 = scalar_select 0, %s14, %s12
  $region1: #{forward.4} parent=0
    #allocation2 [shape = 'u8[1024]{0}', space=vmem, size = 0x400, scoped, tag = 'output window, operand 1']
    #allocation3 [shape = 's32[2]{0}', space=sflag, size = 0x8, scoped, tag = 'scoped memory for forward.4']
    %16 = vsyncpa [#allocation3], 0
    %s17 = scalar_lea.sflag [#allocation3], 1
    %18 = vsyncpa %s17, 0
    loop: start=0, step=1, limit=4
    $region2: #{forward.4} parent=1 // loop_pre_header
      _
    $region3: #{forward.4} parent=1 // loop_header
      %s20 = sphi 0, %s24
      %p21 = scmp.ge.s32.totalorder %s20, 4
      %s30 = sphi 0, %s32
      %s33 = sphi 0, %s30
      %s34 = sphi 0, %s33
      %s50 = sphi 0, %s34
      %s54 = sphi 0, %s54
      %s56 = sphi 0, %s54
      %s57 = sphi 0, %s56
      %s71 = sphi 0, %s57
      %s75 = sphi 0, %s75
      %s77 = sphi 0, %s75
      %s78 = sphi 0, %s77
      %s92 = sphi 0, %s78
      %s96 = sphi 0, %s96
      %s98 = sphi 0, %s96
      %s99 = sphi 0, %s98
      %s113 = sphi 0, %s99
      %s117 = sphi 0, %s117
      %s119 = sphi 0, %s117
      %s120 = sphi 0, %s119
      %s134 = sphi 0, %s120
      %s138 = sphi 0, %s138
      %s140 = sphi 0, %s138
      %s141 = sphi 0, %s140
      %s155 = sphi 0, %s141
      %s159 = sphi 0, %s159
      %s161 = sphi 0, %s159
      %s162 = sphi 0, %s161
      %s176 = sphi 0, %s162
      %s180 = sphi 0, %s180
      %s182 = sphi 0, %s180
      %s183 = sphi 0, %s182
      %s197 = sphi 0, %s183
      %s201 = sphi 0, %s201
      %s203 = sphi 0, %s201
      %s204 = sphi 0, %s203
      %s218 = sphi 0, %s204
      %s224 = sphi 0, %s226
      %s227 = sphi 0, %s224
      %s228 = sphi 0, %s227
      %s244 = sphi 0, %s228
      %s250 = sphi 0, %s252
      %s253 = sphi 0, %s250
      %s254 = sphi 0, %s253
      %s270 = sphi 0, %s254
    $region4: #{forward.4} parent=1 // loop_header_branch
      %23 = sbr.rel (%p21) target = $region8
    $region5: #{forward.4} parent=1 // loop_body
      %s25 = ssub.s32 %s20, 1
      %s26 = ssub.s32 %s20, 2
      %s27 = sadd.s32 %s20, 1
      %s28 = ssub.s32 %s20, %s27
      %p29 = scmp.eq.s32.totalorder %s28, 0
      %s31 = sadd.s32 %s30, 1
      %s32 = scalar_select %p29, %s30, %s31
      %p35 = pneg %p29
      %p36 = scmp.eq.s32.totalorder %s20, 1
      %p37 = por %p35, %p36
      %p38 = scmp.ne.s32.totalorder %s30, %s33
      %p39 = scmp.eq.s32.totalorder %s20, 0
      %p40 = por %p38, %p39
      %p41 = scmp.ne.s32.totalorder %s30, %s33
      %p42 = scmp.eq.s32.totalorder %s25, 1
      %p43 = por %p41, %p42
      %p44 = scmp.ne.s32.totalorder %s33, %s34
      %p45 = scmp.eq.s32.totalorder %s25, 0
      %p46 = por %p44, %p45
      %p47 = scmp.ne.s32.totalorder %s33, %s34
      %p48 = scmp.eq.s32.totalorder %s26, 1
      %p49 = por %p47, %p48
      %p51 = scmp.ne.s32.totalorder %s34, %s50
      %p52 = scmp.eq.s32.totalorder %s26, 0
      %p53 = por %p51, %p52
      %s55 = sadd.s32 %s54, 1
      %p58 = scmp.eq.s32.totalorder %s20, 1
      %p59 = scmp.ne.s32.totalorder %s54, %s56
      %p60 = scmp.eq.s32.totalorder %s20, 0
      %p61 = por %p59, %p60
      %p62 = scmp.ne.s32.totalorder %s54, %s56
      %p63 = scmp.eq.s32.totalorder %s25, 1
      %p64 = por %p62, %p63
      %p65 = scmp.ne.s32.totalorder %s56, %s57
      %p66 = scmp.eq.s32.totalorder %s25, 0
      %p67 = por %p65, %p66
      %p68 = scmp.ne.s32.totalorder %s56, %s57
      %p69 = scmp.eq.s32.totalorder %s26, 1
      %p70 = por %p68, %p69
      %p72 = scmp.ne.s32.totalorder %s57, %s71
      %p73 = scmp.eq.s32.totalorder %s26, 0
      %p74 = por %p72, %p73
      %s76 = sadd.s32 %s75, 1
      %p79 = scmp.eq.s32.totalorder %s20, 1
      %p80 = scmp.ne.s32.totalorder %s75, %s77
      %p81 = scmp.eq.s32.totalorder %s20, 0
      %p82 = por %p80, %p81
      %p83 = scmp.ne.s32.totalorder %s75, %s77
      %p84 = scmp.eq.s32.totalorder %s25, 1
      %p85 = por %p83, %p84
      %p86 = scmp.ne.s32.totalorder %s77, %s78
      %p87 = scmp.eq.s32.totalorder %s25, 0
      %p88 = por %p86, %p87
      %p89 = scmp.ne.s32.totalorder %s77, %s78
      %p90 = scmp.eq.s32.totalorder %s26, 1
      %p91 = por %p89, %p90
      %p93 = scmp.ne.s32.totalorder %s78, %s92
      %p94 = scmp.eq.s32.totalorder %s26, 0
      %p95 = por %p93, %p94
      %s97 = sadd.s32 %s96, 1
      %p100 = scmp.eq.s32.totalorder %s20, 1
      %p101 = scmp.ne.s32.totalorder %s96, %s98
      %p102 = scmp.eq.s32.totalorder %s20, 0
      %p103 = por %p101, %p102
      %p104 = scmp.ne.s32.totalorder %s96, %s98
      %p105 = scmp.eq.s32.totalorder %s25, 1
      %p106 = por %p104, %p105
      %p107 = scmp.ne.s32.totalorder %s98, %s99
      %p108 = scmp.eq.s32.totalorder %s25, 0
      %p109 = por %p107, %p108
      %p110 = scmp.ne.s32.totalorder %s98, %s99
      %p111 = scmp.eq.s32.totalorder %s26, 1
      %p112 = por %p110, %p111
      %p114 = scmp.ne.s32.totalorder %s99, %s113
      %p115 = scmp.eq.s32.totalorder %s26, 0
      %p116 = por %p114, %p115
      %s118 = sadd.s32 %s117, 1
      %p121 = scmp.eq.s32.totalorder %s20, 1
      %p122 = scmp.ne.s32.totalorder %s117, %s119
      %p123 = scmp.eq.s32.totalorder %s20, 0
      %p124 = por %p122, %p123
      %p125 = scmp.ne.s32.totalorder %s117, %s119
      %p126 = scmp.eq.s32.totalorder %s25, 1
      %p127 = por %p125, %p126
      %p128 = scmp.ne.s32.totalorder %s119, %s120
      %p129 = scmp.eq.s32.totalorder %s25, 0
      %p130 = por %p128, %p129
      %p131 = scmp.ne.s32.totalorder %s119, %s120
      %p132 = scmp.eq.s32.totalorder %s26, 1
      %p133 = por %p131, %p132
      %p135 = scmp.ne.s32.totalorder %s120, %s134
      %p136 = scmp.eq.s32.totalorder %s26, 0
      %p137 = por %p135, %p136
      %s139 = sadd.s32 %s138, 1
      %p142 = scmp.eq.s32.totalorder %s20, 1
      %p143 = scmp.ne.s32.totalorder %s138, %s140
      %p144 = scmp.eq.s32.totalorder %s20, 0
      %p145 = por %p143, %p144
      %p146 = scmp.ne.s32.totalorder %s138, %s140
      %p147 = scmp.eq.s32.totalorder %s25, 1
      %p148 = por %p146, %p147
      %p149 = scmp.ne.s32.totalorder %s140, %s141
      %p150 = scmp.eq.s32.totalorder %s25, 0
      %p151 = por %p149, %p150
      %p152 = scmp.ne.s32.totalorder %s140, %s141
      %p153 = scmp.eq.s32.totalorder %s26, 1
      %p154 = por %p152, %p153
      %p156 = scmp.ne.s32.totalorder %s141, %s155
      %p157 = scmp.eq.s32.totalorder %s26, 0
      %p158 = por %p156, %p157
      %s160 = sadd.s32 %s159, 1
      %p163 = scmp.eq.s32.totalorder %s20, 1
      %p164 = scmp.ne.s32.totalorder %s159, %s161
      %p165 = scmp.eq.s32.totalorder %s20, 0
      %p166 = por %p164, %p165
      %p167 = scmp.ne.s32.totalorder %s159, %s161
      %p168 = scmp.eq.s32.totalorder %s25, 1
      %p169 = por %p167, %p168
      %p170 = scmp.ne.s32.totalorder %s161, %s162
      %p171 = scmp.eq.s32.totalorder %s25, 0
      %p172 = por %p170, %p171
      %p173 = scmp.ne.s32.totalorder %s161, %s162
      %p174 = scmp.eq.s32.totalorder %s26, 1
      %p175 = por %p173, %p174
      %p177 = scmp.ne.s32.totalorder %s162, %s176
      %p178 = scmp.eq.s32.totalorder %s26, 0
      %p179 = por %p177, %p178
      %s181 = sadd.s32 %s180, 1
      %p184 = scmp.eq.s32.totalorder %s20, 1
      %p185 = scmp.ne.s32.totalorder %s180, %s182
      %p186 = scmp.eq.s32.totalorder %s20, 0
      %p187 = por %p185, %p186
      %p188 = scmp.ne.s32.totalorder %s180, %s182
      %p189 = scmp.eq.s32.totalorder %s25, 1
      %p190 = por %p188, %p189
      %p191 = scmp.ne.s32.totalorder %s182, %s183
      %p192 = scmp.eq.s32.totalorder %s25, 0
      %p193 = por %p191, %p192
      %p194 = scmp.ne.s32.totalorder %s182, %s183
      %p195 = scmp.eq.s32.totalorder %s26, 1
      %p196 = por %p194, %p195
      %p198 = scmp.ne.s32.totalorder %s183, %s197
      %p199 = scmp.eq.s32.totalorder %s26, 0
      %p200 = por %p198, %p199
      %s202 = sadd.s32 %s201, 1
      %p205 = scmp.eq.s32.totalorder %s20, 1
      %p206 = scmp.ne.s32.totalorder %s201, %s203
      %p207 = scmp.eq.s32.totalorder %s20, 0
      %p208 = por %p206, %p207
      %p209 = scmp.ne.s32.totalorder %s201, %s203
      %p210 = scmp.eq.s32.totalorder %s25, 1
      %p211 = por %p209, %p210
      %p212 = scmp.ne.s32.totalorder %s203, %s204
      %p213 = scmp.eq.s32.totalorder %s25, 0
      %p214 = por %p212, %p213
      %p215 = scmp.ne.s32.totalorder %s203, %s204
      %p216 = scmp.eq.s32.totalorder %s26, 1
      %p217 = por %p215, %p216
      %p219 = scmp.ne.s32.totalorder %s204, %s218
      %p220 = scmp.eq.s32.totalorder %s26, 0
      %p221 = por %p219, %p220
      %s222 = ssub.s32 %s20, %s27
      %p223 = scmp.eq.s32.totalorder %s222, 0
      %s225 = sadd.s32 %s224, 1
      %s226 = scalar_select %p223, %s224, %s225
      %p229 = pneg %p223
      %p230 = scmp.eq.s32.totalorder %s20, 1
      %p231 = por %p229, %p230
      %p232 = scmp.ne.s32.totalorder %s224, %s227
      %p233 = scmp.eq.s32.totalorder %s20, 0
      %p234 = por %p232, %p233
      %p235 = scmp.ne.s32.totalorder %s224, %s227
      %p236 = scmp.eq.s32.totalorder %s25, 1
      %p237 = por %p235, %p236
      %p238 = scmp.ne.s32.totalorder %s227, %s228
      %p239 = scmp.eq.s32.totalorder %s25, 0
      %p240 = por %p238, %p239
      %p241 = scmp.ne.s32.totalorder %s227, %s228
      %p242 = scmp.eq.s32.totalorder %s26, 1
      %p243 = por %p241, %p242
      %p245 = scmp.ne.s32.totalorder %s228, %s244
      %p246 = scmp.eq.s32.totalorder %s26, 0
      %p247 = por %p245, %p246
      %s248 = ssub.s32 %s20, %s27
      %p249 = scmp.eq.s32.totalorder %s248, 0
      %s251 = sadd.s32 %s250, 1
      %s252 = scalar_select %p249, %s250, %s251
      %p255 = pneg %p249
      %p256 = scmp.eq.s32.totalorder %s20, 1
      %p257 = por %p255, %p256
      %p258 = scmp.ne.s32.totalorder %s250, %s253
      %p259 = scmp.eq.s32.totalorder %s20, 0
      %p260 = por %p258, %p259
      %p261 = scmp.ne.s32.totalorder %s250, %s253
      %p262 = scmp.eq.s32.totalorder %s25, 1
      %p263 = por %p261, %p262
      %p264 = scmp.ne.s32.totalorder %s253, %s254
      %p265 = scmp.eq.s32.totalorder %s25, 0
      %p266 = por %p264, %p265
      %p267 = scmp.ne.s32.totalorder %s253, %s254
      %p268 = scmp.eq.s32.totalorder %s26, 1
      %p269 = por %p267, %p268
      %p271 = scmp.ne.s32.totalorder %s254, %s270
      %p272 = scmp.eq.s32.totalorder %s26, 0
      %p273 = por %p271, %p272
      %p274 = scmp.le.s32.totalorder 1, %s20
      %p275 = scmp.lt.s32.totalorder %s20, 3
      %p276 = pnand %p274, %p275
      %p277 = pneg %p276
      // Predicated region
      $region9: #{forward.4} parent=5 // pred_check
        _
      $region10: #{forward.4} parent=5 // pred_check_branch
        %279 = sbr.rel (%p276) target = $region12
      $region11: #{forward.4} parent=5 // pred_region
        %s280 = ssub.s32 %s20, 1
        // Predicated region
        $region13: #{forward.4} parent=11 // pred_check
          %p281 = pneg %p67
        $region14: #{forward.4} parent=11 // pred_check_branch
          %283 = sbr.rel (%p281) target = $region16
        $region15: #{forward.4} parent=11 // pred_region
          _
        $region16: #{forward.4} parent=11 // pred_fallthru
          _
        // Predicated region
        $region17: #{forward.4} parent=11 // pred_check
          %p284 = pneg %p88
        $region18: #{forward.4} parent=11 // pred_check_branch
          %286 = sbr.rel (%p284) target = $region20
        $region19: #{forward.4} parent=11 // pred_region
          _
        $region20: #{forward.4} parent=11 // pred_fallthru
          _
        // Predicated region
        $region21: #{forward.4} parent=11 // pred_check
          %p287 = pneg %p109
        $region22: #{forward.4} parent=11 // pred_check_branch
          %289 = sbr.rel (%p287) target = $region24
        $region23: #{forward.4} parent=11 // pred_region
          _
        $region24: #{forward.4} parent=11 // pred_fallthru
          _
        // Predicated region
        $region25: #{forward.4} parent=11 // pred_check
          %p290 = pneg %p130
        $region26: #{forward.4} parent=11 // pred_check_branch
          %292 = sbr.rel (%p290) target = $region28
        $region27: #{forward.4} parent=11 // pred_region
          _
        $region28: #{forward.4} parent=11 // pred_fallthru
          _
        // Predicated region
        $region29: #{forward.4} parent=11 // pred_check
          %p293 = pneg %p151
        $region30: #{forward.4} parent=11 // pred_check_branch
          %295 = sbr.rel (%p293) target = $region32
        $region31: #{forward.4} parent=11 // pred_region
          _
        $region32: #{forward.4} parent=11 // pred_fallthru
          _
        // Predicated region
        $region33: #{forward.4} parent=11 // pred_check
          %p296 = pneg %p172
        $region34: #{forward.4} parent=11 // pred_check_branch
          %298 = sbr.rel (%p296) target = $region36
        $region35: #{forward.4} parent=11 // pred_region
          _
        $region36: #{forward.4} parent=11 // pred_fallthru
          _
        // Predicated region
        $region37: #{forward.4} parent=11 // pred_check
          %p299 = pneg %p193
        $region38: #{forward.4} parent=11 // pred_check_branch
          %301 = sbr.rel (%p299) target = $region40
        $region39: #{forward.4} parent=11 // pred_region
          _
        $region40: #{forward.4} parent=11 // pred_fallthru
          _
        // Predicated region
        $region41: #{forward.4} parent=11 // pred_check
          %p302 = pneg %p214
        $region42: #{forward.4} parent=11 // pred_check_branch
          %304 = sbr.rel (%p302) target = $region44
        $region43: #{forward.4} parent=11 // pred_region
          _
        $region44: #{forward.4} parent=11 // pred_fallthru
          _
      $region12: #{forward.4} parent=5 // pred_fallthru
        _
      %p305 = scmp.lt.s32.totalorder %s20, 2
      // Predicated region
      $region45: #{forward.4} parent=5 // pred_check
        %p306 = pneg %p305
      $region46: #{forward.4} parent=5 // pred_check_branch
        %308 = sbr.rel (%p306) target = $region48
      $region47: #{forward.4} parent=5 // pred_region
        // Predicated region
        $region49: #{forward.4} parent=47 // pred_check
          %p309 = pneg %p40
        $region50: #{forward.4} parent=47 // pred_check_branch
          %311 = sbr.rel (%p309) target = $region52
        $region51: #{forward.4} parent=47 // pred_region
          %p312 = scmp.lt.s32.totalorder %s20, 1
          %s313 = scalar_select %p312, %s20, 1
          %s314 = smul.addr %s313, 5
          %s315 = smul.addr %s314, 4
          %s316 = scalar_lea.vmem %s0, %s315
        $region52: #{forward.4} parent=47 // pred_fallthru
          _
      $region48: #{forward.4} parent=5 // pred_fallthru
        _
      %p317 = scmp.le.s32.totalorder 1, %s20
      %p318 = scmp.lt.s32.totalorder %s20, 3
      %p319 = pnand %p317, %p318
      %p320 = pneg %p319
      // Predicated region
      $region53: #{forward.4} parent=5 // pred_check
        _
      $region54: #{forward.4} parent=5 // pred_check_branch
        %322 = sbr.rel (%p319) target = $region56
      $region55: #{forward.4} parent=5 // pred_region
        %s323 = ssub.s32 %s20, 1
        %p324 = scmp.lt.s32.totalorder %s25, 1
        %s325 = scalar_select %p324, %s25, 1
        %s326 = smul.addr %s325, 5
        %s327 = smul.addr %s326, 4
        %s328 = scalar_lea.vmem %s0, %s327
        %p329 = pneg %p46
        %p330 = pneg %p43
        %p331 = pneg %p67
        %p332 = pneg %p64
        %p333 = pneg %p88
        %p334 = pneg %p85
        %p335 = pneg %p109
        %p336 = pneg %p106
        %p337 = pneg %p130
        %p338 = pneg %p127
        %p339 = pneg %p151
        %p340 = pneg %p148
        %p341 = pneg %p172
        %p342 = pneg %p169
        %p343 = pneg %p193
        %p344 = pneg %p190
        %p345 = pneg %p214
        %p346 = pneg %p211
        %p347 = pneg %p240
        %p348 = pneg %p237
        %p349 = scmp.lt.s32.totalorder %s25, 1
        %s350 = scalar_select %p349, %s25, 1
        %s351 = smul.addr %s350, 4
        %s352 = scalar_lea.vmem %s9, %s351
        %p353 = pneg %p266
        %p354 = pneg %p263
        %s355 = sand.u32 %s253, 1
        %s356 = scalar_lea.sflag [#allocation3], %s355
        %s357 = sand.u32 %s253, 1
        %s358 = scalar_lea.vmem [#allocation2], %s357
        %p359 = scmp.lt.s32.totalorder %s25, 1
        %s360 = scalar_select %p359, %s25, 1
        %s361 = smul.addr %s360, 5
        %s362 = smul.addr %s361, 4
        %s363 = scalar_lea.vmem %s0, %s362
        %p364 = scmp.lt.s32.totalorder %s25, 1
        %s365 = scalar_select %p364, %s25, 1
        %s366 = smul.addr %s365, 4
        %s367 = scalar_lea.vmem %s9, %s366
        %v369 = vld [vmem:[%s363] sm:$0xff]
        %v370 = vld [vmem:[%s363 + $0x8] sm:$0xff]
        %v371 = vld [vmem:[%s363 + $0x10] sm:$0xf]
        %v374 = vcombine.high %v369, %v369
        %v375 = vcombine.high %v370, %v370
        %v378 = vpack.c.bf16 %v369, %v369
        %v379 = vpack.c.bf16 %v374, %v374
        %v380 = vpack.c.bf16 %v370, %v370
        %v381 = vpack.c.bf16 %v375, %v375
        %v382 = vpack.c.bf16 %v371, %v371
        %v383 = vld [vmem:[%s1] sm:$0xf]
        %v384 = vld [vmem:[%s1 + $0x4] sm:$0xf]
        %v385 = vld [vmem:[%s1 + $0x8] sm:$0xf]
        %v386 = vld [vmem:[%s1 + $0xc] sm:$0xf]
        %v387 = vld [vmem:[%s1 + $0x10] sm:$0xf]
        %v388 = vld [vmem:[%s1 + $0x14] sm:$0xf]
        %v389 = vld [vmem:[%s1 + $0x18] sm:$0xf]
        %v390 = vld [vmem:[%s1 + $0x1c] sm:$0xf]
        %v391 = vld [vmem:[%s1 + $0x20] sm:$0xf]
        %v392 = vld [vmem:[%s1 + $0x24] sm:$0xf]
        %v393 = vld [vmem:[%s1 + $0x28] sm:$0xf]
        %v394 = vld [vmem:[%s1 + $0x2c] sm:$0xf]
        %v395 = vld [vmem:[%s1 + $0x30] sm:$0xf]
        %v396 = vld [vmem:[%s1 + $0x34] sm:$0xf]
        %v397 = vld [vmem:[%s1 + $0x38] sm:$0xf]
        %v398 = vld [vmem:[%s1 + $0x3c] sm:$0xf]
        %v399 = vld [vmem:[%s1 + $0x40] sm:$0xf]
        %v400 = vld [vmem:[%s1 + $0x44] sm:$0xf]
        %v401 = vld [vmem:[%s1 + $0x48] sm:$0xf]
        %v402 = vld [vmem:[%s1 + $0x4c] sm:$0xf]
        %v403 = vld [vmem:[%s1 + $0x50] sm:$0xf]
        %v404 = vld [vmem:[%s1 + $0x54] sm:$0xf]
        %v405 = vld [vmem:[%s1 + $0x58] sm:$0xf]
        %v406 = vld [vmem:[%s1 + $0x5c] sm:$0xf]
        %v407 = vld [vmem:[%s1 + $0x60] sm:$0xf]
        %v408 = vld [vmem:[%s1 + $0x64] sm:$0xf]
        %v409 = vld [vmem:[%s1 + $0x68] sm:$0xf]
        %v410 = vld [vmem:[%s1 + $0x6c] sm:$0xf]
        %v411 = vld [vmem:[%s1 + $0x70] sm:$0xf]
        %v412 = vld [vmem:[%s1 + $0x74] sm:$0xf]
        %v413 = vld [vmem:[%s1 + $0x78] sm:$0xf]
        %v414 = vld [vmem:[%s1 + $0x7c] sm:$0xf]
        %v415 = vld [vmem:[%s1 + $0x80] sm:$0xf]
        %v416 = vld [vmem:[%s1 + $0x84] sm:$0xf]
        %v417 = vld [vmem:[%s1 + $0x88] sm:$0xf]
        %v418 = vld [vmem:[%s1 + $0x8c] sm:$0xf]
        %v419 = vld [vmem:[%s1 + $0x90] sm:$0xf]
        %v420 = vld [vmem:[%s1 + $0x94] sm:$0xf]
        %v421 = vld [vmem:[%s1 + $0x98] sm:$0xf]
        %v422 = vld [vmem:[%s1 + $0x9c] sm:$0xf]
        %v423 = vld [vmem:[%s1 + $0xa0] sm:$0xf]
        %v424 = vld [vmem:[%s1 + $0xa4] sm:$0xf]
        %v425 = vld [vmem:[%s1 + $0xa8] sm:$0xf]
        %v426 = vld [vmem:[%s1 + $0xac] sm:$0xf]
        %v427 = vld [vmem:[%s1 + $0xb0] sm:$0xf]
        %v428 = vld [vmem:[%s1 + $0xb4] sm:$0xf]
        %v429 = vld [vmem:[%s1 + $0xb8] sm:$0xf]
        %v430 = vld [vmem:[%s1 + $0xbc] sm:$0xf]
        %v431 = vld [vmem:[%s1 + $0xc0] sm:$0xf]
        %v432 = vld [vmem:[%s1 + $0xc4] sm:$0xf]
        %v433 = vld [vmem:[%s1 + $0xc8] sm:$0xf]
        %v434 = vld [vmem:[%s1 + $0xcc] sm:$0xf]
        %v435 = vld [vmem:[%s1 + $0xd0] sm:$0xf]
        %v436 = vld [vmem:[%s1 + $0xd4] sm:$0xf]
        %v437 = vld [vmem:[%s1 + $0xd8] sm:$0xf]
        %v438 = vld [vmem:[%s1 + $0xdc] sm:$0xf]
        %v439 = vld [vmem:[%s1 + $0xe0] sm:$0xf]
        %v440 = vld [vmem:[%s1 + $0xe4] sm:$0xf]
        %v441 = vld [vmem:[%s1 + $0xe8] sm:$0xf]
        %v442 = vld [vmem:[%s1 + $0xec] sm:$0xf]
        %v443 = vld [vmem:[%s1 + $0xf0] sm:$0xf]
        %v444 = vld [vmem:[%s1 + $0xf4] sm:$0xf]
        %v445 = vld [vmem:[%s1 + $0xf8] sm:$0xf]
        %v446 = vld [vmem:[%s1 + $0xfc] sm:$0xf]
        %v447 = vld [vmem:[%s1 + $0x100] sm:$0xf]
        %v448 = vld [vmem:[%s1 + $0x104] sm:$0xf]
        %v449 = vld [vmem:[%s1 + $0x108] sm:$0xf]
        %v450 = vld [vmem:[%s1 + $0x10c] sm:$0xf]
        %v451 = vld [vmem:[%s1 + $0x110] sm:$0xf]
        %v452 = vld [vmem:[%s1 + $0x114] sm:$0xf]
        %v453 = vld [vmem:[%s1 + $0x118] sm:$0xf]
        %v454 = vld [vmem:[%s1 + $0x11c] sm:$0xf]
        %v455 = vld [vmem:[%s2] sm:$0x1]
        %v457 = vlaneseq
        %v458 = vshrl.u32 %v457, 7
        %v459 = vsub.s32 0, %v458
        %v460 = vrot.slane %v455, %v459
        %v534 = vunpack.c.l.b16 %v383
        %v535 = vunpack.c.l.b16 %v384
        %v536 = vunpack.c.l.b16 %v385
        %v537 = vunpack.c.l.b16 %v386
        %v538 = vunpack.c.l.b16 %v387
        %v539 = vunpack.c.l.b16 %v388
        %v540 = vunpack.c.l.b16 %v389
        %v541 = vunpack.c.l.b16 %v390
        %v542 = vunpack.c.l.b16 %v391
        %v543 = vunpack.c.l.b16 %v392
        %v544 = vunpack.c.l.b16 %v393
        %v545 = vunpack.c.l.b16 %v394
        %v546 = vunpack.c.l.b16 %v395
        %v547 = vunpack.c.l.b16 %v396
        %v548 = vunpack.c.l.b16 %v397
        %v549 = vunpack.c.l.b16 %v398
        %v550 = vunpack.c.l.b16 %v399
        %v551 = vunpack.c.l.b16 %v400
        %v552 = vunpack.c.l.b16 %v401
        %v553 = vunpack.c.l.b16 %v402
        %v554 = vunpack.c.l.b16 %v403
        %v555 = vunpack.c.l.b16 %v404
        %v556 = vunpack.c.l.b16 %v405
        %v557 = vunpack.c.l.b16 %v406
        %v558 = vunpack.c.l.b16 %v407
        %v559 = vunpack.c.l.b16 %v408
        %v560 = vunpack.c.l.b16 %v409
        %v561 = vunpack.c.l.b16 %v410
        %v562 = vunpack.c.l.b16 %v411
        %v563 = vunpack.c.l.b16 %v412
        %v564 = vunpack.c.l.b16 %v413
        %v565 = vunpack.c.l.b16 %v414
        %v566 = vunpack.c.l.b16 %v415
        %v567 = vunpack.c.l.b16 %v416
        %v568 = vunpack.c.l.b16 %v417
        %v569 = vunpack.c.l.b16 %v418
        %v570 = vunpack.c.l.b16 %v419
        %v571 = vunpack.c.l.b16 %v420
        %v572 = vunpack.c.l.b16 %v421
        %v573 = vunpack.c.l.b16 %v422
        %v574 = vunpack.c.l.b16 %v423
        %v575 = vunpack.c.l.b16 %v424
        %v576 = vunpack.c.l.b16 %v425
        %v577 = vunpack.c.l.b16 %v426
        %v578 = vunpack.c.l.b16 %v427
        %v579 = vunpack.c.l.b16 %v428
        %v580 = vunpack.c.l.b16 %v429
        %v581 = vunpack.c.l.b16 %v430
        %v582 = vunpack.c.l.b16 %v431
        %v583 = vunpack.c.l.b16 %v432
        %v584 = vunpack.c.l.b16 %v433
        %v585 = vunpack.c.l.b16 %v434
        %v586 = vunpack.c.l.b16 %v435
        %v587 = vunpack.c.l.b16 %v436
        %v588 = vunpack.c.l.b16 %v437
        %v589 = vunpack.c.l.b16 %v438
        %v590 = vunpack.c.l.b16 %v439
        %v591 = vunpack.c.l.b16 %v440
        %v592 = vunpack.c.l.b16 %v441
        %v593 = vunpack.c.l.b16 %v442
        %v594 = vunpack.c.l.b16 %v443
        %v595 = vunpack.c.l.b16 %v444
        %v596 = vunpack.c.l.b16 %v445
        %v597 = vunpack.c.l.b16 %v446
        %v598 = vunpack.c.l.b16 %v447
        %v599 = vunpack.c.l.b16 %v448
        %v600 = vunpack.c.l.b16 %v449
        %v601 = vunpack.c.l.b16 %v450
        %v602 = vunpack.c.l.b16 %v451
        %v603 = vunpack.c.l.b16 %v452
        %v604 = vunpack.c.l.b16 %v453
        %v605 = vunpack.c.l.b16 %v454
        %v606 = vpack.c.b16 %v535, %v534
        %v607 = vpack.c.b16 %v537, %v536
        %v608 = vpack.c.b16 %v539, %v538
        %v609 = vpack.c.b16 %v541, %v540
        %v610 = vpack.c.b16 %v543, %v542
        %v611 = vpack.c.b16 %v545, %v544
        %v612 = vpack.c.b16 %v547, %v546
        %v613 = vpack.c.b16 %v549, %v548
        %v614 = vpack.c.b16 %v551, %v550
        %v615 = vpack.c.b16 %v553, %v552
        %v616 = vpack.c.b16 %v555, %v554
        %v617 = vpack.c.b16 %v557, %v556
        %v618 = vpack.c.b16 %v559, %v558
        %v619 = vpack.c.b16 %v561, %v560
        %v620 = vpack.c.b16 %v563, %v562
        %v621 = vpack.c.b16 %v565, %v564
        %v622 = vpack.c.b16 %v567, %v566
        %v623 = vpack.c.b16 %v569, %v568
        %v624 = vpack.c.b16 %v571, %v570
        %v625 = vpack.c.b16 %v573, %v572
        %v626 = vpack.c.b16 %v575, %v574
        %v627 = vpack.c.b16 %v577, %v576
        %v628 = vpack.c.b16 %v579, %v578
        %v629 = vpack.c.b16 %v581, %v580
        %v630 = vpack.c.b16 %v583, %v582
        %v631 = vpack.c.b16 %v585, %v584
        %v632 = vpack.c.b16 %v587, %v586
        %v633 = vpack.c.b16 %v589, %v588
        %v634 = vpack.c.b16 %v591, %v590
        %v635 = vpack.c.b16 %v593, %v592
        %v636 = vpack.c.b16 %v595, %v594
        %v637 = vpack.c.b16 %v597, %v596
        %v638 = vpack.c.b16 %v599, %v598
        %v639 = vpack.c.b16 %v601, %v600
        %v640 = vpack.c.b16 %v603, %v602
        %v641 = vpack.c.b16 %v605, %v604
        %vm678 = vcmask 523264
        %v680 = vsel %vm678, %v382, 0
        %682 = vmatprep.subr.bf16.mxu0 0
        %683 = vmatpush1.bf16.msra.mxu0 %v606
        %684 = vmatprep.subr.bf16.mxu0 0
        %685 = vmatpush1.bf16.msra.mxu0 %v607
        %686 = vmatprep.subr.bf16.mxu0 0
        %687 = vmatpush1.bf16.msra.mxu0 %v608
        %688 = vmatprep.subr.bf16.mxu0 0
        %689 = vmatpush1.bf16.msra.mxu0 %v609
        %690 = vmatprep.subr.bf16.mxu0 0
        %691 = vmatpush1.bf16.msra.mxu0 %v610
        %692 = vmatprep.subr.bf16.mxu0 0
        %693 = vmatpush1.bf16.msra.mxu0 %v611
        %694 = vmatprep.subr.bf16.mxu0 0
        %695 = vmatpush1.bf16.msra.mxu0 %v612
        %696 = vmatprep.subr.bf16.mxu0 0
        %697 = vmatpush1.bf16.msra.mxu0 %v613
        %698 = vmatprep.subr.bf16.mxu0 0
        %699 = vmatpush1.bf16.msra.mxu0 %v614
        %700 = vmatprep.subr.bf16.mxu0 0
        %701 = vmatpush1.bf16.msra.mxu0 %v615
        %702 = vmatprep.subr.bf16.mxu0 0
        %703 = vmatpush1.bf16.msra.mxu0 %v616
        %704 = vmatprep.subr.bf16.mxu0 0
        %705 = vmatpush1.bf16.msra.mxu0 %v617
        %706 = vmatprep.subr.bf16.mxu0 0
        %707 = vmatpush1.bf16.msra.mxu0 %v618
        %708 = vmatprep.subr.bf16.mxu0 0
        %709 = vmatpush1.bf16.msra.mxu0 %v619
        %710 = vmatprep.subr.bf16.mxu0 0
        %711 = vmatpush1.bf16.msra.mxu0 %v620
        %712 = vmatprep.subr.bf16.mxu0 0
        %713 = vmatpush1.bf16.msra.mxu0 %v621
        %714 = vmatprep.mubr.bf16.mxu0 %v379
        %715 = vmatmul.mubr.bf16.gmra.mrb[0].mxu0 %v378
        %v716 = vpop.f32.mrb[0].mxu0
        %v717 = vadd.f32 %v460, %v716
        %v718 = vpop.f32.mrb[0].mxu0
        %v719 = vpop.f32.mrb[0].mxu0
        %v720 = vpop.f32.mrb[0].mxu0
        %721 = vdwg.mxu0
        %722 = vmatprep.subr.bf16.mxu0 0
        %723 = vmatpush1.bf16.msra.mxu0 %v622
        %724 = vmatprep.subr.bf16.mxu0 0
        %725 = vmatpush1.bf16.msra.mxu0 %v623
        %726 = vmatprep.subr.bf16.mxu0 0
        %727 = vmatpush1.bf16.msra.mxu0 %v624
        %728 = vmatprep.subr.bf16.mxu0 0
        %729 = vmatpush1.bf16.msra.mxu0 %v625
        %730 = vmatprep.subr.bf16.mxu0 0
        %731 = vmatpush1.bf16.msra.mxu0 %v626
        %732 = vmatprep.subr.bf16.mxu0 0
        %733 = vmatpush1.bf16.msra.mxu0 %v627
        %734 = vmatprep.subr.bf16.mxu0 0
        %735 = vmatpush1.bf16.msra.mxu0 %v628
        %736 = vmatprep.subr.bf16.mxu0 0
        %737 = vmatpush1.bf16.msra.mxu0 %v629
        %738 = vmatprep.subr.bf16.mxu0 0
        %739 = vmatpush1.bf16.msra.mxu0 %v630
        %740 = vmatprep.subr.bf16.mxu0 0
        %741 = vmatpush1.bf16.msra.mxu0 %v631
        %742 = vmatprep.subr.bf16.mxu0 0
        %743 = vmatpush1.bf16.msra.mxu0 %v632
        %744 = vmatprep.subr.bf16.mxu0 0
        %745 = vmatpush1.bf16.msra.mxu0 %v633
        %746 = vmatprep.subr.bf16.mxu0 0
        %747 = vmatpush1.bf16.msra.mxu0 %v634
        %748 = vmatprep.subr.bf16.mxu0 0
        %749 = vmatpush1.bf16.msra.mxu0 %v635
        %750 = vmatprep.subr.bf16.mxu0 0
        %751 = vmatpush1.bf16.msra.mxu0 %v636
        %752 = vmatprep.subr.bf16.mxu0 0
        %753 = vmatpush1.bf16.msra.mxu0 %v637
        %754 = vmatprep.mubr.bf16.mxu0 %v381
        %755 = vmatmul.mubr.bf16.gmra.mrb[0].mxu0 %v380
        %v756 = vpop.f32.mrb[0].mxu0
        %v757 = vadd.f32 %v717, %v756
        %v758 = vpop.f32.mrb[0].mxu0
        %v759 = vpop.f32.mrb[0].mxu0
        %v760 = vpop.f32.mrb[0].mxu0
        %761 = vdwg.mxu0
        %762 = vmatprep.subr.bf16.mxu0 0
        %763 = vmatpush1.bf16.msra.mxu0 %v638
        %764 = vmatprep.subr.bf16.mxu0 0
        %765 = vmatpush1.bf16.msra.mxu0 %v639
        %766 = vmatprep.subr.bf16.mxu0 0
        %767 = vmatpush1.bf16.msra.mxu0 %v640
        %768 = vmatprep.subr.bf16.mxu0 0
        %769 = vmatpush1.bf16.msra.mxu0 %v641
        %770 = vmatprep.subr.bf16.mxu0 0
        %771 = vmatpush1.bf16.msra.mxu0 0
        %772 = vmatprep.subr.bf16.mxu0 0
        %773 = vmatpush1.bf16.msra.mxu0 0
        %774 = vmatprep.subr.bf16.mxu0 0
        %775 = vmatpush1.bf16.msra.mxu0 0
        %776 = vmatprep.subr.bf16.mxu0 0
        %777 = vmatpush1.bf16.msra.mxu0 0
        %778 = vmatprep.subr.bf16.mxu0 0
        %779 = vmatpush1.bf16.msra.mxu0 0
        %780 = vmatprep.subr.bf16.mxu0 0
        %781 = vmatpush1.bf16.msra.mxu0 0
        %782 = vmatprep.subr.bf16.mxu0 0
        %783 = vmatpush1.bf16.msra.mxu0 0
        %784 = vmatprep.subr.bf16.mxu0 0
        %785 = vmatpush1.bf16.msra.mxu0 0
        %786 = vmatprep.subr.bf16.mxu0 0
        %787 = vmatpush1.bf16.msra.mxu0 0
        %788 = vmatprep.subr.bf16.mxu0 0
        %789 = vmatpush1.bf16.msra.mxu0 0
        %790 = vmatprep.subr.bf16.mxu0 0
        %791 = vmatpush1.bf16.msra.mxu0 0
        %792 = vmatprep.subr.bf16.mxu0 0
        %793 = vmatpush1.bf16.msra.mxu0 0
        %794 = vmatprep.mubr.bf16.mxu0 0
        %795 = vmatmul.mubr.bf16.gmra.mrb[0].mxu0 %v680
        %v796 = vpop.f32.mrb[0].mxu0
        %v797 = vadd.f32 %v757, %v796
        %v798 = vpop.f32.mrb[0].mxu0
        %v799 = vpop.f32.mrb[0].mxu0
        %v800 = vpop.f32.mrb[0].mxu0
        %801 = vdwg.mxu0
        %v802 = vmax.f32 %v797, 0.0
        %vm803 = vcmask 1043456
        %v804 = vsel %vm803, %v369, 0.0
        %v805 = vrot.slane %v804, 4
        %v806 = vadd.f32 %v804, %v805
        %v807 = vrot.slane %v806, 2
        %v808 = vadd.f32 %v806, %v807
        %v809 = vrot.slane %v808, 1
        %v810 = vadd.f32 %v808, %v809
        %v811 = vsel %vm803, %v374, 0.0
        %v812 = vrot.slane %v811, 4
        %v813 = vadd.f32 %v811, %v812
        %v814 = vrot.slane %v813, 2
        %v815 = vadd.f32 %v813, %v814
        %v816 = vrot.slane %v815, 1
        %v817 = vadd.f32 %v815, %v816
        %v818 = vsel %vm803, %v370, 0.0
        %v819 = vrot.slane %v818, 4
        %v820 = vadd.f32 %v818, %v819
        %v821 = vrot.slane %v820, 2
        %v822 = vadd.f32 %v820, %v821
        %v823 = vrot.slane %v822, 1
        %v824 = vadd.f32 %v822, %v823
        %v825 = vsel %vm803, %v375, 0.0
        %v826 = vrot.slane %v825, 4
        %v827 = vadd.f32 %v825, %v826
        %v828 = vrot.slane %v827, 2
        %v829 = vadd.f32 %v827, %v828
        %v830 = vrot.slane %v829, 1
        %v831 = vadd.f32 %v829, %v830
        %vm832 = vcmask 519168
        %v833 = vsel %vm832, %v371, 0.0
        %v834 = vrot.slane %v833, 4
        %v835 = vadd.f32 %v833, %v834
        %v836 = vrot.slane %v835, 2
        %v837 = vadd.f32 %v835, %v836
        %v838 = vrot.slane %v837, 1
        %v839 = vadd.f32 %v837, %v838
        %v840 = vrcp.pop 4.0
        %v841 = vmul.f32 %v810, %v840
        %v842 = vmul.f32 %v817, %v840
        %v843 = vmul.f32 %v824, %v840
        %v844 = vmul.f32 %v831, %v840
        %v845 = vmul.f32 %v839, %v840
        %v846 = vpack.c.bf16 %v841, %v841
        %v847 = vpack.c.bf16 %v842, %v842
        %v848 = vpack.c.bf16 %v843, %v843
        %v849 = vpack.c.bf16 %v844, %v844
        %v850 = vpack.c.bf16 %v845, %v845
        %v851 = vld [vmem:[%s3] sm:$0xf]
        %v852 = vld [vmem:[%s3 + $0x4] sm:$0xf]
        %v853 = vld [vmem:[%s3 + $0x8] sm:$0xf]
        %v854 = vld [vmem:[%s3 + $0xc] sm:$0xf]
        %v855 = vld [vmem:[%s3 + $0x10] sm:$0xf]
        %v856 = vld [vmem:[%s3 + $0x14] sm:$0xf]
        %v857 = vld [vmem:[%s3 + $0x18] sm:$0xf]
        %v858 = vld [vmem:[%s3 + $0x1c] sm:$0xf]
        %v859 = vld [vmem:[%s3 + $0x20] sm:$0xf]
        %v860 = vld [vmem:[%s3 + $0x24] sm:$0xf]
        %v861 = vld [vmem:[%s3 + $0x28] sm:$0xf]
        %v862 = vld [vmem:[%s3 + $0x2c] sm:$0xf]
        %v863 = vld [vmem:[%s3 + $0x30] sm:$0xf]
        %v864 = vld [vmem:[%s3 + $0x34] sm:$0xf]
        %v865 = vld [vmem:[%s3 + $0x38] sm:$0xf]
        %v866 = vld [vmem:[%s3 + $0x3c] sm:$0xf]
        %v867 = vld [vmem:[%s3 + $0x40] sm:$0xf]
        %v868 = vld [vmem:[%s3 + $0x44] sm:$0xf]
        %v869 = vld [vmem:[%s3 + $0x48] sm:$0xf]
        %v870 = vld [vmem:[%s3 + $0x4c] sm:$0xf]
        %v871 = vld [vmem:[%s3 + $0x50] sm:$0xf]
        %v872 = vld [vmem:[%s3 + $0x54] sm:$0xf]
        %v873 = vld [vmem:[%s3 + $0x58] sm:$0xf]
        %v874 = vld [vmem:[%s3 + $0x5c] sm:$0xf]
        %v875 = vld [vmem:[%s3 + $0x60] sm:$0xf]
        %v876 = vld [vmem:[%s3 + $0x64] sm:$0xf]
        %v877 = vld [vmem:[%s3 + $0x68] sm:$0xf]
        %v878 = vld [vmem:[%s3 + $0x6c] sm:$0xf]
        %v879 = vld [vmem:[%s3 + $0x70] sm:$0xf]
        %v880 = vld [vmem:[%s3 + $0x74] sm:$0xf]
        %v881 = vld [vmem:[%s3 + $0x78] sm:$0xf]
        %v882 = vld [vmem:[%s3 + $0x7c] sm:$0xf]
        %v883 = vld [vmem:[%s3 + $0x80] sm:$0xf]
        %v884 = vld [vmem:[%s3 + $0x84] sm:$0xf]
        %v885 = vld [vmem:[%s3 + $0x88] sm:$0xf]
        %v886 = vld [vmem:[%s3 + $0x8c] sm:$0xf]
        %v887 = vld [vmem:[%s3 + $0x90] sm:$0xf]
        %v888 = vld [vmem:[%s3 + $0x94] sm:$0xf]
        %v889 = vld [vmem:[%s3 + $0x98] sm:$0xf]
        %v890 = vld [vmem:[%s3 + $0x9c] sm:$0xf]
        %v891 = vld [vmem:[%s3 + $0xa0] sm:$0xf]
        %v892 = vld [vmem:[%s3 + $0xa4] sm:$0xf]
        %v893 = vld [vmem:[%s3 + $0xa8] sm:$0xf]
        %v894 = vld [vmem:[%s3 + $0xac] sm:$0xf]
        %v895 = vld [vmem:[%s3 + $0xb0] sm:$0xf]
        %v896 = vld [vmem:[%s3 + $0xb4] sm:$0xf]
        %v897 = vld [vmem:[%s3 + $0xb8] sm:$0xf]
        %v898 = vld [vmem:[%s3 + $0xbc] sm:$0xf]
        %v899 = vld [vmem:[%s3 + $0xc0] sm:$0xf]
        %v900 = vld [vmem:[%s3 + $0xc4] sm:$0xf]
        %v901 = vld [vmem:[%s3 + $0xc8] sm:$0xf]
        %v902 = vld [vmem:[%s3 + $0xcc] sm:$0xf]
        %v903 = vld [vmem:[%s3 + $0xd0] sm:$0xf]
        %v904 = vld [vmem:[%s3 + $0xd4] sm:$0xf]
        %v905 = vld [vmem:[%s3 + $0xd8] sm:$0xf]
        %v906 = vld [vmem:[%s3 + $0xdc] sm:$0xf]
        %v907 = vld [vmem:[%s3 + $0xe0] sm:$0xf]
        %v908 = vld [vmem:[%s3 + $0xe4] sm:$0xf]
        %v909 = vld [vmem:[%s3 + $0xe8] sm:$0xf]
        %v910 = vld [vmem:[%s3 + $0xec] sm:$0xf]
        %v911 = vld [vmem:[%s3 + $0xf0] sm:$0xf]
        %v912 = vld [vmem:[%s3 + $0xf4] sm:$0xf]
        %v913 = vld [vmem:[%s3 + $0xf8] sm:$0xf]
        %v914 = vld [vmem:[%s3 + $0xfc] sm:$0xf]
        %v915 = vld [vmem:[%s3 + $0x100] sm:$0xf]
        %v916 = vld [vmem:[%s3 + $0x104] sm:$0xf]
        %v917 = vld [vmem:[%s3 + $0x108] sm:$0xf]
        %v918 = vld [vmem:[%s3 + $0x10c] sm:$0xf]
        %v919 = vld [vmem:[%s3 + $0x110] sm:$0xf]
        %v920 = vld [vmem:[%s3 + $0x114] sm:$0xf]
        %v921 = vld [vmem:[%s3 + $0x118] sm:$0xf]
        %v922 = vld [vmem:[%s3 + $0x11c] sm:$0xf]
        %v923 = vld [vmem:[%s4] sm:$0x1]
        %v996 = vunpack.c.l.b16 %v851
        %v997 = vunpack.c.l.b16 %v852
        %v998 = vunpack.c.l.b16 %v853
        %v999 = vunpack.c.l.b16 %v854
        %v1000 = vunpack.c.l.b16 %v855
        %v1001 = vunpack.c.l.b16 %v856
        %v1002 = vunpack.c.l.b16 %v857
        %v1003 = vunpack.c.l.b16 %v858
        %v1004 = vunpack.c.l.b16 %v859
        %v1005 = vunpack.c.l.b16 %v860
        %v1006 = vunpack.c.l.b16 %v861
        %v1007 = vunpack.c.l.b16 %v862
        %v1008 = vunpack.c.l.b16 %v863
        %v1009 = vunpack.c.l.b16 %v864
        %v1010 = vunpack.c.l.b16 %v865
        %v1011 = vunpack.c.l.b16 %v866
        %v1012 = vunpack.c.l.b16 %v867
        %v1013 = vunpack.c.l.b16 %v868
        %v1014 = vunpack.c.l.b16 %v869
        %v1015 = vunpack.c.l.b16 %v870
        %v1016 = vunpack.c.l.b16 %v871
        %v1017 = vunpack.c.l.b16 %v872
        %v1018 = vunpack.c.l.b16 %v873
        %v1019 = vunpack.c.l.b16 %v874
        %v1020 = vunpack.c.l.b16 %v875
        %v1021 = vunpack.c.l.b16 %v876
        %v1022 = vunpack.c.l.b16 %v877
        %v1023 = vunpack.c.l.b16 %v878
        %v1024 = vunpack.c.l.b16 %v879
        %v1025 = vunpack.c.l.b16 %v880
        %v1026 = vunpack.c.l.b16 %v881
        %v1027 = vunpack.c.l.b16 %v882
        %v1028 = vunpack.c.l.b16 %v883
        %v1029 = vunpack.c.l.b16 %v884
        %v1030 = vunpack.c.l.b16 %v885
        %v1031 = vunpack.c.l.b16 %v886
        %v1032 = vunpack.c.l.b16 %v887
        %v1033 = vunpack.c.l.b16 %v888
        %v1034 = vunpack.c.l.b16 %v889
        %v1035 = vunpack.c.l.b16 %v890
        %v1036 = vunpack.c.l.b16 %v891
        %v1037 = vunpack.c.l.b16 %v892
        %v1038 = vunpack.c.l.b16 %v893
        %v1039 = vunpack.c.l.b16 %v894
        %v1040 = vunpack.c.l.b16 %v895
        %v1041 = vunpack.c.l.b16 %v896
        %v1042 = vunpack.c.l.b16 %v897
        %v1043 = vunpack.c.l.b16 %v898
        %v1044 = vunpack.c.l.b16 %v899
        %v1045 = vunpack.c.l.b16 %v900
        %v1046 = vunpack.c.l.b16 %v901
        %v1047 = vunpack.c.l.b16 %v902
        %v1048 = vunpack.c.l.b16 %v903
        %v1049 = vunpack.c.l.b16 %v904
        %v1050 = vunpack.c.l.b16 %v905
        %v1051 = vunpack.c.l.b16 %v906
        %v1052 = vunpack.c.l.b16 %v907
        %v1053 = vunpack.c.l.b16 %v908
        %v1054 = vunpack.c.l.b16 %v909
        %v1055 = vunpack.c.l.b16 %v910
        %v1056 = vunpack.c.l.b16 %v911
        %v1057 = vunpack.c.l.b16 %v912
        %v1058 = vunpack.c.l.b16 %v913
        %v1059 = vunpack.c.l.b16 %v914
        %v1060 = vunpack.c.l.b16 %v915
        %v1061 = vunpack.c.l.b16 %v916
        %v1062 = vunpack.c.l.b16 %v917
        %v1063 = vunpack.c.l.b16 %v918
        %v1064 = vunpack.c.l.b16 %v919
        %v1065 = vunpack.c.l.b16 %v920
        %v1066 = vunpack.c.l.b16 %v921
        %v1067 = vunpack.c.l.b16 %v922
        %v1068 = vpack.c.b16 %v997, %v996
        %v1069 = vpack.c.b16 %v999, %v998
        %v1070 = vpack.c.b16 %v1001, %v1000
        %v1071 = vpack.c.b16 %v1003, %v1002
        %v1072 = vpack.c.b16 %v1005, %v1004
        %v1073 = vpack.c.b16 %v1007, %v1006
        %v1074 = vpack.c.b16 %v1009, %v1008
        %v1075 = vpack.c.b16 %v1011, %v1010
        %v1076 = vpack.c.b16 %v1013, %v1012
        %v1077 = vpack.c.b16 %v1015, %v1014
        %v1078 = vpack.c.b16 %v1017, %v1016
        %v1079 = vpack.c.b16 %v1019, %v1018
        %v1080 = vpack.c.b16 %v1021, %v1020
        %v1081 = vpack.c.b16 %v1023, %v1022
        %v1082 = vpack.c.b16 %v1025, %v1024
        %v1083 = vpack.c.b16 %v1027, %v1026
        %v1084 = vpack.c.b16 %v1029, %v1028
        %v1085 = vpack.c.b16 %v1031, %v1030
        %v1086 = vpack.c.b16 %v1033, %v1032
        %v1087 = vpack.c.b16 %v1035, %v1034
        %v1088 = vpack.c.b16 %v1037, %v1036
        %v1089 = vpack.c.b16 %v1039, %v1038
        %v1090 = vpack.c.b16 %v1041, %v1040
        %v1091 = vpack.c.b16 %v1043, %v1042
        %v1092 = vpack.c.b16 %v1045, %v1044
        %v1093 = vpack.c.b16 %v1047, %v1046
        %v1094 = vpack.c.b16 %v1049, %v1048
        %v1095 = vpack.c.b16 %v1051, %v1050
        %v1096 = vpack.c.b16 %v1053, %v1052
        %v1097 = vpack.c.b16 %v1055, %v1054
        %v1098 = vpack.c.b16 %v1057, %v1056
        %v1099 = vpack.c.b16 %v1059, %v1058
        %v1100 = vpack.c.b16 %v1061, %v1060
        %v1101 = vpack.c.b16 %v1063, %v1062
        %v1102 = vpack.c.b16 %v1065, %v1064
        %v1103 = vpack.c.b16 %v1067, %v1066
        %v1141 = vsel %vm678, %v850, 0
        %1143 = vmatprep.subr.bf16.mxu0 0
        %1144 = vmatpush1.bf16.msra.mxu0 %v1068
        %1145 = vmatprep.subr.bf16.mxu0 0
        %1146 = vmatpush1.bf16.msra.mxu0 %v1069
        %1147 = vmatprep.subr.bf16.mxu0 0
        %1148 = vmatpush1.bf16.msra.mxu0 %v1070
        %1149 = vmatprep.subr.bf16.mxu0 0
        %1150 = vmatpush1.bf16.msra.mxu0 %v1071
        %1151 = vmatprep.subr.bf16.mxu0 0
        %1152 = vmatpush1.bf16.msra.mxu0 %v1072
        %1153 = vmatprep.subr.bf16.mxu0 0
        %1154 = vmatpush1.bf16.msra.mxu0 %v1073
        %1155 = vmatprep.subr.bf16.mxu0 0
        %1156 = vmatpush1.bf16.msra.mxu0 %v1074
        %1157 = vmatprep.subr.bf16.mxu0 0
        %1158 = vmatpush1.bf16.msra.mxu0 %v1075
        %1159 = vmatprep.subr.bf16.mxu0 0
        %1160 = vmatpush1.bf16.msra.mxu0 %v1076
        %1161 = vmatprep.subr.bf16.mxu0 0
        %1162 = vmatpush1.bf16.msra.mxu0 %v1077
        %1163 = vmatprep.subr.bf16.mxu0 0
        %1164 = vmatpush1.bf16.msra.mxu0 %v1078
        %1165 = vmatprep.subr.bf16.mxu0 0
        %1166 = vmatpush1.bf16.msra.mxu0 %v1079
        %1167 = vmatprep.subr.bf16.mxu0 0
        %1168 = vmatpush1.bf16.msra.mxu0 %v1080
        %1169 = vmatprep.subr.bf16.mxu0 0
        %1170 = vmatpush1.bf16.msra.mxu0 %v1081
        %1171 = vmatprep.subr.bf16.mxu0 0
        %1172 = vmatpush1.bf16.msra.mxu0 %v1082
        %1173 = vmatprep.subr.bf16.mxu0 0
        %1174 = vmatpush1.bf16.msra.mxu0 %v1083
        %1175 = vmatprep.mubr.bf16.mxu0 %v847
        %1176 = vmatmul.mubr.bf16.gmra.mrb[0].mxu0 %v846
        %v1177 = vpop.f32.mrb[0].mxu0
        %v1178 = vadd.f32 %v923, %v1177
        %v1179 = vpop.f32.mrb[0].mxu0
        %v1180 = vpop.f32.mrb[0].mxu0
        %v1181 = vpop.f32.mrb[0].mxu0
        %1182 = vdwg.mxu0
        %1183 = vmatprep.subr.bf16.mxu0 0
        %1184 = vmatpush1.bf16.msra.mxu0 %v1084
        %1185 = vmatprep.subr.bf16.mxu0 0
        %1186 = vmatpush1.bf16.msra.mxu0 %v1085
        %1187 = vmatprep.subr.bf16.mxu0 0
        %1188 = vmatpush1.bf16.msra.mxu0 %v1086
        %1189 = vmatprep.subr.bf16.mxu0 0
        %1190 = vmatpush1.bf16.msra.mxu0 %v1087
        %1191 = vmatprep.subr.bf16.mxu0 0
        %1192 = vmatpush1.bf16.msra.mxu0 %v1088
        %1193 = vmatprep.subr.bf16.mxu0 0
        %1194 = vmatpush1.bf16.msra.mxu0 %v1089
        %1195 = vmatprep.subr.bf16.mxu0 0
        %1196 = vmatpush1.bf16.msra.mxu0 %v1090
        %1197 = vmatprep.subr.bf16.mxu0 0
        %1198 = vmatpush1.bf16.msra.mxu0 %v1091
        %1199 = vmatprep.subr.bf16.mxu0 0
        %1200 = vmatpush1.bf16.msra.mxu0 %v1092
        %1201 = vmatprep.subr.bf16.mxu0 0
        %1202 = vmatpush1.bf16.msra.mxu0 %v1093
        %1203 = vmatprep.subr.bf16.mxu0 0
        %1204 = vmatpush1.bf16.msra.mxu0 %v1094
        %1205 = vmatprep.subr.bf16.mxu0 0
        %1206 = vmatpush1.bf16.msra.mxu0 %v1095
        %1207 = vmatprep.subr.bf16.mxu0 0
        %1208 = vmatpush1.bf16.msra.mxu0 %v1096
        %1209 = vmatprep.subr.bf16.mxu0 0
        %1210 = vmatpush1.bf16.msra.mxu0 %v1097
        %1211 = vmatprep.subr.bf16.mxu0 0
        %1212 = vmatpush1.bf16.msra.mxu0 %v1098
        %1213 = vmatprep.subr.bf16.mxu0 0
        %1214 = vmatpush1.bf16.msra.mxu0 %v1099
        %1215 = vmatprep.mubr.bf16.mxu0 %v849
        %1216 = vmatmul.mubr.bf16.gmra.mrb[0].mxu0 %v848
        %v1217 = vpop.f32.mrb[0].mxu0
        %v1218 = vadd.f32 %v1178, %v1217
        %v1219 = vpop.f32.mrb[0].mxu0
        %v1220 = vpop.f32.mrb[0].mxu0
        %v1221 = vpop.f32.mrb[0].mxu0
        %1222 = vdwg.mxu0
        %1223 = vmatprep.subr.bf16.mxu0 0
        %1224 = vmatpush1.bf16.msra.mxu0 %v1100
        %1225 = vmatprep.subr.bf16.mxu0 0
        %1226 = vmatpush1.bf16.msra.mxu0 %v1101
        %1227 = vmatprep.subr.bf16.mxu0 0
        %1228 = vmatpush1.bf16.msra.mxu0 %v1102
        %1229 = vmatprep.subr.bf16.mxu0 0
        %1230 = vmatpush1.bf16.msra.mxu0 %v1103
        %1231 = vmatprep.subr.bf16.mxu0 0
        %1232 = vmatpush1.bf16.msra.mxu0 0
        %1233 = vmatprep.subr.bf16.mxu0 0
        %1234 = vmatpush1.bf16.msra.mxu0 0
        %1235 = vmatprep.subr.bf16.mxu0 0
        %1236 = vmatpush1.bf16.msra.mxu0 0
        %1237 = vmatprep.subr.bf16.mxu0 0
        %1238 = vmatpush1.bf16.msra.mxu0 0
        %1239 = vmatprep.subr.bf16.mxu0 0
        %1240 = vmatpush1.bf16.msra.mxu0 0
        %1241 = vmatprep.subr.bf16.mxu0 0
        %1242 = vmatpush1.bf16.msra.mxu0 0
        %1243 = vmatprep.subr.bf16.mxu0 0
        %1244 = vmatpush1.bf16.msra.mxu0 0
        %1245 = vmatprep.subr.bf16.mxu0 0
        %1246 = vmatpush1.bf16.msra.mxu0 0
        %1247 = vmatprep.subr.bf16.mxu0 0
        %1248 = vmatpush1.bf16.msra.mxu0 0
        %1249 = vmatprep.subr.bf16.mxu0 0
        %1250 = vmatpush1.bf16.msra.mxu0 0
        %1251 = vmatprep.subr.bf16.mxu0 0
        %1252 = vmatpush1.bf16.msra.mxu0 0
        %1253 = vmatprep.subr.bf16.mxu0 0
        %1254 = vmatpush1.bf16.msra.mxu0 0
        %1255 = vmatprep.mubr.bf16.mxu0 0
        %1256 = vmatmul.mubr.bf16.gmra.mrb[0].mxu0 %v1141
        %v1257 = vpop.f32.mrb[0].mxu0
        %v1258 = vadd.f32 %v1218, %v1257
        %v1259 = vpop.f32.mrb[0].mxu0
        %v1260 = vpop.f32.mrb[0].mxu0
        %v1261 = vpop.f32.mrb[0].mxu0
        %1262 = vdwg.mxu0
        %v1263 = vxor.u32 %v1258, 2147483648
        %v1264 = vmul.f32 %v1263, 1.442695
        %v1265 = vpow.pop %v1264
        %v1266 = vadd.f32 %v1265, 1.0
        %v1267 = vrcp.pop %v1266
        %v1268 = vmul.f32 1.0, %v1267
        %v1269 = vlaneseq
        %v1270 = vshrl.u32 %v1269, 7
        %v1271 = vsub.s32 0, %v1270
        %v1272 = vrot.slane %v1268, %v1271
        %v1273 = vmul.f32 %v802, %v1272
        %1274 = vst.msk [vmem:[%s367] sm:$0xf] %vm832, %v1273
        %v1275 = vld [vmem:[%s5] sm:$0xff]
        %v1276 = vld [vmem:[%s5 + $0x8] sm:$0xff]
        %v1277 = vld [vmem:[%s5 + $0x10] sm:$0xff]
        %v1278 = vld [vmem:[%s5 + $0x18] sm:$0xff]
        %v1279 = vld [vmem:[%s5 + $0x20] sm:$0xff]
        %v1280 = vld [vmem:[%s5 + $0x28] sm:$0xff]
        %v1281 = vld [vmem:[%s5 + $0x30] sm:$0xff]
        %v1282 = vld [vmem:[%s5 + $0x38] sm:$0xff]
        %v1283 = vld [vmem:[%s5 + $0x40] sm:$0xff]
        %v1284 = vld [vmem:[%s5 + $0x48] sm:$0xff]
        %v1285 = vld [vmem:[%s5 + $0x50] sm:$0xff]
        %v1286 = vld [vmem:[%s5 + $0x58] sm:$0xff]
        %v1287 = vld [vmem:[%s5 + $0x60] sm:$0xff]
        %v1288 = vld [vmem:[%s5 + $0x68] sm:$0xff]
        %v1289 = vld [vmem:[%s5 + $0x70] sm:$0xff]
        %v1290 = vld [vmem:[%s5 + $0x78] sm:$0xff]
        %v1291 = vld [vmem:[%s5 + $0x80] sm:$0xff]
        %v1292 = vld [vmem:[%s5 + $0x88] sm:$0xff]
        %v1293 = vld [vmem:[%s5 + $0x90] sm:$0xff]
        %v1294 = vld [vmem:[%s5 + $0x98] sm:$0xff]
        %v1295 = vld [vmem:[%s5 + $0xa0] sm:$0xff]
        %v1296 = vld [vmem:[%s5 + $0xa8] sm:$0xff]
        %v1297 = vld [vmem:[%s5 + $0xb0] sm:$0xff]
        %v1298 = vld [vmem:[%s5 + $0xb8] sm:$0xff]
        %v1299 = vld [vmem:[%s5 + $0xc0] sm:$0xff]
        %v1300 = vld [vmem:[%s5 + $0xc8] sm:$0xff]
        %v1301 = vld [vmem:[%s5 + $0xd0] sm:$0xff]
        %v1302 = vld [vmem:[%s5 + $0xd8] sm:$0xff]
        %v1303 = vld [vmem:[%s5 + $0xe0] sm:$0xff]
        %v1304 = vld [vmem:[%s5 + $0xe8] sm:$0xff]
        %v1305 = vld [vmem:[%s5 + $0xf0] sm:$0xff]
        %v1306 = vld [vmem:[%s5 + $0xf8] sm:$0xff]
        %v1307 = vld [vmem:[%s5 + $0x100] sm:$0xff]
        %v1308 = vld [vmem:[%s5 + $0x108] sm:$0xff]
        %v1309 = vld [vmem:[%s5 + $0x110] sm:$0xff]
        %v1310 = vld [vmem:[%s5 + $0x118] sm:$0xff]
        %v1311 = vld [vmem:[%s5 + $0x120] sm:$0xff]
        %v1312 = vld [vmem:[%s5 + $0x128] sm:$0xff]
        %v1313 = vld [vmem:[%s5 + $0x130] sm:$0xff]
        %v1314 = vld [vmem:[%s5 + $0x138] sm:$0xff]
        %v1315 = vld [vmem:[%s5 + $0x140] sm:$0xff]
        %v1316 = vld [vmem:[%s5 + $0x148] sm:$0xff]
        %v1317 = vld [vmem:[%s5 + $0x150] sm:$0xff]
        %v1318 = vld [vmem:[%s5 + $0x158] sm:$0xff]
        %v1319 = vld [vmem:[%s5 + $0x160] sm:$0xff]
        %v1320 = vld [vmem:[%s5 + $0x168] sm:$0xff]
        %v1321 = vld [vmem:[%s5 + $0x170] sm:$0xff]
        %v1322 = vld [vmem:[%s5 + $0x178] sm:$0xff]
        %v1323 = vld [vmem:[%s5 + $0x180] sm:$0xff]
        %v1324 = vld [vmem:[%s5 + $0x188] sm:$0xff]
        %v1325 = vld [vmem:[%s5 + $0x190] sm:$0xff]
        %v1326 = vld [vmem:[%s5 + $0x198] sm:$0xff]
        %v1327 = vld [vmem:[%s5 + $0x1a0] sm:$0xff]
        %v1328 = vld [vmem:[%s5 + $0x1a8] sm:$0xff]
        %v1329 = vld [vmem:[%s5 + $0x1b0] sm:$0xff]
        %v1330 = vld [vmem:[%s5 + $0x1b8] sm:$0xff]
        %v1331 = vld [vmem:[%s5 + $0x1c0] sm:$0xff]
        %v1332 = vld [vmem:[%s5 + $0x1c8] sm:$0xff]
        %v1333 = vld [vmem:[%s5 + $0x1d0] sm:$0xff]
        %v1334 = vld [vmem:[%s5 + $0x1d8] sm:$0xff]
        %v1335 = vld [vmem:[%s5 + $0x1e0] sm:$0xff]
        %v1336 = vld [vmem:[%s5 + $0x1e8] sm:$0xff]
        %v1337 = vld [vmem:[%s5 + $0x1f0] sm:$0xff]
        %v1338 = vld [vmem:[%s5 + $0x1f8] sm:$0xff]
        %v1339 = vld [vmem:[%s5 + $0x200] sm:$0xff]
        %v1340 = vld [vmem:[%s5 + $0x208] sm:$0xff]
        %v1341 = vld [vmem:[%s5 + $0x210] sm:$0xff]
        %v1342 = vld [vmem:[%s5 + $0x218] sm:$0xff]
        %v1343 = vld [vmem:[%s5 + $0x220] sm:$0xff]
        %v1344 = vld [vmem:[%s5 + $0x228] sm:$0xff]
        %v1345 = vld [vmem:[%s5 + $0x230] sm:$0xff]
        %v1346 = vld [vmem:[%s5 + $0x238] sm:$0xff]
        %v1347 = vld [vmem:[%s5 + $0x240] sm:$0xff]
        %v1348 = vld [vmem:[%s5 + $0x248] sm:$0xff]
        %v1349 = vld [vmem:[%s5 + $0x250] sm:$0xff]
        %v1350 = vld [vmem:[%s5 + $0x258] sm:$0xff]
        %v1351 = vld [vmem:[%s5 + $0x260] sm:$0xff]
        %v1352 = vld [vmem:[%s5 + $0x268] sm:$0xff]
        %v1353 = vld [vmem:[%s5 + $0x270] sm:$0xff]
        %v1354 = vld [vmem:[%s5 + $0x278] sm:$0xff]
        %v1355 = vld [vmem:[%s5 + $0x280] sm:$0xff]
        %v1356 = vld [vmem:[%s5 + $0x288] sm:$0xff]
        %v1357 = vld [vmem:[%s5 + $0x290] sm:$0xff]
        %v1358 = vld [vmem:[%s5 + $0x298] sm:$0xff]
        %v1359 = vld [vmem:[%s5 + $0x2a0] sm:$0xff]
        %v1360 = vld [vmem:[%s5 + $0x2a8] sm:$0xff]
        %v1361 = vld [vmem:[%s5 + $0x2b0] sm:$0xff]
        %v1362 = vld [vmem:[%s5 + $0x2b8] sm:$0xff]
        %v1363 = vld [vmem:[%s5 + $0x2c0] sm:$0xff]
        %v1364 = vld [vmem:[%s5 + $0x2c8] sm:$0xff]
        %v1365 = vld [vmem:[%s5 + $0x2d0] sm:$0xff]
        %v1366 = vld [vmem:[%s5 + $0x2d8] sm:$0xff]
        %v1367 = vld [vmem:[%s5 + $0x2e0] sm:$0xff]
        %v1368 = vld [vmem:[%s5 + $0x2e8] sm:$0xff]
        %v1369 = vld [vmem:[%s5 + $0x2f0] sm:$0xff]
        %v1370 = vld [vmem:[%s5 + $0x2f8] sm:$0xff]
        %v1371 = vld [vmem:[%s5 + $0x300] sm:$0xff]
        %v1372 = vld [vmem:[%s5 + $0x308] sm:$0xff]
        %v1373 = vld [vmem:[%s5 + $0x310] sm:$0xff]
        %v1374 = vld [vmem:[%s5 + $0x318] sm:$0xff]
        %v1375 = vld [vmem:[%s5 + $0x320] sm:$0xff]
        %v1376 = vld [vmem:[%s5 + $0x328] sm:$0xff]
        %v1377 = vld [vmem:[%s5 + $0x330] sm:$0xff]
        %v1378 = vld [vmem:[%s5 + $0x338] sm:$0xff]
        %v1379 = vld [vmem:[%s5 + $0x340] sm:$0xff]
        %v1380 = vld [vmem:[%s5 + $0x348] sm:$0xff]
        %v1381 = vld [vmem:[%s5 + $0x350] sm:$0xff]
        %v1382 = vld [vmem:[%s5 + $0x358] sm:$0xff]
        %v1383 = vld [vmem:[%s5 + $0x360] sm:$0xff]
        %v1384 = vld [vmem:[%s5 + $0x368] sm:$0xff]
        %v1385 = vld [vmem:[%s5 + $0x370] sm:$0xff]
        %v1386 = vld [vmem:[%s5 + $0x378] sm:$0xff]
        %v1387 = vld [vmem:[%s5 + $0x380] sm:$0xff]
        %v1388 = vld [vmem:[%s5 + $0x388] sm:$0xff]
        %v1389 = vld [vmem:[%s5 + $0x390] sm:$0xff]
        %v1390 = vld [vmem:[%s5 + $0x398] sm:$0xff]
        %v1391 = vld [vmem:[%s5 + $0x3a0] sm:$0xff]
        %v1392 = vld [vmem:[%s5 + $0x3a8] sm:$0xff]
        %v1393 = vld [vmem:[%s5 + $0x3b0] sm:$0xff]
        %v1394 = vld [vmem:[%s5 + $0x3b8] sm:$0xff]
        %v1395 = vld [vmem:[%s5 + $0x3c0] sm:$0xff]
        %v1396 = vld [vmem:[%s5 + $0x3c8] sm:$0xff]
        %v1397 = vld [vmem:[%s5 + $0x3d0] sm:$0xff]
        %v1398 = vld [vmem:[%s5 + $0x3d8] sm:$0xff]
        %v1399 = vld [vmem:[%s5 + $0x3e0] sm:$0xff]
        %v1400 = vld [vmem:[%s5 + $0x3e8] sm:$0xff]
        %v1401 = vld [vmem:[%s5 + $0x3f0] sm:$0xff]
        %v1402 = vld [vmem:[%s5 + $0x3f8] sm:$0xff]
        %v1403 = vld [vmem:[%s5 + $0x400] sm:$0xff]
        %v1404 = vld [vmem:[%s5 + $0x408] sm:$0xff]
        %v1405 = vld [vmem:[%s5 + $0x410] sm:$0xff]
        %v1406 = vld [vmem:[%s5 + $0x418] sm:$0xff]
        %v1407 = vld [vmem:[%s5 + $0x420] sm:$0xff]
        %v1408 = vld [vmem:[%s5 + $0x428] sm:$0xff]
        %v1409 = vld [vmem:[%s5 + $0x430] sm:$0xff]
        %v1410 = vld [vmem:[%s5 + $0x438] sm:$0xff]
        %v1411 = vld [vmem:[%s5 + $0x440] sm:$0xff]
        %v1412 = vld [vmem:[%s5 + $0x448] sm:$0xff]
        %v1413 = vld [vmem:[%s5 + $0x450] sm:$0xff]
        %v1414 = vld [vmem:[%s5 + $0x458] sm:$0xff]
        %v1415 = vld [vmem:[%s5 + $0x460] sm:$0xff]
        %v1416 = vld [vmem:[%s5 + $0x468] sm:$0xff]
        %v1417 = vld [vmem:[%s5 + $0x470] sm:$0xff]
        %v1418 = vld [vmem:[%s5 + $0x478] sm:$0xff]
        %v1419 = vld [vmem:[%s5 + $0x480] sm:$0xff]
        %v1420 = vld [vmem:[%s5 + $0x488] sm:$0xff]
        %v1421 = vld [vmem:[%s5 + $0x490] sm:$0xff]
        %v1422 = vld [vmem:[%s5 + $0x498] sm:$0xff]
        %v1423 = vld [vmem:[%s5 + $0x4a0] sm:$0xff]
        %v1424 = vld [vmem:[%s5 + $0x4a8] sm:$0xff]
        %v1425 = vld [vmem:[%s5 + $0x4b0] sm:$0xff]
        %v1426 = vld [vmem:[%s5 + $0x4b8] sm:$0xff]
        %v1427 = vld [vmem:[%s5 + $0x4c0] sm:$0xff]
        %v1428 = vld [vmem:[%s5 + $0x4c8] sm:$0xff]
        %v1429 = vld [vmem:[%s5 + $0x4d0] sm:$0xff]
        %v1430 = vld [vmem:[%s5 + $0x4d8] sm:$0xff]
        %v1431 = vld [vmem:[%s5 + $0x4e0] sm:$0xff]
        %v1432 = vld [vmem:[%s5 + $0x4e8] sm:$0xff]
        %v1433 = vld [vmem:[%s5 + $0x4f0] sm:$0xff]
        %v1434 = vld [vmem:[%s5 + $0x4f8] sm:$0xff]
        %v1435 = vld [vmem:[%s5 + $0x500] sm:$0xff]
        %v1436 = vld [vmem:[%s5 + $0x508] sm:$0xff]
        %v1437 = vld [vmem:[%s5 + $0x510] sm:$0xff]
        %v1438 = vld [vmem:[%s5 + $0x518] sm:$0xff]
        %v1439 = vld [vmem:[%s5 + $0x520] sm:$0xff]
        %v1440 = vld [vmem:[%s5 + $0x528] sm:$0xff]
        %v1441 = vld [vmem:[%s5 + $0x530] sm:$0xff]
        %v1442 = vld [vmem:[%s5 + $0x538] sm:$0xff]
        %v1443 = vld [vmem:[%s5 + $0x540] sm:$0xff]
        %v1444 = vld [vmem:[%s5 + $0x548] sm:$0xff]
        %v1445 = vld [vmem:[%s5 + $0x550] sm:$0xff]
        %v1446 = vld [vmem:[%s5 + $0x558] sm:$0xff]
        %v1447 = vld [vmem:[%s5 + $0x560] sm:$0xff]
        %v1448 = vld [vmem:[%s5 + $0x568] sm:$0xff]
        %v1449 = vld [vmem:[%s5 + $0x570] sm:$0xff]
        %v1450 = vld [vmem:[%s5 + $0x578] sm:$0xff]
        %v1451 = vld [vmem:[%s5 + $0x580] sm:$0xff]
        %v1452 = vld [vmem:[%s5 + $0x588] sm:$0xff]
        %v1453 = vld [vmem:[%s5 + $0x590] sm:$0xff]
        %v1454 = vld [vmem:[%s5 + $0x598] sm:$0xff]
        %v1455 = vld [vmem:[%s5 + $0x5a0] sm:$0xff]
        %v1456 = vld [vmem:[%s5 + $0x5a8] sm:$0xff]
        %v1457 = vld [vmem:[%s5 + $0x5b0] sm:$0xff]
        %v1458 = vld [vmem:[%s5 + $0x5b8] sm:$0xff]
        %v1459 = vld [vmem:[%s5 + $0x5c0] sm:$0xff]
        %v1460 = vld [vmem:[%s5 + $0x5c8] sm:$0xff]
        %v1461 = vld [vmem:[%s5 + $0x5d0] sm:$0xff]
        %v1462 = vld [vmem:[%s5 + $0x5d8] sm:$0xff]
        %v1463 = vld [vmem:[%s5 + $0x5e0] sm:$0xff]
        %v1464 = vld [vmem:[%s5 + $0x5e8] sm:$0xff]
        %v1465 = vld [vmem:[%s5 + $0x5f0] sm:$0xff]
        %v1466 = vld [vmem:[%s5 + $0x5f8] sm:$0xff]
        %v1467 = vld [vmem:[%s5 + $0x600] sm:$0xff]
        %v1468 = vld [vmem:[%s5 + $0x608] sm:$0xff]
        %v1469 = vld [vmem:[%s5 + $0x610] sm:$0xff]
        %v1470 = vld [vmem:[%s5 + $0x618] sm:$0xff]
        %v1471 = vld [vmem:[%s5 + $0x620] sm:$0xff]
        %v1472 = vld [vmem:[%s5 + $0x628] sm:$0xff]
        %v1473 = vld [vmem:[%s5 + $0x630] sm:$0xff]
        %v1474 = vld [vmem:[%s5 + $0x638] sm:$0xff]
        %v1475 = vld [vmem:[%s5 + $0x640] sm:$0xff]
        %v1476 = vld [vmem:[%s5 + $0x648] sm:$0xff]
        %v1477 = vld [vmem:[%s5 + $0x650] sm:$0xff]
        %v1478 = vld [vmem:[%s5 + $0x658] sm:$0xff]
        %v1479 = vld [vmem:[%s5 + $0x660] sm:$0xff]
        %v1480 = vld [vmem:[%s5 + $0x668] sm:$0xff]
        %v1481 = vld [vmem:[%s5 + $0x670] sm:$0xff]
        %v1482 = vld [vmem:[%s5 + $0x678] sm:$0xff]
        %v1483 = vld [vmem:[%s5 + $0x680] sm:$0xff]
        %v1484 = vld [vmem:[%s5 + $0x688] sm:$0xff]
        %v1485 = vld [vmem:[%s5 + $0x690] sm:$0xff]
        %v1486 = vld [vmem:[%s5 + $0x698] sm:$0xff]
        %v1487 = vld [vmem:[%s5 + $0x6a0] sm:$0xff]
        %v1488 = vld [vmem:[%s5 + $0x6a8] sm:$0xff]
        %v1489 = vld [vmem:[%s5 + $0x6b0] sm:$0xff]
        %v1490 = vld [vmem:[%s5 + $0x6b8] sm:$0xff]
        %v1491 = vld [vmem:[%s5 + $0x6c0] sm:$0xff]
        %v1492 = vld [vmem:[%s5 + $0x6c8] sm:$0xff]
        %v1493 = vld [vmem:[%s5 + $0x6d0] sm:$0xff]
        %v1494 = vld [vmem:[%s5 + $0x6d8] sm:$0xff]
        %v1495 = vld [vmem:[%s5 + $0x6e0] sm:$0xff]
        %v1496 = vld [vmem:[%s5 + $0x6e8] sm:$0xff]
        %v1497 = vld [vmem:[%s5 + $0x6f0] sm:$0xff]
        %v1498 = vld [vmem:[%s5 + $0x6f8] sm:$0xff]
        %v1499 = vld [vmem:[%s5 + $0x700] sm:$0xff]
        %v1500 = vld [vmem:[%s5 + $0x708] sm:$0xff]
        %v1501 = vld [vmem:[%s5 + $0x710] sm:$0xff]
        %v1502 = vld [vmem:[%s5 + $0x718] sm:$0xff]
        %v1503 = vld [vmem:[%s5 + $0x720] sm:$0xff]
        %v1504 = vld [vmem:[%s5 + $0x728] sm:$0xff]
        %v1505 = vld [vmem:[%s5 + $0x730] sm:$0xff]
        %v1506 = vld [vmem:[%s5 + $0x738] sm:$0xff]
        %v1507 = vld [vmem:[%s5 + $0x740] sm:$0xff]
        %v1508 = vld [vmem:[%s5 + $0x748] sm:$0xff]
        %v1509 = vld [vmem:[%s5 + $0x750] sm:$0xff]
        %v1510 = vld [vmem:[%s5 + $0x758] sm:$0xff]
        %v1511 = vld [vmem:[%s5 + $0x760] sm:$0xff]
        %v1512 = vld [vmem:[%s5 + $0x768] sm:$0xff]
        %v1513 = vld [vmem:[%s5 + $0x770] sm:$0xff]
        %v1514 = vld [vmem:[%s5 + $0x778] sm:$0xff]
        %v1515 = vld [vmem:[%s5 + $0x780] sm:$0xff]
        %v1516 = vld [vmem:[%s5 + $0x788] sm:$0xff]
        %v1517 = vld [vmem:[%s5 + $0x790] sm:$0xff]
        %v1518 = vld [vmem:[%s5 + $0x798] sm:$0xff]
        %v1519 = vld [vmem:[%s5 + $0x7a0] sm:$0xff]
        %v1520 = vld [vmem:[%s5 + $0x7a8] sm:$0xff]
        %v1521 = vld [vmem:[%s5 + $0x7b0] sm:$0xff]
        %v1522 = vld [vmem:[%s5 + $0x7b8] sm:$0xff]
        %v1523 = vld [vmem:[%s5 + $0x7c0] sm:$0xff]
        %v1524 = vld [vmem:[%s5 + $0x7c8] sm:$0xff]
        %v1525 = vld [vmem:[%s5 + $0x7d0] sm:$0xff]
        %v1526 = vld [vmem:[%s5 + $0x7d8] sm:$0xff]
        %v1527 = vld [vmem:[%s5 + $0x7e0] sm:$0xff]
        %v1528 = vld [vmem:[%s5 + $0x7e8] sm:$0xff]
        %v1529 = vld [vmem:[%s5 + $0x7f0] sm:$0xff]
        %v1530 = vld [vmem:[%s5 + $0x7f8] sm:$0xff]
        %v1531 = vld [vmem:[%s5 + $0x800] sm:$0xff]
        %v1532 = vld [vmem:[%s5 + $0x808] sm:$0xff]
        %v1533 = vld [vmem:[%s5 + $0x810] sm:$0xff]
        %v1534 = vld [vmem:[%s5 + $0x818] sm:$0xff]
        %v1535 = vld [vmem:[%s5 + $0x820] sm:$0xff]
        %v1536 = vld [vmem:[%s5 + $0x828] sm:$0xff]
        %v1537 = vld [vmem:[%s5 + $0x830] sm:$0xff]
        %v1538 = vld [vmem:[%s5 + $0x838] sm:$0xff]
        %v1539 = vld [vmem:[%s5 + $0x840] sm:$0xff]
        %v1540 = vld [vmem:[%s5 + $0x848] sm:$0xff]
        %v1541 = vld [vmem:[%s5 + $0x850] sm:$0xff]
        %v1542 = vld [vmem:[%s5 + $0x858] sm:$0xff]
        %v1543 = vld [vmem:[%s5 + $0x860] sm:$0xff]
        %v1544 = vld [vmem:[%s5 + $0x868] sm:$0xff]
        %v1545 = vld [vmem:[%s5 + $0x870] sm:$0xff]
        %v1546 = vld [vmem:[%s5 + $0x878] sm:$0xff]
        %v1547 = vld [vmem:[%s5 + $0x880] sm:$0xff]
        %v1548 = vld [vmem:[%s5 + $0x888] sm:$0xff]
        %v1549 = vld [vmem:[%s5 + $0x890] sm:$0xff]
        %v1550 = vld [vmem:[%s5 + $0x898] sm:$0xff]
        %v1551 = vld [vmem:[%s5 + $0x8a0] sm:$0xff]
        %v1552 = vld [vmem:[%s5 + $0x8a8] sm:$0xff]
        %v1553 = vld [vmem:[%s5 + $0x8b0] sm:$0xff]
        %v1554 = vld [vmem:[%s5 + $0x8b8] sm:$0xff]
        %v1555 = vld [vmem:[%s5 + $0x8c0] sm:$0xff]
        %v1556 = vld [vmem:[%s5 + $0x8c8] sm:$0xff]
        %v1557 = vld [vmem:[%s5 + $0x8d0] sm:$0xff]
        %v1558 = vld [vmem:[%s5 + $0x8d8] sm:$0xff]
        %v1559 = vld [vmem:[%s5 + $0x8e0] sm:$0xff]
        %v1560 = vld [vmem:[%s5 + $0x8e8] sm:$0xff]
        %v1561 = vld [vmem:[%s5 + $0x8f0] sm:$0xff]
        %v1562 = vld [vmem:[%s5 + $0x8f8] sm:$0xff]
        %v1563 = vld [vmem:[%s6] sm:$0xff]
        %v1852 = vunpack.c.l.b16 %v1275
        %v1853 = vunpack.c.h.b16 %v1275
        %v1854 = vunpack.c.l.b16 %v1276
        %v1855 = vunpack.c.h.b16 %v1276
        %v1856 = vunpack.c.l.b16 %v1277
        %v1857 = vunpack.c.h.b16 %v1277
        %v1858 = vunpack.c.l.b16 %v1278
        %v1859 = vunpack.c.h.b16 %v1278
        %v1860 = vunpack.c.l.b16 %v1279
        %v1861 = vunpack.c.h.b16 %v1279
        %v1862 = vunpack.c.l.b16 %v1280
        %v1863 = vunpack.c.h.b16 %v1280
        %v1864 = vunpack.c.l.b16 %v1281
        %v1865 = vunpack.c.h.b16 %v1281
        %v1866 = vunpack.c.l.b16 %v1282
        %v1867 = vunpack.c.h.b16 %v1282
        %v1868 = vunpack.c.l.b16 %v1283
        %v1869 = vunpack.c.h.b16 %v1283
        %v1870 = vunpack.c.l.b16 %v1284
        %v1871 = vunpack.c.h.b16 %v1284
        %v1872 = vunpack.c.l.b16 %v1285
        %v1873 = vunpack.c.h.b16 %v1285
        %v1874 = vunpack.c.l.b16 %v1286
        %v1875 = vunpack.c.h.b16 %v1286
        %v1876 = vunpack.c.l.b16 %v1287
        %v1877 = vunpack.c.h.b16 %v1287
        %v1878 = vunpack.c.l.b16 %v1288
        %v1879 = vunpack.c.h.b16 %v1288
        %v1880 = vunpack.c.l.b16 %v1289
        %v1881 = vunpack.c.h.b16 %v1289
        %v1882 = vunpack.c.l.b16 %v1290
        %v1883 = vunpack.c.h.b16 %v1290
        %v1884 = vunpack.c.l.b16 %v1291
        %v1885 = vunpack.c.h.b16 %v1291
        %v1886 = vunpack.c.l.b16 %v1292
        %v1887 = vunpack.c.h.b16 %v1292
        %v1888 = vunpack.c.l.b16 %v1293
        %v1889 = vunpack.c.h.b16 %v1293
        %v1890 = vunpack.c.l.b16 %v1294
        %v1891 = vunpack.c.h.b16 %v1294
        %v1892 = vunpack.c.l.b16 %v1295
        %v1893 = vunpack.c.h.b16 %v1295
        %v1894 = vunpack.c.l.b16 %v1296
        %v1895 = vunpack.c.h.b16 %v1296
        %v1896 = vunpack.c.l.b16 %v1297
        %v1897 = vunpack.c.h.b16 %v1297
        %v1898 = vunpack.c.l.b16 %v1298
        %v1899 = vunpack.c.h.b16 %v1298
        %v1900 = vunpack.c.l.b16 %v1299
        %v1901 = vunpack.c.h.b16 %v1299
        %v1902 = vunpack.c.l.b16 %v1300
        %v1903 = vunpack.c.h.b16 %v1300
        %v1904 = vunpack.c.l.b16 %v1301
        %v1905 = vunpack.c.h.b16 %v1301
        %v1906 = vunpack.c.l.b16 %v1302
        %v1907 = vunpack.c.h.b16 %v1302
        %v1908 = vunpack.c.l.b16 %v1303
        %v1909 = vunpack.c.h.b16 %v1303
        %v1910 = vunpack.c.l.b16 %v1304
        %v1911 = vunpack.c.h.b16 %v1304
        %v1912 = vunpack.c.l.b16 %v1305
        %v1913 = vunpack.c.h.b16 %v1305
        %v1914 = vunpack.c.l.b16 %v1306
        %v1915 = vunpack.c.h.b16 %v1306
        %v1916 = vunpack.c.l.b16 %v1307
        %v1917 = vunpack.c.h.b16 %v1307
        %v1918 = vunpack.c.l.b16 %v1308
        %v1919 = vunpack.c.h.b16 %v1308
        %v1920 = vunpack.c.l.b16 %v1309
        %v1921 = vunpack.c.h.b16 %v1309
        %v1922 = vunpack.c.l.b16 %v1310
        %v1923 = vunpack.c.h.b16 %v1310
        %v1924 = vunpack.c.l.b16 %v1311
        %v1925 = vunpack.c.h.b16 %v1311
        %v1926 = vunpack.c.l.b16 %v1312
        %v1927 = vunpack.c.h.b16 %v1312
        %v1928 = vunpack.c.l.b16 %v1313
        %v1929 = vunpack.c.h.b16 %v1313
        %v1930 = vunpack.c.l.b16 %v1314
        %v1931 = vunpack.c.h.b16 %v1314
        %v1932 = vunpack.c.l.b16 %v1315
        %v1933 = vunpack.c.h.b16 %v1315
        %v1934 = vunpack.c.l.b16 %v1316
        %v1935 = vunpack.c.h.b16 %v1316
        %v1936 = vunpack.c.l.b16 %v1317
        %v1937 = vunpack.c.h.b16 %v1317
        %v1938 = vunpack.c.l.b16 %v1318
        %v1939 = vunpack.c.h.b16 %v1318
        %v1940 = vunpack.c.l.b16 %v1319
        %v1941 = vunpack.c.h.b16 %v1319
        %v1942 = vunpack.c.l.b16 %v1320
        %v1943 = vunpack.c.h.b16 %v1320
        %v1944 = vunpack.c.l.b16 %v1321
        %v1945 = vunpack.c.h.b16 %v1321
        %v1946 = vunpack.c.l.b16 %v1322
        %v1947 = vunpack.c.h.b16 %v1322
        %v1948 = vunpack.c.l.b16 %v1323
        %v1949 = vunpack.c.h.b16 %v1323
        %v1950 = vunpack.c.l.b16 %v1324
        %v1951 = vunpack.c.h.b16 %v1324
        %v1952 = vunpack.c.l.b16 %v1325
        %v1953 = vunpack.c.h.b16 %v1325
        %v1954 = vunpack.c.l.b16 %v1326
        %v1955 = vunpack.c.h.b16 %v1326
        %v1956 = vunpack.c.l.b16 %v1327
        %v1957 = vunpack.c.h.b16 %v1327
        %v1958 = vunpack.c.l.b16 %v1328
        %v1959 = vunpack.c.h.b16 %v1328
        %v1960 = vunpack.c.l.b16 %v1329
        %v1961 = vunpack.c.h.b16 %v1329
        %v1962 = vunpack.c.l.b16 %v1330
        %v1963 = vunpack.c.h.b16 %v1330
        %v1964 = vunpack.c.l.b16 %v1331
        %v1965 = vunpack.c.h.b16 %v1331
        %v1966 = vunpack.c.l.b16 %v1332
        %v1967 = vunpack.c.h.b16 %v1332
        %v1968 = vunpack.c.l.b16 %v1333
        %v1969 = vunpack.c.h.b16 %v1333
        %v1970 = vunpack.c.l.b16 %v1334
        %v1971 = vunpack.c.h.b16 %v1334
        %v1972 = vunpack.c.l.b16 %v1335
        %v1973 = vunpack.c.h.b16 %v1335
        %v1974 = vunpack.c.l.b16 %v1336
        %v1975 = vunpack.c.h.b16 %v1336
        %v1976 = vunpack.c.l.b16 %v1337
        %v1977 = vunpack.c.h.b16 %v1337
        %v1978 = vunpack.c.l.b16 %v1338
        %v1979 = vunpack.c.h.b16 %v1338
        %v1980 = vunpack.c.l.b16 %v1339
        %v1981 = vunpack.c.h.b16 %v1339
        %v1982 = vunpack.c.l.b16 %v1340
        %v1983 = vunpack.c.h.b16 %v1340
        %v1984 = vunpack.c.l.b16 %v1341
        %v1985 = vunpack.c.h.b16 %v1341
        %v1986 = vunpack.c.l.b16 %v1342
        %v1987 = vunpack.c.h.b16 %v1342
        %v1988 = vunpack.c.l.b16 %v1343
        %v1989 = vunpack.c.h.b16 %v1343
        %v1990 = vunpack.c.l.b16 %v1344
        %v1991 = vunpack.c.h.b16 %v1344
        %v1992 = vunpack.c.l.b16 %v1345
        %v1993 = vunpack.c.h.b16 %v1345
        %v1994 = vunpack.c.l.b16 %v1346
        %v1995 = vunpack.c.h.b16 %v1346
        %v1996 = vunpack.c.l.b16 %v1347
        %v1997 = vunpack.c.h.b16 %v1347
        %v1998 = vunpack.c.l.b16 %v1348
        %v1999 = vunpack.c.h.b16 %v1348
        %v2000 = vunpack.c.l.b16 %v1349
        %v2001 = vunpack.c.h.b16 %v1349
        %v2002 = vunpack.c.l.b16 %v1350
        %v2003 = vunpack.c.h.b16 %v1350
        %v2004 = vunpack.c.l.b16 %v1351
        %v2005 = vunpack.c.h.b16 %v1351
        %v2006 = vunpack.c.l.b16 %v1352
        %v2007 = vunpack.c.h.b16 %v1352
        %v2008 = vunpack.c.l.b16 %v1353
        %v2009 = vunpack.c.h.b16 %v1353
        %v2010 = vunpack.c.l.b16 %v1354
        %v2011 = vunpack.c.h.b16 %v1354
        %v2012 = vunpack.c.l.b16 %v1355
        %v2013 = vunpack.c.h.b16 %v1355
        %v2014 = vunpack.c.l.b16 %v1356
        %v2015 = vunpack.c.h.b16 %v1356
        %v2016 = vunpack.c.l.b16 %v1357
        %v2017 = vunpack.c.h.b16 %v1357
        %v2018 = vunpack.c.l.b16 %v1358
        %v2019 = vunpack.c.h.b16 %v1358
        %v2020 = vunpack.c.l.b16 %v1359
        %v2021 = vunpack.c.h.b16 %v1359
        %v2022 = vunpack.c.l.b16 %v1360
        %v2023 = vunpack.c.h.b16 %v1360
        %v2024 = vunpack.c.l.b16 %v1361
        %v2025 = vunpack.c.h.b16 %v1361
        %v2026 = vunpack.c.l.b16 %v1362
        %v2027 = vunpack.c.h.b16 %v1362
        %v2028 = vunpack.c.l.b16 %v1363
        %v2029 = vunpack.c.h.b16 %v1363
        %v2030 = vunpack.c.l.b16 %v1364
        %v2031 = vunpack.c.h.b16 %v1364
        %v2032 = vunpack.c.l.b16 %v1365
        %v2033 = vunpack.c.h.b16 %v1365
        %v2034 = vunpack.c.l.b16 %v1366
        %v2035 = vunpack.c.h.b16 %v1366
        %v2036 = vunpack.c.l.b16 %v1367
        %v2037 = vunpack.c.h.b16 %v1367
        %v2038 = vunpack.c.l.b16 %v1368
        %v2039 = vunpack.c.h.b16 %v1368
        %v2040 = vunpack.c.l.b16 %v1369
        %v2041 = vunpack.c.h.b16 %v1369
        %v2042 = vunpack.c.l.b16 %v1370
        %v2043 = vunpack.c.h.b16 %v1370
        %v2044 = vunpack.c.l.b16 %v1371
        %v2045 = vunpack.c.h.b16 %v1371
        %v2046 = vunpack.c.l.b16 %v1372
        %v2047 = vunpack.c.h.b16 %v1372
        %v2048 = vunpack.c.l.b16 %v1373
        %v2049 = vunpack.c.h.b16 %v1373
        %v2050 = vunpack.c.l.b16 %v1374
        %v2051 = vunpack.c.h.b16 %v1374
        %v2052 = vunpack.c.l.b16 %v1375
        %v2053 = vunpack.c.h.b16 %v1375
        %v2054 = vunpack.c.l.b16 %v1376
        %v2055 = vunpack.c.h.b16 %v1376
        %v2056 = vunpack.c.l.b16 %v1377
        %v2057 = vunpack.c.h.b16 %v1377
        %v2058 = vunpack.c.l.b16 %v1378
        %v2059 = vunpack.c.h.b16 %v1378
        %v2060 = vunpack.c.l.b16 %v1379
        %v2061 = vunpack.c.h.b16 %v1379
        %v2062 = vunpack.c.l.b16 %v1380
        %v2063 = vunpack.c.h.b16 %v1380
        %v2064 = vunpack.c.l.b16 %v1381
        %v2065 = vunpack.c.h.b16 %v1381
        %v2066 = vunpack.c.l.b16 %v1382
        %v2067 = vunpack.c.h.b16 %v1382
        %v2068 = vunpack.c.l.b16 %v1383
        %v2069 = vunpack.c.h.b16 %v1383
        %v2070 = vunpack.c.l.b16 %v1384
        %v2071 = vunpack.c.h.b16 %v1384
        %v2072 = vunpack.c.l.b16 %v1385
        %v2073 = vunpack.c.h.b16 %v1385
        %v2074 = vunpack.c.l.b16 %v1386
        %v2075 = vunpack.c.h.b16 %v1386
        %v2076 = vunpack.c.l.b16 %v1387
        %v2077 = vunpack.c.h.b16 %v1387
        %v2078 = vunpack.c.l.b16 %v1388
        %v2079 = vunpack.c.h.b16 %v1388
        %v2080 = vunpack.c.l.b16 %v1389
        %v2081 = vunpack.c.h.b16 %v1389
        %v2082 = vunpack.c.l.b16 %v1390
        %v2083 = vunpack.c.h.b16 %v1390
        %v2084 = vunpack.c.l.b16 %v1391
        %v2085 = vunpack.c.h.b16 %v1391
        %v2086 = vunpack.c.l.b16 %v1392
        %v2087 = vunpack.c.h.b16 %v1392
        %v2088 = vunpack.c.l.b16 %v1393
        %v2089 = vunpack.c.h.b16 %v1393
        %v2090 = vunpack.c.l.b16 %v1394
        %v2091 = vunpack.c.h.b16 %v1394
        %v2092 = vunpack.c.l.b16 %v1395
        %v2093 = vunpack.c.h.b16 %v1395
        %v2094 = vunpack.c.l.b16 %v1396
        %v2095 = vunpack.c.h.b16 %v1396
        %v2096 = vunpack.c.l.b16 %v1397
        %v2097 = vunpack.c.h.b16 %v1397
        %v2098 = vunpack.c.l.b16 %v1398
        %v2099 = vunpack.c.h.b16 %v1398
        %v2100 = vunpack.c.l.b16 %v1399
        %v2101 = vunpack.c.h.b16 %v1399
        %v2102 = vunpack.c.l.b16 %v1400
        %v2103 = vunpack.c.h.b16 %v1400
        %v2104 = vunpack.c.l.b16 %v1401
        %v2105 = vunpack.c.h.b16 %v1401
        %v2106 = vunpack.c.l.b16 %v1402
        %v2107 = vunpack.c.h.b16 %v1402
        %v2108 = vunpack.c.l.b16 %v1403
        %v2109 = vunpack.c.h.b16 %v1403
        %v2110 = vunpack.c.l.b16 %v1404
        %v2111 = vunpack.c.h.b16 %v1404
        %v2112 = vunpack.c.l.b16 %v1405
        %v2113 = vunpack.c.h.b16 %v1405
        %v2114 = vunpack.c.l.b16 %v1406
        %v2115 = vunpack.c.h.b16 %v1406
        %v2116 = vunpack.c.l.b16 %v1407
        %v2117 = vunpack.c.h.b16 %v1407
        %v2118 = vunpack.c.l.b16 %v1408
        %v2119 = vunpack.c.h.b16 %v1408
        %v2120 = vunpack.c.l.b16 %v1409
        %v2121 = vunpack.c.h.b16 %v1409
        %v2122 = vunpack.c.l.b16 %v1410
        %v2123 = vunpack.c.h.b16 %v1410
        %v2124 = vunpack.c.l.b16 %v1411
        %v2125 = vunpack.c.h.b16 %v1411
        %v2126 = vunpack.c.l.b16 %v1412
        %v2127 = vunpack.c.h.b16 %v1412
        %v2128 = vunpack.c.l.b16 %v1413
        %v2129 = vunpack.c.h.b16 %v1413
        %v2130 = vunpack.c.l.b16 %v1414
        %v2131 = vunpack.c.h.b16 %v1414
        %v2132 = vunpack.c.l.b16 %v1415
        %v2133 = vunpack.c.h.b16 %v1415
        %v2134 = vunpack.c.l.b16 %v1416
        %v2135 = vunpack.c.h.b16 %v1416
        %v2136 = vunpack.c.l.b16 %v1417
        %v2137 = vunpack.c.h.b16 %v1417
        %v2138 = vunpack.c.l.b16 %v1418
        %v2139 = vunpack.c.h.b16 %v1418
        %v2140 = vunpack.c.l.b16 %v1419
        %v2141 = vunpack.c.h.b16 %v1419
        %v2142 = vunpack.c.l.b16 %v1420
        %v2143 = vunpack.c.h.b16 %v1420
        %v2144 = vunpack.c.l.b16 %v1421
        %v2145 = vunpack.c.h.b16 %v1421
        %v2146 = vunpack.c.l.b16 %v1422
        %v2147 = vunpack.c.h.b16 %v1422
        %v2148 = vunpack.c.l.b16 %v1423
        %v2149 = vunpack.c.h.b16 %v1423
        %v2150 = vunpack.c.l.b16 %v1424
        %v2151 = vunpack.c.h.b16 %v1424
        %v2152 = vunpack.c.l.b16 %v1425
        %v2153 = vunpack.c.h.b16 %v1425
        %v2154 = vunpack.c.l.b16 %v1426
        %v2155 = vunpack.c.h.b16 %v1426
        %v2156 = vunpack.c.l.b16 %v1427
        %v2157 = vunpack.c.h.b16 %v1427
        %v2158 = vunpack.c.l.b16 %v1428
        %v2159 = vunpack.c.h.b16 %v1428
        %v2160 = vunpack.c.l.b16 %v1429
        %v2161 = vunpack.c.h.b16 %v1429
        %v2162 = vunpack.c.l.b16 %v1430
        %v2163 = vunpack.c.h.b16 %v1430
        %v2164 = vunpack.c.l.b16 %v1431
        %v2165 = vunpack.c.h.b16 %v1431
        %v2166 = vunpack.c.l.b16 %v1432
        %v2167 = vunpack.c.h.b16 %v1432
        %v2168 = vunpack.c.l.b16 %v1433
        %v2169 = vunpack.c.h.b16 %v1433
        %v2170 = vunpack.c.l.b16 %v1434
        %v2171 = vunpack.c.h.b16 %v1434
        %v2172 = vunpack.c.l.b16 %v1435
        %v2173 = vunpack.c.h.b16 %v1435
        %v2174 = vunpack.c.l.b16 %v1436
        %v2175 = vunpack.c.h.b16 %v1436
        %v2176 = vunpack.c.l.b16 %v1437
        %v2177 = vunpack.c.h.b16 %v1437
        %v2178 = vunpack.c.l.b16 %v1438
        %v2179 = vunpack.c.h.b16 %v1438
        %v2180 = vunpack.c.l.b16 %v1439
        %v2181 = vunpack.c.h.b16 %v1439
        %v2182 = vunpack.c.l.b16 %v1440
        %v2183 = vunpack.c.h.b16 %v1440
        %v2184 = vunpack.c.l.b16 %v1441
        %v2185 = vunpack.c.h.b16 %v1441
        %v2186 = vunpack.c.l.b16 %v1442
        %v2187 = vunpack.c.h.b16 %v1442
        %v2188 = vunpack.c.l.b16 %v1443
        %v2189 = vunpack.c.h.b16 %v1443
        %v2190 = vunpack.c.l.b16 %v1444
        %v2191 = vunpack.c.h.b16 %v1444
        %v2192 = vunpack.c.l.b16 %v1445
        %v2193 = vunpack.c.h.b16 %v1445
        %v2194 = vunpack.c.l.b16 %v1446
        %v2195 = vunpack.c.h.b16 %v1446
        %v2196 = vunpack.c.l.b16 %v1447
        %v2197 = vunpack.c.h.b16 %v1447
        %v2198 = vunpack.c.l.b16 %v1448
        %v2199 = vunpack.c.h.b16 %v1448
        %v2200 = vunpack.c.l.b16 %v1449
        %v2201 = vunpack.c.h.b16 %v1449
        %v2202 = vunpack.c.l.b16 %v1450
        %v2203 = vunpack.c.h.b16 %v1450
        %v2204 = vunpack.c.l.b16 %v1451
        %v2205 = vunpack.c.h.b16 %v1451
        %v2206 = vunpack.c.l.b16 %v1452
        %v2207 = vunpack.c.h.b16 %v1452
        %v2208 = vunpack.c.l.b16 %v1453
        %v2209 = vunpack.c.h.b16 %v1453
        %v2210 = vunpack.c.l.b16 %v1454
        %v2211 = vunpack.c.h.b16 %v1454
        %v2212 = vunpack.c.l.b16 %v1455
        %v2213 = vunpack.c.h.b16 %v1455
        %v2214 = vunpack.c.l.b16 %v1456
        %v2215 = vunpack.c.h.b16 %v1456
        %v2216 = vunpack.c.l.b16 %v1457
        %v2217 = vunpack.c.h.b16 %v1457
        %v2218 = vunpack.c.l.b16 %v1458
        %v2219 = vunpack.c.h.b16 %v1458
        %v2220 = vunpack.c.l.b16 %v1459
        %v2221 = vunpack.c.h.b16 %v1459
        %v2222 = vunpack.c.l.b16 %v1460
        %v2223 = vunpack.c.h.b16 %v1460
        %v2224 = vunpack.c.l.b16 %v1461
        %v2225 = vunpack.c.h.b16 %v1461
        %v2226 = vunpack.c.l.b16 %v1462
        %v2227 = vunpack.c.h.b16 %v1462
        %v2228 = vunpack.c.l.b16 %v1463
        %v2229 = vunpack.c.h.b16 %v1463
        %v2230 = vunpack.c.l.b16 %v1464
        %v2231 = vunpack.c.h.b16 %v1464
        %v2232 = vunpack.c.l.b16 %v1465
        %v2233 = vunpack.c.h.b16 %v1465
        %v2234 = vunpack.c.l.b16 %v1466
        %v2235 = vunpack.c.h.b16 %v1466
        %v2236 = vunpack.c.l.b16 %v1467
        %v2237 = vunpack.c.h.b16 %v1467
        %v2238 = vunpack.c.l.b16 %v1468
        %v2239 = vunpack.c.h.b16 %v1468
        %v2240 = vunpack.c.l.b16 %v1469
        %v2241 = vunpack.c.h.b16 %v1469
        %v2242 = vunpack.c.l.b16 %v1470
        %v2243 = vunpack.c.h.b16 %v1470
        %v2244 = vunpack.c.l.b16 %v1471
        %v2245 = vunpack.c.h.b16 %v1471
        %v2246 = vunpack.c.l.b16 %v1472
        %v2247 = vunpack.c.h.b16 %v1472
        %v2248 = vunpack.c.l.b16 %v1473
        %v2249 = vunpack.c.h.b16 %v1473
        %v2250 = vunpack.c.l.b16 %v1474
        %v2251 = vunpack.c.h.b16 %v1474
        %v2252 = vunpack.c.l.b16 %v1475
        %v2253 = vunpack.c.h.b16 %v1475
        %v2254 = vunpack.c.l.b16 %v1476
        %v2255 = vunpack.c.h.b16 %v1476
        %v2256 = vunpack.c.l.b16 %v1477
        %v2257 = vunpack.c.h.b16 %v1477
        %v2258 = vunpack.c.l.b16 %v1478
        %v2259 = vunpack.c.h.b16 %v1478
        %v2260 = vunpack.c.l.b16 %v1479
        %v2261 = vunpack.c.h.b16 %v1479
        %v2262 = vunpack.c.l.b16 %v1480
        %v2263 = vunpack.c.h.b16 %v1480
        %v2264 = vunpack.c.l.b16 %v1481
        %v2265 = vunpack.c.h.b16 %v1481
        %v2266 = vunpack.c.l.b16 %v1482
        %v2267 = vunpack.c.h.b16 %v1482
        %v2268 = vunpack.c.l.b16 %v1483
        %v2269 = vunpack.c.h.b16 %v1483
        %v2270 = vunpack.c.l.b16 %v1484
        %v2271 = vunpack.c.h.b16 %v1484
        %v2272 = vunpack.c.l.b16 %v1485
        %v2273 = vunpack.c.h.b16 %v1485
        %v2274 = vunpack.c.l.b16 %v1486
        %v2275 = vunpack.c.h.b16 %v1486
        %v2276 = vunpack.c.l.b16 %v1487
        %v2277 = vunpack.c.h.b16 %v1487
        %v2278 = vunpack.c.l.b16 %v1488
        %v2279 = vunpack.c.h.b16 %v1488
        %v2280 = vunpack.c.l.b16 %v1489
        %v2281 = vunpack.c.h.b16 %v1489
        %v2282 = vunpack.c.l.b16 %v1490
        %v2283 = vunpack.c.h.b16 %v1490
        %v2284 = vunpack.c.l.b16 %v1491
        %v2285 = vunpack.c.h.b16 %v1491
        %v2286 = vunpack.c.l.b16 %v1492
        %v2287 = vunpack.c.h.b16 %v1492
        %v2288 = vunpack.c.l.b16 %v1493
        %v2289 = vunpack.c.h.b16 %v1493
        %v2290 = vunpack.c.l.b16 %v1494
        %v2291 = vunpack.c.h.b16 %v1494
        %v2292 = vunpack.c.l.b16 %v1495
        %v2293 = vunpack.c.h.b16 %v1495
        %v2294 = vunpack.c.l.b16 %v1496
        %v2295 = vunpack.c.h.b16 %v1496
        %v2296 = vunpack.c.l.b16 %v1497
        %v2297 = vunpack.c.h.b16 %v1497
        %v2298 = vunpack.c.l.b16 %v1498
        %v2299 = vunpack.c.h.b16 %v1498
        %v2300 = vunpack.c.l.b16 %v1499
        %v2301 = vunpack.c.h.b16 %v1499
        %v2302 = vunpack.c.l.b16 %v1500
        %v2303 = vunpack.c.h.b16 %v1500
        %v2304 = vunpack.c.l.b16 %v1501
        %v2305 = vunpack.c.h.b16 %v1501
        %v2306 = vunpack.c.l.b16 %v1502
        %v2307 = vunpack.c.h.b16 %v1502
        %v2308 = vunpack.c.l.b16 %v1503
        %v2309 = vunpack.c.h.b16 %v1503
        %v2310 = vunpack.c.l.b16 %v1504
        %v2311 = vunpack.c.h.b16 %v1504
        %v2312 = vunpack.c.l.b16 %v1505
        %v2313 = vunpack.c.h.b16 %v1505
        %v2314 = vunpack.c.l.b16 %v1506
        %v2315 = vunpack.c.h.b16 %v1506
        %v2316 = vunpack.c.l.b16 %v1507
        %v2317 = vunpack.c.h.b16 %v1507
        %v2318 = vunpack.c.l.b16 %v1508
        %v2319 = vunpack.c.h.b16 %v1508
        %v2320 = vunpack.c.l.b16 %v1509
        %v2321 = vunpack.c.h.b16 %v1509
        %v2322 = vunpack.c.l.b16 %v1510
        %v2323 = vunpack.c.h.b16 %v1510
        %v2324 = vunpack.c.l.b16 %v1511
        %v2325 = vunpack.c.h.b16 %v1511
        %v2326 = vunpack.c.l.b16 %v1512
        %v2327 = vunpack.c.h.b16 %v1512
        %v2328 = vunpack.c.l.b16 %v1513
        %v2329 = vunpack.c.h.b16 %v1513
        %v2330 = vunpack.c.l.b16 %v1514
        %v2331 = vunpack.c.h.b16 %v1514
        %v2332 = vunpack.c.l.b16 %v1515
        %v2333 = vunpack.c.h.b16 %v1515
        %v2334 = vunpack.c.l.b16 %v1516
        %v2335 = vunpack.c.h.b16 %v1516
        %v2336 = vunpack.c.l.b16 %v1517
        %v2337 = vunpack.c.h.b16 %v1517
        %v2338 = vunpack.c.l.b16 %v1518
        %v2339 = vunpack.c.h.b16 %v1518
        %v2340 = vunpack.c.l.b16 %v1519
        %v2341 = vunpack.c.h.b16 %v1519
        %v2342 = vunpack.c.l.b16 %v1520
        %v2343 = vunpack.c.h.b16 %v1520
        %v2344 = vunpack.c.l.b16 %v1521
        %v2345 = vunpack.c.h.b16 %v1521
        %v2346 = vunpack.c.l.b16 %v1522
        %v2347 = vunpack.c.h.b16 %v1522
        %v2348 = vunpack.c.l.b16 %v1523
        %v2349 = vunpack.c.h.b16 %v1523
        %v2350 = vunpack.c.l.b16 %v1524
        %v2351 = vunpack.c.h.b16 %v1524
        %v2352 = vunpack.c.l.b16 %v1525
        %v2353 = vunpack.c.h.b16 %v1525
        %v2354 = vunpack.c.l.b16 %v1526
        %v2355 = vunpack.c.h.b16 %v1526
        %v2356 = vunpack.c.l.b16 %v1527
        %v2357 = vunpack.c.h.b16 %v1527
        %v2358 = vunpack.c.l.b16 %v1528
        %v2359 = vunpack.c.h.b16 %v1528
        %v2360 = vunpack.c.l.b16 %v1529
        %v2361 = vunpack.c.h.b16 %v1529
        %v2362 = vunpack.c.l.b16 %v1530
        %v2363 = vunpack.c.h.b16 %v1530
        %v2364 = vunpack.c.l.b16 %v1531
        %v2365 = vunpack.c.h.b16 %v1531
        %v2366 = vunpack.c.l.b16 %v1532
        %v2367 = vunpack.c.h.b16 %v1532
        %v2368 = vunpack.c.l.b16 %v1533
        %v2369 = vunpack.c.h.b16 %v1533
        %v2370 = vunpack.c.l.b16 %v1534
        %v2371 = vunpack.c.h.b16 %v1534
        %v2372 = vunpack.c.l.b16 %v1535
        %v2373 = vunpack.c.h.b16 %v1535
        %v2374 = vunpack.c.l.b16 %v1536
        %v2375 = vunpack.c.h.b16 %v1536
        %v2376 = vunpack.c.l.b16 %v1537
        %v2377 = vunpack.c.h.b16 %v1537
        %v2378 = vunpack.c.l.b16 %v1538
        %v2379 = vunpack.c.h.b16 %v1538
        %v2380 = vunpack.c.l.b16 %v1539
        %v2381 = vunpack.c.h.b16 %v1539
        %v2382 = vunpack.c.l.b16 %v1540
        %v2383 = vunpack.c.h.b16 %v1540
        %v2384 = vunpack.c.l.b16 %v1541
        %v2385 = vunpack.c.h.b16 %v1541
        %v2386 = vunpack.c.l.b16 %v1542
        %v2387 = vunpack.c.h.b16 %v1542
        %v2388 = vunpack.c.l.b16 %v1543
        %v2389 = vunpack.c.h.b16 %v1543
        %v2390 = vunpack.c.l.b16 %v1544
        %v2391 = vunpack.c.h.b16 %v1544
        %v2392 = vunpack.c.l.b16 %v1545
        %v2393 = vunpack.c.h.b16 %v1545
        %v2394 = vunpack.c.l.b16 %v1546
        %v2395 = vunpack.c.h.b16 %v1546
        %v2396 = vunpack.c.l.b16 %v1547
        %v2397 = vunpack.c.h.b16 %v1547
        %v2398 = vunpack.c.l.b16 %v1548
        %v2399 = vunpack.c.h.b16 %v1548
        %v2400 = vunpack.c.l.b16 %v1549
        %v2401 = vunpack.c.h.b16 %v1549
        %v2402 = vunpack.c.l.b16 %v1550
        %v2403 = vunpack.c.h.b16 %v1550
        %v2404 = vunpack.c.l.b16 %v1551
        %v2405 = vunpack.c.h.b16 %v1551
        %v2406 = vunpack.c.l.b16 %v1552
        %v2407 = vunpack.c.h.b16 %v1552
        %v2408 = vunpack.c.l.b16 %v1553
        %v2409 = vunpack.c.h.b16 %v1553
        %v2410 = vunpack.c.l.b16 %v1554
        %v2411 = vunpack.c.h.b16 %v1554
        %v2412 = vunpack.c.l.b16 %v1555
        %v2413 = vunpack.c.h.b16 %v1555
        %v2414 = vunpack.c.l.b16 %v1556
        %v2415 = vunpack.c.h.b16 %v1556
        %v2416 = vunpack.c.l.b16 %v1557
        %v2417 = vunpack.c.h.b16 %v1557
        %v2418 = vunpack.c.l.b16 %v1558
        %v2419 = vunpack.c.h.b16 %v1558
        %v2420 = vunpack.c.l.b16 %v1559
        %v2421 = vunpack.c.h.b16 %v1559
        %v2422 = vunpack.c.l.b16 %v1560
        %v2423 = vunpack.c.h.b16 %v1560
        %v2424 = vunpack.c.l.b16 %v1561
        %v2425 = vunpack.c.h.b16 %v1561
        %v2426 = vunpack.c.l.b16 %v1562
        %v2427 = vunpack.c.h.b16 %v1562
        %v2428 = vpack.c.b16 %v1860, %v1852
        %v2429 = vpack.c.b16 %v1861, %v1853
        %v2430 = vpack.c.b16 %v1862, %v1854
        %v2431 = vpack.c.b16 %v1863, %v1855
        %v2432 = vpack.c.b16 %v1864, %v1856
        %v2433 = vpack.c.b16 %v1865, %v1857
        %v2434 = vpack.c.b16 %v1866, %v1858
        %v2435 = vpack.c.b16 %v1867, %v1859
        %v2436 = vpack.c.b16 %v1876, %v1868
        %v2437 = vpack.c.b16 %v1877, %v1869
        %v2438 = vpack.c.b16 %v1878, %v1870
        %v2439 = vpack.c.b16 %v1879, %v1871
        %v2440 = vpack.c.b16 %v1880, %v1872
        %v2441 = vpack.c.b16 %v1881, %v1873
        %v2442 = vpack.c.b16 %v1882, %v1874
        %v2443 = vpack.c.b16 %v1883, %v1875
        %v2444 = vpack.c.b16 %v1892, %v1884
        %v2445 = vpack.c.b16 %v1893, %v1885
        %v2446 = vpack.c.b16 %v1894, %v1886
        %v2447 = vpack.c.b16 %v1895, %v1887
        %v2448 = vpack.c.b16 %v1896, %v1888
        %v2449 = vpack.c.b16 %v1897, %v1889
        %v2450 = vpack.c.b16 %v1898, %v1890
        %v2451 = vpack.c.b16 %v1899, %v1891
        %v2452 = vpack.c.b16 %v1908, %v1900
        %v2453 = vpack.c.b16 %v1909, %v1901
        %v2454 = vpack.c.b16 %v1910, %v1902
        %v2455 = vpack.c.b16 %v1911, %v1903
        %v2456 = vpack.c.b16 %v1912, %v1904
        %v2457 = vpack.c.b16 %v1913, %v1905
        %v2458 = vpack.c.b16 %v1914, %v1906
        %v2459 = vpack.c.b16 %v1915, %v1907
        %v2460 = vpack.c.b16 %v1924, %v1916
        %v2461 = vpack.c.b16 %v1925, %v1917
        %v2462 = vpack.c.b16 %v1926, %v1918
        %v2463 = vpack.c.b16 %v1927, %v1919
        %v2464 = vpack.c.b16 %v1928, %v1920
        %v2465 = vpack.c.b16 %v1929, %v1921
        %v2466 = vpack.c.b16 %v1930, %v1922
        %v2467 = vpack.c.b16 %v1931, %v1923
        %v2468 = vpack.c.b16 %v1940, %v1932
        %v2469 = vpack.c.b16 %v1941, %v1933
        %v2470 = vpack.c.b16 %v1942, %v1934
        %v2471 = vpack.c.b16 %v1943, %v1935
        %v2472 = vpack.c.b16 %v1944, %v1936
        %v2473 = vpack.c.b16 %v1945, %v1937
        %v2474 = vpack.c.b16 %v1946, %v1938
        %v2475 = vpack.c.b16 %v1947, %v1939
        %v2476 = vpack.c.b16 %v1956, %v1948
        %v2477 = vpack.c.b16 %v1957, %v1949
        %v2478 = vpack.c.b16 %v1958, %v1950
        %v2479 = vpack.c.b16 %v1959, %v1951
        %v2480 = vpack.c.b16 %v1960, %v1952
        %v2481 = vpack.c.b16 %v1961, %v1953
        %v2482 = vpack.c.b16 %v1962, %v1954
        %v2483 = vpack.c.b16 %v1963, %v1955
        %v2484 = vpack.c.b16 %v1972, %v1964
        %v2485 = vpack.c.b16 %v1973, %v1965
        %v2486 = vpack.c.b16 %v1974, %v1966
        %v2487 = vpack.c.b16 %v1975, %v1967
        %v2488 = vpack.c.b16 %v1976, %v1968
        %v2489 = vpack.c.b16 %v1977, %v1969
        %v2490 = vpack.c.b16 %v1978, %v1970
        %v2491 = vpack.c.b16 %v1979, %v1971
        %v2492 = vpack.c.b16 %v1988, %v1980
        %v2493 = vpack.c.b16 %v1989, %v1981
        %v2494 = vpack.c.b16 %v1990, %v1982
        %v2495 = vpack.c.b16 %v1991, %v1983
        %v2496 = vpack.c.b16 %v1992, %v1984
        %v2497 = vpack.c.b16 %v1993, %v1985
        %v2498 = vpack.c.b16 %v1994, %v1986
        %v2499 = vpack.c.b16 %v1995, %v1987
        %v2500 = vpack.c.b16 %v2004, %v1996
        %v2501 = vpack.c.b16 %v2005, %v1997
        %v2502 = vpack.c.b16 %v2006, %v1998
        %v2503 = vpack.c.b16 %v2007, %v1999
        %v2504 = vpack.c.b16 %v2008, %v2000
        %v2505 = vpack.c.b16 %v2009, %v2001
        %v2506 = vpack.c.b16 %v2010, %v2002
        %v2507 = vpack.c.b16 %v2011, %v2003
        %v2508 = vpack.c.b16 %v2020, %v2012
        %v2509 = vpack.c.b16 %v2021, %v2013
        %v2510 = vpack.c.b16 %v2022, %v2014
        %v2511 = vpack.c.b16 %v2023, %v2015
        %v2512 = vpack.c.b16 %v2024, %v2016
        %v2513 = vpack.c.b16 %v2025, %v2017
        %v2514 = vpack.c.b16 %v2026, %v2018
        %v2515 = vpack.c.b16 %v2027, %v2019
        %v2516 = vpack.c.b16 %v2036, %v2028
        %v2517 = vpack.c.b16 %v2037, %v2029
        %v2518 = vpack.c.b16 %v2038, %v2030
        %v2519 = vpack.c.b16 %v2039, %v2031
        %v2520 = vpack.c.b16 %v2040, %v2032
        %v2521 = vpack.c.b16 %v2041, %v2033
        %v2522 = vpack.c.b16 %v2042, %v2034
        %v2523 = vpack.c.b16 %v2043, %v2035
        %v2524 = vpack.c.b16 %v2052, %v2044
        %v2525 = vpack.c.b16 %v2053, %v2045
        %v2526 = vpack.c.b16 %v2054, %v2046
        %v2527 = vpack.c.b16 %v2055, %v2047
        %v2528 = vpack.c.b16 %v2056, %v2048
        %v2529 = vpack.c.b16 %v2057, %v2049
        %v2530 = vpack.c.b16 %v2058, %v2050
        %v2531 = vpack.c.b16 %v2059, %v2051
        %v2532 = vpack.c.b16 %v2068, %v2060
        %v2533 = vpack.c.b16 %v2069, %v2061
        %v2534 = vpack.c.b16 %v2070, %v2062
        %v2535 = vpack.c.b16 %v2071, %v2063
        %v2536 = vpack.c.b16 %v2072, %v2064
        %v2537 = vpack.c.b16 %v2073, %v2065
        %v2538 = vpack.c.b16 %v2074, %v2066
        %v2539 = vpack.c.b16 %v2075, %v2067
        %v2540 = vpack.c.b16 %v2084, %v2076
        %v2541 = vpack.c.b16 %v2085, %v2077
        %v2542 = vpack.c.b16 %v2086, %v2078
        %v2543 = vpack.c.b16 %v2087, %v2079
        %v2544 = vpack.c.b16 %v2088, %v2080
        %v2545 = vpack.c.b16 %v2089, %v2081
        %v2546 = vpack.c.b16 %v2090, %v2082
        %v2547 = vpack.c.b16 %v2091, %v2083
        %v2548 = vpack.c.b16 %v2100, %v2092
        %v2549 = vpack.c.b16 %v2101, %v2093
        %v2550 = vpack.c.b16 %v2102, %v2094
        %v2551 = vpack.c.b16 %v2103, %v2095
        %v2552 = vpack.c.b16 %v2104, %v2096
        %v2553 = vpack.c.b16 %v2105, %v2097
        %v2554 = vpack.c.b16 %v2106, %v2098
        %v2555 = vpack.c.b16 %v2107, %v2099
        %v2556 = vpack.c.b16 %v2116, %v2108
        %v2557 = vpack.c.b16 %v2117, %v2109
        %v2558 = vpack.c.b16 %v2118, %v2110
        %v2559 = vpack.c.b16 %v2119, %v2111
        %v2560 = vpack.c.b16 %v2120, %v2112
        %v2561 = vpack.c.b16 %v2121, %v2113
        %v2562 = vpack.c.b16 %v2122, %v2114
        %v2563 = vpack.c.b16 %v2123, %v2115
        %v2564 = vpack.c.b16 %v2132, %v2124
        %v2565 = vpack.c.b16 %v2133, %v2125
        %v2566 = vpack.c.b16 %v2134, %v2126
        %v2567 = vpack.c.b16 %v2135, %v2127
        %v2568 = vpack.c.b16 %v2136, %v2128
        %v2569 = vpack.c.b16 %v2137, %v2129
        %v2570 = vpack.c.b16 %v2138, %v2130
        %v2571 = vpack.c.b16 %v2139, %v2131
        %v2572 = vpack.c.b16 %v2148, %v2140
        %v2573 = vpack.c.b16 %v2149, %v2141
        %v2574 = vpack.c.b16 %v2150, %v2142
        %v2575 = vpack.c.b16 %v2151, %v2143
        %v2576 = vpack.c.b16 %v2152, %v2144
        %v2577 = vpack.c.b16 %v2153, %v2145
        %v2578 = vpack.c.b16 %v2154, %v2146
        %v2579 = vpack.c.b16 %v2155, %v2147
        %v2580 = vpack.c.b16 %v2164, %v2156
        %v2581 = vpack.c.b16 %v2165, %v2157
        %v2582 = vpack.c.b16 %v2166, %v2158
        %v2583 = vpack.c.b16 %v2167, %v2159
        %v2584 = vpack.c.b16 %v2168, %v2160
        %v2585 = vpack.c.b16 %v2169, %v2161
        %v2586 = vpack.c.b16 %v2170, %v2162
        %v2587 = vpack.c.b16 %v2171, %v2163
        %v2588 = vpack.c.b16 %v2180, %v2172
        %v2589 = vpack.c.b16 %v2181, %v2173
        %v2590 = vpack.c.b16 %v2182, %v2174
        %v2591 = vpack.c.b16 %v2183, %v2175
        %v2592 = vpack.c.b16 %v2184, %v2176
        %v2593 = vpack.c.b16 %v2185, %v2177
        %v2594 = vpack.c.b16 %v2186, %v2178
        %v2595 = vpack.c.b16 %v2187, %v2179
        %v2596 = vpack.c.b16 %v2196, %v2188
        %v2597 = vpack.c.b16 %v2197, %v2189
        %v2598 = vpack.c.b16 %v2198, %v2190
        %v2599 = vpack.c.b16 %v2199, %v2191
        %v2600 = vpack.c.b16 %v2200, %v2192
        %v2601 = vpack.c.b16 %v2201, %v2193
        %v2602 = vpack.c.b16 %v2202, %v2194
        %v2603 = vpack.c.b16 %v2203, %v2195
        %v2604 = vpack.c.b16 %v2212, %v2204
        %v2605 = vpack.c.b16 %v2213, %v2205
        %v2606 = vpack.c.b16 %v2214, %v2206
        %v2607 = vpack.c.b16 %v2215, %v2207
        %v2608 = vpack.c.b16 %v2216, %v2208
        %v2609 = vpack.c.b16 %v2217, %v2209
        %v2610 = vpack.c.b16 %v2218, %v2210
        %v2611 = vpack.c.b16 %v2219, %v2211
        %v2612 = vpack.c.b16 %v2228, %v2220
        %v2613 = vpack.c.b16 %v2229, %v2221
        %v2614 = vpack.c.b16 %v2230, %v2222
        %v2615 = vpack.c.b16 %v2231, %v2223
        %v2616 = vpack.c.b16 %v2232, %v2224
        %v2617 = vpack.c.b16 %v2233, %v2225
        %v2618 = vpack.c.b16 %v2234, %v2226
        %v2619 = vpack.c.b16 %v2235, %v2227
        %v2620 = vpack.c.b16 %v2244, %v2236
        %v2621 = vpack.c.b16 %v2245, %v2237
        %v2622 = vpack.c.b16 %v2246, %v2238
        %v2623 = vpack.c.b16 %v2247, %v2239
        %v2624 = vpack.c.b16 %v2248, %v2240
        %v2625 = vpack.c.b16 %v2249, %v2241
        %v2626 = vpack.c.b16 %v2250, %v2242
        %v2627 = vpack.c.b16 %v2251, %v2243
        %v2628 = vpack.c.b16 %v2260, %v2252
        %v2629 = vpack.c.b16 %v2261, %v2253
        %v2630 = vpack.c.b16 %v2262, %v2254
        %v2631 = vpack.c.b16 %v2263, %v2255
        %v2632 = vpack.c.b16 %v2264, %v2256
        %v2633 = vpack.c.b16 %v2265, %v2257
        %v2634 = vpack.c.b16 %v2266, %v2258
        %v2635 = vpack.c.b16 %v2267, %v2259
        %v2636 = vpack.c.b16 %v2276, %v2268
        %v2637 = vpack.c.b16 %v2277, %v2269
        %v2638 = vpack.c.b16 %v2278, %v2270
        %v2639 = vpack.c.b16 %v2279, %v2271
        %v2640 = vpack.c.b16 %v2280, %v2272
        %v2641 = vpack.c.b16 %v2281, %v2273
        %v2642 = vpack.c.b16 %v2282, %v2274
        %v2643 = vpack.c.b16 %v2283, %v2275
        %v2644 = vpack.c.b16 %v2292, %v2284
        %v2645 = vpack.c.b16 %v2293, %v2285
        %v2646 = vpack.c.b16 %v2294, %v2286
        %v2647 = vpack.c.b16 %v2295, %v2287
        %v2648 = vpack.c.b16 %v2296, %v2288
        %v2649 = vpack.c.b16 %v2297, %v2289
        %v2650 = vpack.c.b16 %v2298, %v2290
        %v2651 = vpack.c.b16 %v2299, %v2291
        %v2652 = vpack.c.b16 %v2308, %v2300
        %v2653 = vpack.c.b16 %v2309, %v2301
        %v2654 = vpack.c.b16 %v2310, %v2302
        %v2655 = vpack.c.b16 %v2311, %v2303
        %v2656 = vpack.c.b16 %v2312, %v2304
        %v2657 = vpack.c.b16 %v2313, %v2305
        %v2658 = vpack.c.b16 %v2314, %v2306
        %v2659 = vpack.c.b16 %v2315, %v2307
        %v2660 = vpack.c.b16 %v2324, %v2316
        %v2661 = vpack.c.b16 %v2325, %v2317
        %v2662 = vpack.c.b16 %v2326, %v2318
        %v2663 = vpack.c.b16 %v2327, %v2319
        %v2664 = vpack.c.b16 %v2328, %v2320
        %v2665 = vpack.c.b16 %v2329, %v2321
        %v2666 = vpack.c.b16 %v2330, %v2322
        %v2667 = vpack.c.b16 %v2331, %v2323
        %v2668 = vpack.c.b16 %v2340, %v2332
        %v2669 = vpack.c.b16 %v2341, %v2333
        %v2670 = vpack.c.b16 %v2342, %v2334
        %v2671 = vpack.c.b16 %v2343, %v2335
        %v2672 = vpack.c.b16 %v2344, %v2336
        %v2673 = vpack.c.b16 %v2345, %v2337
        %v2674 = vpack.c.b16 %v2346, %v2338
        %v2675 = vpack.c.b16 %v2347, %v2339
        %v2676 = vpack.c.b16 %v2356, %v2348
        %v2677 = vpack.c.b16 %v2357, %v2349
        %v2678 = vpack.c.b16 %v2358, %v2350
        %v2679 = vpack.c.b16 %v2359, %v2351
        %v2680 = vpack.c.b16 %v2360, %v2352
        %v2681 = vpack.c.b16 %v2361, %v2353
        %v2682 = vpack.c.b16 %v2362, %v2354
        %v2683 = vpack.c.b16 %v2363, %v2355
        %v2684 = vpack.c.b16 %v2372, %v2364
        %v2685 = vpack.c.b16 %v2373, %v2365
        %v2686 = vpack.c.b16 %v2374, %v2366
        %v2687 = vpack.c.b16 %v2375, %v2367
        %v2688 = vpack.c.b16 %v2376, %v2368
        %v2689 = vpack.c.b16 %v2377, %v2369
        %v2690 = vpack.c.b16 %v2378, %v2370
        %v2691 = vpack.c.b16 %v2379, %v2371
        %v2692 = vpack.c.b16 %v2388, %v2380
        %v2693 = vpack.c.b16 %v2389, %v2381
        %v2694 = vpack.c.b16 %v2390, %v2382
        %v2695 = vpack.c.b16 %v2391, %v2383
        %v2696 = vpack.c.b16 %v2392, %v2384
        %v2697 = vpack.c.b16 %v2393, %v2385
        %v2698 = vpack.c.b16 %v2394, %v2386
        %v2699 = vpack.c.b16 %v2395, %v2387
        %v2700 = vpack.c.b16 %v2404, %v2396
        %v2701 = vpack.c.b16 %v2405, %v2397
        %v2702 = vpack.c.b16 %v2406, %v2398
        %v2703 = vpack.c.b16 %v2407, %v2399
        %v2704 = vpack.c.b16 %v2408, %v2400
        %v2705 = vpack.c.b16 %v2409, %v2401
        %v2706 = vpack.c.b16 %v2410, %v2402
        %v2707 = vpack.c.b16 %v2411, %v2403
        %v2708 = vpack.c.b16 %v2420, %v2412
        %v2709 = vpack.c.b16 %v2421, %v2413
        %v2710 = vpack.c.b16 %v2422, %v2414
        %v2711 = vpack.c.b16 %v2423, %v2415
        %v2712 = vpack.c.b16 %v2424, %v2416
        %v2713 = vpack.c.b16 %v2425, %v2417
        %v2714 = vpack.c.b16 %v2426, %v2418
        %v2715 = vpack.c.b16 %v2427, %v2419
        %v3005 = vlaneseq
        %v3006 = vshrl.u32 %v3005, 7
        %v3007 = vsub.s32 0, %v3006
        %v3008 = vrot.slane %v1563, %v3007
        %v3009 = vlaneseq
        %v3010 = vshrl.u32 %v3009, 7
        %v3011 = vsub.s32 1, %v3010
        %v3012 = vrot.slane %v1563, %v3011
        %v3013 = vlaneseq
        %v3014 = vshrl.u32 %v3013, 7
        %v3015 = vsub.s32 2, %v3014
        %v3016 = vrot.slane %v1563, %v3015
        %v3017 = vlaneseq
        %v3018 = vshrl.u32 %v3017, 7
        %v3019 = vsub.s32 3, %v3018
        %v3020 = vrot.slane %v1563, %v3019
        %v3021 = vlaneseq
        %v3022 = vshrl.u32 %v3021, 7
        %v3023 = vsub.s32 4, %v3022
        %v3024 = vrot.slane %v1563, %v3023
        %v3025 = vlaneseq
        %v3026 = vshrl.u32 %v3025, 7
        %v3027 = vsub.s32 5, %v3026
        %v3028 = vrot.slane %v1563, %v3027
        %v3029 = vlaneseq
        %v3030 = vshrl.u32 %v3029, 7
        %v3031 = vsub.s32 6, %v3030
        %v3032 = vrot.slane %v1563, %v3031
        %v3033 = vlaneseq
        %v3034 = vshrl.u32 %v3033, 7
        %v3035 = vsub.s32 7, %v3034
        %v3036 = vrot.slane %v1563, %v3035
        %3045 = vmatprep.subr.bf16.mxu0 %v2429
        %3046 = vmatpush1.bf16.msra.mxu0 %v2428
        %3047 = vmatprep.subr.bf16.mxu0 %v2437
        %3048 = vmatpush1.bf16.msra.mxu0 %v2436
        %3049 = vmatprep.subr.bf16.mxu0 %v2445
        %3050 = vmatpush1.bf16.msra.mxu0 %v2444
        %3051 = vmatprep.subr.bf16.mxu0 %v2453
        %3052 = vmatpush1.bf16.msra.mxu0 %v2452
        %3053 = vmatprep.subr.bf16.mxu0 %v2461
        %3054 = vmatpush1.bf16.msra.mxu0 %v2460
        %3055 = vmatprep.subr.bf16.mxu0 %v2469
        %3056 = vmatpush1.bf16.msra.mxu0 %v2468
        %3057 = vmatprep.subr.bf16.mxu0 %v2477
        %3058 = vmatpush1.bf16.msra.mxu0 %v2476
        %3059 = vmatprep.subr.bf16.mxu0 %v2485
        %3060 = vmatpush1.bf16.msra.mxu0 %v2484
        %3061 = vmatprep.subr.bf16.mxu0 %v2493
        %3062 = vmatpush1.bf16.msra.mxu0 %v2492
        %3063 = vmatprep.subr.bf16.mxu0 %v2501
        %3064 = vmatpush1.bf16.msra.mxu0 %v2500
        %3065 = vmatprep.subr.bf16.mxu0 %v2509
        %3066 = vmatpush1.bf16.msra.mxu0 %v2508
        %3067 = vmatprep.subr.bf16.mxu0 %v2517
        %3068 = vmatpush1.bf16.msra.mxu0 %v2516
        %3069 = vmatprep.subr.bf16.mxu0 %v2525
        %3070 = vmatpush1.bf16.msra.mxu0 %v2524
        %3071 = vmatprep.subr.bf16.mxu0 %v2533
        %3072 = vmatpush1.bf16.msra.mxu0 %v2532
        %3073 = vmatprep.subr.bf16.mxu0 %v2541
        %3074 = vmatpush1.bf16.msra.mxu0 %v2540
        %3075 = vmatprep.subr.bf16.mxu0 %v2549
        %3076 = vmatpush1.bf16.msra.mxu0 %v2548
        %3077 = vmatprep.mubr.bf16.mxu0 %v847
        %3078 = vmatmul.mubr.bf16.gmra.mrb[0].mxu0 %v846
        %v3079 = vpop.f32.mrb[0].mxu0
        %v3080 = vadd.f32 %v3008, %v3079
        %v3081 = vpop.f32.mrb[0].mxu0
        %v3082 = vadd.f32 %v3012, %v3081
        %v3083 = vpop.f32.mrb[0].mxu0
        %v3084 = vpop.f32.mrb[0].mxu0
        %3085 = vdwg.mxu0
        %3086 = vmatprep.subr.bf16.mxu0 %v2557
        %3087 = vmatpush1.bf16.msra.mxu0 %v2556
        %3088 = vmatprep.subr.bf16.mxu0 %v2565
        %3089 = vmatpush1.bf16.msra.mxu0 %v2564
        %3090 = vmatprep.subr.bf16.mxu0 %v2573
        %3091 = vmatpush1.bf16.msra.mxu0 %v2572
        %3092 = vmatprep.subr.bf16.mxu0 %v2581
        %3093 = vmatpush1.bf16.msra.mxu0 %v2580
        %3094 = vmatprep.subr.bf16.mxu0 %v2589
        %3095 = vmatpush1.bf16.msra.mxu0 %v2588
        %3096 = vmatprep.subr.bf16.mxu0 %v2597
        %3097 = vmatpush1.bf16.msra.mxu0 %v2596
        %3098 = vmatprep.subr.bf16.mxu0 %v2605
        %3099 = vmatpush1.bf16.msra.mxu0 %v2604
        %3100 = vmatprep.subr.bf16.mxu0 %v2613
        %3101 = vmatpush1.bf16.msra.mxu0 %v2612
        %3102 = vmatprep.subr.bf16.mxu0 %v2621
        %3103 = vmatpush1.bf16.msra.mxu0 %v2620
        %3104 = vmatprep.subr.bf16.mxu0 %v2629
        %3105 = vmatpush1.bf16.msra.mxu0 %v2628
        %3106 = vmatprep.subr.bf16.mxu0 %v2637
        %3107 = vmatpush1.bf16.msra.mxu0 %v2636
        %3108 = vmatprep.subr.bf16.mxu0 %v2645
        %3109 = vmatpush1.bf16.msra.mxu0 %v2644
        %3110 = vmatprep.subr.bf16.mxu0 %v2653
        %3111 = vmatpush1.bf16.msra.mxu0 %v2652
        %3112 = vmatprep.subr.bf16.mxu0 %v2661
        %3113 = vmatpush1.bf16.msra.mxu0 %v2660
        %3114 = vmatprep.subr.bf16.mxu0 %v2669
        %3115 = vmatpush1.bf16.msra.mxu0 %v2668
        %3116 = vmatprep.subr.bf16.mxu0 %v2677
        %3117 = vmatpush1.bf16.msra.mxu0 %v2676
        %3118 = vmatprep.mubr.bf16.mxu0 %v849
        %3119 = vmatmul.mubr.bf16.gmra.mrb[0].mxu0 %v848
        %v3120 = vpop.f32.mrb[0].mxu0
        %v3121 = vadd.f32 %v3080, %v3120
        %v3122 = vpop.f32.mrb[0].mxu0
        %v3123 = vadd.f32 %v3082, %v3122
        %v3124 = vpop.f32.mrb[0].mxu0
        %v3125 = vpop.f32.mrb[0].mxu0
        %3126 = vdwg.mxu0
        %3127 = vmatprep.subr.bf16.mxu0 %v2685
        %3128 = vmatpush1.bf16.msra.mxu0 %v2684
        %3129 = vmatprep.subr.bf16.mxu0 %v2693
        %3130 = vmatpush1.bf16.msra.mxu0 %v2692
        %3131 = vmatprep.subr.bf16.mxu0 %v2701
        %3132 = vmatpush1.bf16.msra.mxu0 %v2700
        %3133 = vmatprep.subr.bf16.mxu0 %v2709
        %3134 = vmatpush1.bf16.msra.mxu0 %v2708
        %3135 = vmatprep.subr.bf16.mxu0 0
        %3136 = vmatpush1.bf16.msra.mxu0 0
        %3137 = vmatprep.subr.bf16.mxu0 0
        %3138 = vmatpush1.bf16.msra.mxu0 0
        %3139 = vmatprep.subr.bf16.mxu0 0
        %3140 = vmatpush1.bf16.msra.mxu0 0
        %3141 = vmatprep.subr.bf16.mxu0 0
        %3142 = vmatpush1.bf16.msra.mxu0 0
        %3143 = vmatprep.subr.bf16.mxu0 0
        %3144 = vmatpush1.bf16.msra.mxu0 0
        %3145 = vmatprep.subr.bf16.mxu0 0
        %3146 = vmatpush1.bf16.msra.mxu0 0
        %3147 = vmatprep.subr.bf16.mxu0 0
        %3148 = vmatpush1.bf16.msra.mxu0 0
        %3149 = vmatprep.subr.bf16.mxu0 0
        %3150 = vmatpush1.bf16.msra.mxu0 0
        %3151 = vmatprep.subr.bf16.mxu0 0
        %3152 = vmatpush1.bf16.msra.mxu0 0
        %3153 = vmatprep.subr.bf16.mxu0 0
        %3154 = vmatpush1.bf16.msra.mxu0 0
        %3155 = vmatprep.subr.bf16.mxu0 0
        %3156 = vmatpush1.bf16.msra.mxu0 0
        %3157 = vmatprep.subr.bf16.mxu0 0
        %3158 = vmatpush1.bf16.msra.mxu0 0
        %3159 = vmatprep.mubr.bf16.mxu0 0
        %3160 = vmatmul.mubr.bf16.gmra.mrb[0].mxu0 %v1141
        %v3161 = vpop.f32.mrb[0].mxu0
        %v3162 = vadd.f32 %v3121, %v3161
        %v3163 = vpop.f32.mrb[0].mxu0
        %v3164 = vadd.f32 %v3123, %v3163
        %v3165 = vpop.f32.mrb[0].mxu0
        %v3166 = vpop.f32.mrb[0].mxu0
        %3167 = vdwg.mxu0
        %3168 = vmatprep.subr.bf16.mxu0 %v2431
        %3169 = vmatpush1.bf16.msra.mxu0 %v2430
        %3170 = vmatprep.subr.bf16.mxu0 %v2439
        %3171 = vmatpush1.bf16.msra.mxu0 %v2438
        %3172 = vmatprep.subr.bf16.mxu0 %v2447
        %3173 = vmatpush1.bf16.msra.mxu0 %v2446
        %3174 = vmatprep.subr.bf16.mxu0 %v2455
        %3175 = vmatpush1.bf16.msra.mxu0 %v2454
        %3176 = vmatprep.subr.bf16.mxu0 %v2463
        %3177 = vmatpush1.bf16.msra.mxu0 %v2462
        %3178 = vmatprep.subr.bf16.mxu0 %v2471
        %3179 = vmatpush1.bf16.msra.mxu0 %v2470
        %3180 = vmatprep.subr.bf16.mxu0 %v2479
        %3181 = vmatpush1.bf16.msra.mxu0 %v2478
        %3182 = vmatprep.subr.bf16.mxu0 %v2487
        %3183 = vmatpush1.bf16.msra.mxu0 %v2486
        %3184 = vmatprep.subr.bf16.mxu0 %v2495
        %3185 = vmatpush1.bf16.msra.mxu0 %v2494
        %3186 = vmatprep.subr.bf16.mxu0 %v2503
        %3187 = vmatpush1.bf16.msra.mxu0 %v2502
        %3188 = vmatprep.subr.bf16.mxu0 %v2511
        %3189 = vmatpush1.bf16.msra.mxu0 %v2510
        %3190 = vmatprep.subr.bf16.mxu0 %v2519
        %3191 = vmatpush1.bf16.msra.mxu0 %v2518
        %3192 = vmatprep.subr.bf16.mxu0 %v2527
        %3193 = vmatpush1.bf16.msra.mxu0 %v2526
        %3194 = vmatprep.subr.bf16.mxu0 %v2535
        %3195 = vmatpush1.bf16.msra.mxu0 %v2534
        %3196 = vmatprep.subr.bf16.mxu0 %v2543
        %3197 = vmatpush1.bf16.msra.mxu0 %v2542
        %3198 = vmatprep.subr.bf16.mxu0 %v2551
        %3199 = vmatpush1.bf16.msra.mxu0 %v2550
        %3200 = vmatprep.mubr.bf16.mxu0 %v847
        %3201 = vmatmul.mubr.bf16.gmra.mrb[0].mxu0 %v846
        %v3202 = vpop.f32.mrb[0].mxu0
        %v3203 = vadd.f32 %v3016, %v3202
        %v3204 = vpop.f32.mrb[0].mxu0
        %v3205 = vadd.f32 %v3020, %v3204
        %v3206 = vpop.f32.mrb[0].mxu0
        %v3207 = vpop.f32.mrb[0].mxu0
        %3208 = vdwg.mxu0
        %3209 = vmatprep.subr.bf16.mxu0 %v2559
        %3210 = vmatpush1.bf16.msra.mxu0 %v2558
        %3211 = vmatprep.subr.bf16.mxu0 %v2567
        %3212 = vmatpush1.bf16.msra.mxu0 %v2566
        %3213 = vmatprep.subr.bf16.mxu0 %v2575
        %3214 = vmatpush1.bf16.msra.mxu0 %v2574
        %3215 = vmatprep.subr.bf16.mxu0 %v2583
        %3216 = vmatpush1.bf16.msra.mxu0 %v2582
        %3217 = vmatprep.subr.bf16.mxu0 %v2591
        %3218 = vmatpush1.bf16.msra.mxu0 %v2590
        %3219 = vmatprep.subr.bf16.mxu0 %v2599
        %3220 = vmatpush1.bf16.msra.mxu0 %v2598
        %3221 = vmatprep.subr.bf16.mxu0 %v2607
        %3222 = vmatpush1.bf16.msra.mxu0 %v2606
        %3223 = vmatprep.subr.bf16.mxu0 %v2615
        %3224 = vmatpush1.bf16.msra.mxu0 %v2614
        %3225 = vmatprep.subr.bf16.mxu0 %v2623
        %3226 = vmatpush1.bf16.msra.mxu0 %v2622
        %3227 = vmatprep.subr.bf16.mxu0 %v2631
        %3228 = vmatpush1.bf16.msra.mxu0 %v2630
        %3229 = vmatprep.subr.bf16.mxu0 %v2639
        %3230 = vmatpush1.bf16.msra.mxu0 %v2638
        %3231 = vmatprep.subr.bf16.mxu0 %v2647
        %3232 = vmatpush1.bf16.msra.mxu0 %v2646
        %3233 = vmatprep.subr.bf16.mxu0 %v2655
        %3234 = vmatpush1.bf16.msra.mxu0 %v2654
        %3235 = vmatprep.subr.bf16.mxu0 %v2663
        %3236 = vmatpush1.bf16.msra.mxu0 %v2662
        %3237 = vmatprep.subr.bf16.mxu0 %v2671
        %3238 = vmatpush1.bf16.msra.mxu0 %v2670
        %3239 = vmatprep.subr.bf16.mxu0 %v2679
        %3240 = vmatpush1.bf16.msra.mxu0 %v2678
        %3241 = vmatprep.mubr.bf16.mxu0 %v849
        %3242 = vmatmul.mubr.bf16.gmra.mrb[0].mxu0 %v848
        %v3243 = vpop.f32.mrb[0].mxu0
        %v3244 = vadd.f32 %v3203, %v3243
        %v3245 = vpop.f32.mrb[0].mxu0
        %v3246 = vadd.f32 %v3205, %v3245
        %v3247 = vpop.f32.mrb[0].mxu0
        %v3248 = vpop.f32.mrb[0].mxu0
        %3249 = vdwg.mxu0
        %3250 = vmatprep.subr.bf16.mxu0 %v2687
        %3251 = vmatpush1.bf16.msra.mxu0 %v2686
        %3252 = vmatprep.subr.bf16.mxu0 %v2695
        %3253 = vmatpush1.bf16.msra.mxu0 %v2694
        %3254 = vmatprep.subr.bf16.mxu0 %v2703
        %3255 = vmatpush1.bf16.msra.mxu0 %v2702
        %3256 = vmatprep.subr.bf16.mxu0 %v2711
        %3257 = vmatpush1.bf16.msra.mxu0 %v2710
        %3258 = vmatprep.subr.bf16.mxu0 0
        %3259 = vmatpush1.bf16.msra.mxu0 0
        %3260 = vmatprep.subr.bf16.mxu0 0
        %3261 = vmatpush1.bf16.msra.mxu0 0
        %3262 = vmatprep.subr.bf16.mxu0 0
        %3263 = vmatpush1.bf16.msra.mxu0 0
        %3264 = vmatprep.subr.bf16.mxu0 0
        %3265 = vmatpush1.bf16.msra.mxu0 0
        %3266 = vmatprep.subr.bf16.mxu0 0
        %3267 = vmatpush1.bf16.msra.mxu0 0
        %3268 = vmatprep.subr.bf16.mxu0 0
        %3269 = vmatpush1.bf16.msra.mxu0 0
        %3270 = vmatprep.subr.bf16.mxu0 0
        %3271 = vmatpush1.bf16.msra.mxu0 0
        %3272 = vmatprep.subr.bf16.mxu0 0
        %3273 = vmatpush1.bf16.msra.mxu0 0
        %3274 = vmatprep.subr.bf16.mxu0 0
        %3275 = vmatpush1.bf16.msra.mxu0 0
        %3276 = vmatprep.subr.bf16.mxu0 0
        %3277 = vmatpush1.bf16.msra.mxu0 0
        %3278 = vmatprep.subr.bf16.mxu0 0
        %3279 = vmatpush1.bf16.msra.mxu0 0
        %3280 = vmatprep.subr.bf16.mxu0 0
        %3281 = vmatpush1.bf16.msra.mxu0 0
        %3282 = vmatprep.mubr.bf16.mxu0 0
        %3283 = vmatmul.mubr.bf16.gmra.mrb[0].mxu0 %v1141
        %v3284 = vpop.f32.mrb[0].mxu0
        %v3285 = vadd.f32 %v3244, %v3284
        %v3286 = vpop.f32.mrb[0].mxu0
        %v3287 = vadd.f32 %v3246, %v3286
        %v3288 = vpop.f32.mrb[0].mxu0
        %v3289 = vpop.f32.mrb[0].mxu0
        %3290 = vdwg.mxu0
        %3291 = vmatprep.subr.bf16.mxu0 %v2433
        %3292 = vmatpush1.bf16.msra.mxu0 %v2432
        %3293 = vmatprep.subr.bf16.mxu0 %v2441
        %3294 = vmatpush1.bf16.msra.mxu0 %v2440
        %3295 = vmatprep.subr.bf16.mxu0 %v2449
        %3296 = vmatpush1.bf16.msra.mxu0 %v2448
        %3297 = vmatprep.subr.bf16.mxu0 %v2457
        %3298 = vmatpush1.bf16.msra.mxu0 %v2456
        %3299 = vmatprep.subr.bf16.mxu0 %v2465
        %3300 = vmatpush1.bf16.msra.mxu0 %v2464
        %3301 = vmatprep.subr.bf16.mxu0 %v2473
        %3302 = vmatpush1.bf16.msra.mxu0 %v2472
        %3303 = vmatprep.subr.bf16.mxu0 %v2481
        %3304 = vmatpush1.bf16.msra.mxu0 %v2480
        %3305 = vmatprep.subr.bf16.mxu0 %v2489
        %3306 = vmatpush1.bf16.msra.mxu0 %v2488
        %3307 = vmatprep.subr.bf16.mxu0 %v2497
        %3308 = vmatpush1.bf16.msra.mxu0 %v2496
        %3309 = vmatprep.subr.bf16.mxu0 %v2505
        %3310 = vmatpush1.bf16.msra.mxu0 %v2504
        %3311 = vmatprep.subr.bf16.mxu0 %v2513
        %3312 = vmatpush1.bf16.msra.mxu0 %v2512
        %3313 = vmatprep.subr.bf16.mxu0 %v2521
        %3314 = vmatpush1.bf16.msra.mxu0 %v2520
        %3315 = vmatprep.subr.bf16.mxu0 %v2529
        %3316 = vmatpush1.bf16.msra.mxu0 %v2528
        %3317 = vmatprep.subr.bf16.mxu0 %v2537
        %3318 = vmatpush1.bf16.msra.mxu0 %v2536
        %3319 = vmatprep.subr.bf16.mxu0 %v2545
        %3320 = vmatpush1.bf16.msra.mxu0 %v2544
        %3321 = vmatprep.subr.bf16.mxu0 %v2553
        %3322 = vmatpush1.bf16.msra.mxu0 %v2552
        %3323 = vmatprep.mubr.bf16.mxu0 %v847
        %3324 = vmatmul.mubr.bf16.gmra.mrb[0].mxu0 %v846
        %v3325 = vpop.f32.mrb[0].mxu0
        %v3326 = vadd.f32 %v3024, %v3325
        %v3327 = vpop.f32.mrb[0].mxu0
        %v3328 = vadd.f32 %v3028, %v3327
        %v3329 = vpop.f32.mrb[0].mxu0
        %v3330 = vpop.f32.mrb[0].mxu0
        %3331 = vdwg.mxu0
        %3332 = vmatprep.subr.bf16.mxu0 %v2561
        %3333 = vmatpush1.bf16.msra.mxu0 %v2560
        %3334 = vmatprep.subr.bf16.mxu0 %v2569
        %3335 = vmatpush1.bf16.msra.mxu0 %v2568
        %3336 = vmatprep.subr.bf16.mxu0 %v2577
        %3337 = vmatpush1.bf16.msra.mxu0 %v2576
        %3338 = vmatprep.subr.bf16.mxu0 %v2585
        %3339 = vmatpush1.bf16.msra.mxu0 %v2584
        %3340 = vmatprep.subr.bf16.mxu0 %v2593
        %3341 = vmatpush1.bf16.msra.mxu0 %v2592
        %3342 = vmatprep.subr.bf16.mxu0 %v2601
        %3343 = vmatpush1.bf16.msra.mxu0 %v2600
        %3344 = vmatprep.subr.bf16.mxu0 %v2609
        %3345 = vmatpush1.bf16.msra.mxu0 %v2608
        %3346 = vmatprep.subr.bf16.mxu0 %v2617
        %3347 = vmatpush1.bf16.msra.mxu0 %v2616
        %3348 = vmatprep.subr.bf16.mxu0 %v2625
        %3349 = vmatpush1.bf16.msra.mxu0 %v2624
        %3350 = vmatprep.subr.bf16.mxu0 %v2633
        %3351 = vmatpush1.bf16.msra.mxu0 %v2632
        %3352 = vmatprep.subr.bf16.mxu0 %v2641
        %3353 = vmatpush1.bf16.msra.mxu0 %v2640
        %3354 = vmatprep.subr.bf16.mxu0 %v2649
        %3355 = vmatpush1.bf16.msra.mxu0 %v2648
        %3356 = vmatprep.subr.bf16.mxu0 %v2657
        %3357 = vmatpush1.bf16.msra.mxu0 %v2656
        %3358 = vmatprep.subr.bf16.mxu0 %v2665
        %3359 = vmatpush1.bf16.msra.mxu0 %v2664
        %3360 = vmatprep.subr.bf16.mxu0 %v2673
        %3361 = vmatpush1.bf16.msra.mxu0 %v2672
        %3362 = vmatprep.subr.bf16.mxu0 %v2681
        %3363 = vmatpush1.bf16.msra.mxu0 %v2680
        %3364 = vmatprep.mubr.bf16.mxu0 %v849
        %3365 = vmatmul.mubr.bf16.gmra.mrb[0].mxu0 %v848
        %v3366 = vpop.f32.mrb[0].mxu0
        %v3367 = vadd.f32 %v3326, %v3366
        %v3368 = vpop.f32.mrb[0].mxu0
        %v3369 = vadd.f32 %v3328, %v3368
        %v3370 = vpop.f32.mrb[0].mxu0
        %v3371 = vpop.f32.mrb[0].mxu0
        %3372 = vdwg.mxu0
        %3373 = vmatprep.subr.bf16.mxu0 %v2689
        %3374 = vmatpush1.bf16.msra.mxu0 %v2688
        %3375 = vmatprep.subr.bf16.mxu0 %v2697
        %3376 = vmatpush1.bf16.msra.mxu0 %v2696
        %3377 = vmatprep.subr.bf16.mxu0 %v2705
        %3378 = vmatpush1.bf16.msra.mxu0 %v2704
        %3379 = vmatprep.subr.bf16.mxu0 %v2713
        %3380 = vmatpush1.bf16.msra.mxu0 %v2712
        %3381 = vmatprep.subr.bf16.mxu0 0
        %3382 = vmatpush1.bf16.msra.mxu0 0
        %3383 = vmatprep.subr.bf16.mxu0 0
        %3384 = vmatpush1.bf16.msra.mxu0 0
        %3385 = vmatprep.subr.bf16.mxu0 0
        %3386 = vmatpush1.bf16.msra.mxu0 0
        %3387 = vmatprep.subr.bf16.mxu0 0
        %3388 = vmatpush1.bf16.msra.mxu0 0
        %3389 = vmatprep.subr.bf16.mxu0 0
        %3390 = vmatpush1.bf16.msra.mxu0 0
        %3391 = vmatprep.subr.bf16.mxu0 0
        %3392 = vmatpush1.bf16.msra.mxu0 0
        %3393 = vmatprep.subr.bf16.mxu0 0
        %3394 = vmatpush1.bf16.msra.mxu0 0
        %3395 = vmatprep.subr.bf16.mxu0 0
        %3396 = vmatpush1.bf16.msra.mxu0 0
        %3397 = vmatprep.subr.bf16.mxu0 0
        %3398 = vmatpush1.bf16.msra.mxu0 0
        %3399 = vmatprep.subr.bf16.mxu0 0
        %3400 = vmatpush1.bf16.msra.mxu0 0
        %3401 = vmatprep.subr.bf16.mxu0 0
        %3402 = vmatpush1.bf16.msra.mxu0 0
        %3403 = vmatprep.subr.bf16.mxu0 0
        %3404 = vmatpush1.bf16.msra.mxu0 0
        %3405 = vmatprep.mubr.bf16.mxu0 0
        %3406 = vmatmul.mubr.bf16.gmra.mrb[0].mxu0 %v1141
        %v3407 = vpop.f32.mrb[0].mxu0
        %v3408 = vadd.f32 %v3367, %v3407
        %v3409 = vpop.f32.mrb[0].mxu0
        %v3410 = vadd.f32 %v3369, %v3409
        %v3411 = vpop.f32.mrb[0].mxu0
        %v3412 = vpop.f32.mrb[0].mxu0
        %3413 = vdwg.mxu0
        %3414 = vmatprep.subr.bf16.mxu0 %v2435
        %3415 = vmatpush1.bf16.msra.mxu0 %v2434
        %3416 = vmatprep.subr.bf16.mxu0 %v2443
        %3417 = vmatpush1.bf16.msra.mxu0 %v2442
        %3418 = vmatprep.subr.bf16.mxu0 %v2451
        %3419 = vmatpush1.bf16.msra.mxu0 %v2450
        %3420 = vmatprep.subr.bf16.mxu0 %v2459
        %3421 = vmatpush1.bf16.msra.mxu0 %v2458
        %3422 = vmatprep.subr.bf16.mxu0 %v2467
        %3423 = vmatpush1.bf16.msra.mxu0 %v2466
        %3424 = vmatprep.subr.bf16.mxu0 %v2475
        %3425 = vmatpush1.bf16.msra.mxu0 %v2474
        %3426 = vmatprep.subr.bf16.mxu0 %v2483
        %3427 = vmatpush1.bf16.msra.mxu0 %v2482
        %3428 = vmatprep.subr.bf16.mxu0 %v2491
        %3429 = vmatpush1.bf16.msra.mxu0 %v2490
        %3430 = vmatprep.subr.bf16.mxu0 %v2499
        %3431 = vmatpush1.bf16.msra.mxu0 %v2498
        %3432 = vmatprep.subr.bf16.mxu0 %v2507
        %3433 = vmatpush1.bf16.msra.mxu0 %v2506
        %3434 = vmatprep.subr.bf16.mxu0 %v2515
        %3435 = vmatpush1.bf16.msra.mxu0 %v2514
        %3436 = vmatprep.subr.bf16.mxu0 %v2523
        %3437 = vmatpush1.bf16.msra.mxu0 %v2522
        %3438 = vmatprep.subr.bf16.mxu0 %v2531
        %3439 = vmatpush1.bf16.msra.mxu0 %v2530
        %3440 = vmatprep.subr.bf16.mxu0 %v2539
        %3441 = vmatpush1.bf16.msra.mxu0 %v2538
        %3442 = vmatprep.subr.bf16.mxu0 %v2547
        %3443 = vmatpush1.bf16.msra.mxu0 %v2546
        %3444 = vmatprep.subr.bf16.mxu0 %v2555
        %3445 = vmatpush1.bf16.msra.mxu0 %v2554
        %3446 = vmatprep.mubr.bf16.mxu0 %v847
        %3447 = vmatmul.mubr.bf16.gmra.mrb[0].mxu0 %v846
        %v3448 = vpop.f32.mrb[0].mxu0
        %v3449 = vadd.f32 %v3032, %v3448
        %v3450 = vpop.f32.mrb[0].mxu0
        %v3451 = vadd.f32 %v3036, %v3450
        %v3452 = vpop.f32.mrb[0].mxu0
        %v3453 = vpop.f32.mrb[0].mxu0
        %3454 = vdwg.mxu0
        %3455 = vmatprep.subr.bf16.mxu0 %v2563
        %3456 = vmatpush1.bf16.msra.mxu0 %v2562
        %3457 = vmatprep.subr.bf16.mxu0 %v2571
        %3458 = vmatpush1.bf16.msra.mxu0 %v2570
        %3459 = vmatprep.subr.bf16.mxu0 %v2579
        %3460 = vmatpush1.bf16.msra.mxu0 %v2578
        %3461 = vmatprep.subr.bf16.mxu0 %v2587
        %3462 = vmatpush1.bf16.msra.mxu0 %v2586
        %3463 = vmatprep.subr.bf16.mxu0 %v2595
        %3464 = vmatpush1.bf16.msra.mxu0 %v2594
        %3465 = vmatprep.subr.bf16.mxu0 %v2603
        %3466 = vmatpush1.bf16.msra.mxu0 %v2602
        %3467 = vmatprep.subr.bf16.mxu0 %v2611
        %3468 = vmatpush1.bf16.msra.mxu0 %v2610
        %3469 = vmatprep.subr.bf16.mxu0 %v2619
        %3470 = vmatpush1.bf16.msra.mxu0 %v2618
        %3471 = vmatprep.subr.bf16.mxu0 %v2627
        %3472 = vmatpush1.bf16.msra.mxu0 %v2626
        %3473 = vmatprep.subr.bf16.mxu0 %v2635
        %3474 = vmatpush1.bf16.msra.mxu0 %v2634
        %3475 = vmatprep.subr.bf16.mxu0 %v2643
        %3476 = vmatpush1.bf16.msra.mxu0 %v2642
        %3477 = vmatprep.subr.bf16.mxu0 %v2651
        %3478 = vmatpush1.bf16.msra.mxu0 %v2650
        %3479 = vmatprep.subr.bf16.mxu0 %v2659
        %3480 = vmatpush1.bf16.msra.mxu0 %v2658
        %3481 = vmatprep.subr.bf16.mxu0 %v2667
        %3482 = vmatpush1.bf16.msra.mxu0 %v2666
        %3483 = vmatprep.subr.bf16.mxu0 %v2675
        %3484 = vmatpush1.bf16.msra.mxu0 %v2674
        %3485 = vmatprep.subr.bf16.mxu0 %v2683
        %3486 = vmatpush1.bf16.msra.mxu0 %v2682
        %3487 = vmatprep.mubr.bf16.mxu0 %v849
        %3488 = vmatmul.mubr.bf16.gmra.mrb[0].mxu0 %v848
        %v3489 = vpop.f32.mrb[0].mxu0
        %v3490 = vadd.f32 %v3449, %v3489
        %v3491 = vpop.f32.mrb[0].mxu0
        %v3492 = vadd.f32 %v3451, %v3491
        %v3493 = vpop.f32.mrb[0].mxu0
        %v3494 = vpop.f32.mrb[0].mxu0
        %3495 = vdwg.mxu0
        %3496 = vmatprep.subr.bf16.mxu0 %v2691
        %3497 = vmatpush1.bf16.msra.mxu0 %v2690
        %3498 = vmatprep.subr.bf16.mxu0 %v2699
        %3499 = vmatpush1.bf16.msra.mxu0 %v2698
        %3500 = vmatprep.subr.bf16.mxu0 %v2707
        %3501 = vmatpush1.bf16.msra.mxu0 %v2706
        %3502 = vmatprep.subr.bf16.mxu0 %v2715
        %3503 = vmatpush1.bf16.msra.mxu0 %v2714
        %3504 = vmatprep.subr.bf16.mxu0 0
        %3505 = vmatpush1.bf16.msra.mxu0 0
        %3506 = vmatprep.subr.bf16.mxu0 0
        %3507 = vmatpush1.bf16.msra.mxu0 0
        %3508 = vmatprep.subr.bf16.mxu0 0
        %3509 = vmatpush1.bf16.msra.mxu0 0
        %3510 = vmatprep.subr.bf16.mxu0 0
        %3511 = vmatpush1.bf16.msra.mxu0 0
        %3512 = vmatprep.subr.bf16.mxu0 0
        %3513 = vmatpush1.bf16.msra.mxu0 0
        %3514 = vmatprep.subr.bf16.mxu0 0
        %3515 = vmatpush1.bf16.msra.mxu0 0
        %3516 = vmatprep.subr.bf16.mxu0 0
        %3517 = vmatpush1.bf16.msra.mxu0 0
        %3518 = vmatprep.subr.bf16.mxu0 0
        %3519 = vmatpush1.bf16.msra.mxu0 0
        %3520 = vmatprep.subr.bf16.mxu0 0
        %3521 = vmatpush1.bf16.msra.mxu0 0
        %3522 = vmatprep.subr.bf16.mxu0 0
        %3523 = vmatpush1.bf16.msra.mxu0 0
        %3524 = vmatprep.subr.bf16.mxu0 0
        %3525 = vmatpush1.bf16.msra.mxu0 0
        %3526 = vmatprep.subr.bf16.mxu0 0
        %3527 = vmatpush1.bf16.msra.mxu0 0
        %3528 = vmatprep.mubr.bf16.mxu0 0
        %3529 = vmatmul.mubr.bf16.gmra.mrb[0].mxu0 %v1141
        %v3530 = vpop.f32.mrb[0].mxu0
        %v3531 = vadd.f32 %v3490, %v3530
        %v3532 = vpop.f32.mrb[0].mxu0
        %v3533 = vadd.f32 %v3492, %v3532
        %v3534 = vpop.f32.mrb[0].mxu0
        %v3535 = vpop.f32.mrb[0].mxu0
        %3536 = vdwg.mxu0
        %v3537 = vadd.f32 %v3162, 3.0
        %v3538 = vadd.f32 %v3164, 3.0
        %v3539 = vadd.f32 %v3285, 3.0
        %v3540 = vadd.f32 %v3287, 3.0
        %v3541 = vadd.f32 %v3408, 3.0
        %v3542 = vadd.f32 %v3410, 3.0
        %v3543 = vadd.f32 %v3531, 3.0
        %v3544 = vadd.f32 %v3533, 3.0
        %v3545 = vmax.f32 %v3537, 0.0
        %v3546 = vmax.f32 %v3538, 0.0
        %v3547 = vmax.f32 %v3539, 0.0
        %v3548 = vmax.f32 %v3540, 0.0
        %v3549 = vmax.f32 %v3541, 0.0
        %v3550 = vmax.f32 %v3542, 0.0
        %v3551 = vmax.f32 %v3543, 0.0
        %v3552 = vmax.f32 %v3544, 0.0
        %v3553 = vmin.f32 %v3545, 6.0
        %v3554 = vmin.f32 %v3546, 6.0
        %v3555 = vmin.f32 %v3547, 6.0
        %v3556 = vmin.f32 %v3548, 6.0
        %v3557 = vmin.f32 %v3549, 6.0
        %v3558 = vmin.f32 %v3550, 6.0
        %v3559 = vmin.f32 %v3551, 6.0
        %v3560 = vmin.f32 %v3552, 6.0
        %v3561 = vmul.f32 %v3162, %v3553
        %v3562 = vmul.f32 %v3164, %v3554
        %v3563 = vmul.f32 %v3285, %v3555
        %v3564 = vmul.f32 %v3287, %v3556
        %v3565 = vmul.f32 %v3408, %v3557
        %v3566 = vmul.f32 %v3410, %v3558
        %v3567 = vmul.f32 %v3531, %v3559
        %v3568 = vmul.f32 %v3533, %v3560
        %v3569 = vmul.f32 %v3561, 0.16666667
        %v3570 = vmul.f32 %v3562, 0.16666667
        %v3571 = vmul.f32 %v3563, 0.16666667
        %v3572 = vmul.f32 %v3564, 0.16666667
        %v3573 = vmul.f32 %v3565, 0.16666667
        %v3574 = vmul.f32 %v3566, 0.16666667
        %v3575 = vmul.f32 %v3567, 0.16666667
        %v3576 = vmul.f32 %v3568, 0.16666667
        %v3577 = vpack.c.bf16 %v3569, %v3569
        %v3578 = vpack.c.bf16 %v3570, %v3570
        %v3579 = vpack.c.bf16 %v3571, %v3571
        %v3580 = vpack.c.bf16 %v3572, %v3572
        %v3581 = vpack.c.bf16 %v3573, %v3573
        %v3582 = vpack.c.bf16 %v3574, %v3574
        %v3583 = vpack.c.bf16 %v3575, %v3575
        %v3584 = vpack.c.bf16 %v3576, %v3576
        %v3585 = vld [vmem:[%s7] sm:$0xf]
        %v3586 = vld [vmem:[%s7 + $0x4] sm:$0xf]
        %v3587 = vld [vmem:[%s7 + $0x8] sm:$0xf]
        %v3588 = vld [vmem:[%s7 + $0xc] sm:$0xf]
        %v3589 = vld [vmem:[%s7 + $0x10] sm:$0xf]
        %v3590 = vld [vmem:[%s7 + $0x14] sm:$0xf]
        %v3591 = vld [vmem:[%s7 + $0x18] sm:$0xf]
        %v3592 = vld [vmem:[%s7 + $0x1c] sm:$0xf]
        %v3593 = vld [vmem:[%s7 + $0x20] sm:$0xf]
        %v3594 = vld [vmem:[%s7 + $0x24] sm:$0xf]
        %v3595 = vld [vmem:[%s7 + $0x28] sm:$0xf]
        %v3596 = vld [vmem:[%s7 + $0x2c] sm:$0xf]
        %v3597 = vld [vmem:[%s7 + $0x30] sm:$0xf]
        %v3598 = vld [vmem:[%s7 + $0x34] sm:$0xf]
        %v3599 = vld [vmem:[%s7 + $0x38] sm:$0xf]
        %v3600 = vld [vmem:[%s7 + $0x3c] sm:$0xf]
        %v3601 = vld [vmem:[%s7 + $0x40] sm:$0xf]
        %v3602 = vld [vmem:[%s7 + $0x44] sm:$0xf]
        %v3603 = vld [vmem:[%s7 + $0x48] sm:$0xf]
        %v3604 = vld [vmem:[%s7 + $0x4c] sm:$0xf]
        %v3605 = vld [vmem:[%s7 + $0x50] sm:$0xf]
        %v3606 = vld [vmem:[%s7 + $0x54] sm:$0xf]
        %v3607 = vld [vmem:[%s7 + $0x58] sm:$0xf]
        %v3608 = vld [vmem:[%s7 + $0x5c] sm:$0xf]
        %v3609 = vld [vmem:[%s7 + $0x60] sm:$0xf]
        %v3610 = vld [vmem:[%s7 + $0x64] sm:$0xf]
        %v3611 = vld [vmem:[%s7 + $0x68] sm:$0xf]
        %v3612 = vld [vmem:[%s7 + $0x6c] sm:$0xf]
        %v3613 = vld [vmem:[%s7 + $0x70] sm:$0xf]
        %v3614 = vld [vmem:[%s7 + $0x74] sm:$0xf]
        %v3615 = vld [vmem:[%s7 + $0x78] sm:$0xf]
        %v3616 = vld [vmem:[%s7 + $0x7c] sm:$0xf]
        %v3617 = vld [vmem:[%s7 + $0x80] sm:$0xf]
        %v3618 = vld [vmem:[%s7 + $0x84] sm:$0xf]
        %v3619 = vld [vmem:[%s7 + $0x88] sm:$0xf]
        %v3620 = vld [vmem:[%s7 + $0x8c] sm:$0xf]
        %v3621 = vld [vmem:[%s7 + $0x90] sm:$0xf]
        %v3622 = vld [vmem:[%s7 + $0x94] sm:$0xf]
        %v3623 = vld [vmem:[%s7 + $0x98] sm:$0xf]
        %v3624 = vld [vmem:[%s7 + $0x9c] sm:$0xf]
        %v3625 = vld [vmem:[%s7 + $0xa0] sm:$0xf]
        %v3626 = vld [vmem:[%s7 + $0xa4] sm:$0xf]
        %v3627 = vld [vmem:[%s7 + $0xa8] sm:$0xf]
        %v3628 = vld [vmem:[%s7 + $0xac] sm:$0xf]
        %v3629 = vld [vmem:[%s7 + $0xb0] sm:$0xf]
        %v3630 = vld [vmem:[%s7 + $0xb4] sm:$0xf]
        %v3631 = vld [vmem:[%s7 + $0xb8] sm:$0xf]
        %v3632 = vld [vmem:[%s7 + $0xbc] sm:$0xf]
        %v3633 = vld [vmem:[%s7 + $0xc0] sm:$0xf]
        %v3634 = vld [vmem:[%s7 + $0xc4] sm:$0xf]
        %v3635 = vld [vmem:[%s7 + $0xc8] sm:$0xf]
        %v3636 = vld [vmem:[%s7 + $0xcc] sm:$0xf]
        %v3637 = vld [vmem:[%s7 + $0xd0] sm:$0xf]
        %v3638 = vld [vmem:[%s7 + $0xd4] sm:$0xf]
        %v3639 = vld [vmem:[%s7 + $0xd8] sm:$0xf]
        %v3640 = vld [vmem:[%s7 + $0xdc] sm:$0xf]
        %v3641 = vld [vmem:[%s7 + $0xe0] sm:$0xf]
        %v3642 = vld [vmem:[%s7 + $0xe4] sm:$0xf]
        %v3643 = vld [vmem:[%s7 + $0xe8] sm:$0xf]
        %v3644 = vld [vmem:[%s7 + $0xec] sm:$0xf]
        %v3645 = vld [vmem:[%s7 + $0xf0] sm:$0xf]
        %v3646 = vld [vmem:[%s7 + $0xf4] sm:$0xf]
        %v3647 = vld [vmem:[%s7 + $0xf8] sm:$0xf]
        %v3648 = vld [vmem:[%s7 + $0xfc] sm:$0xf]
        %v3649 = vld [vmem:[%s7 + $0x100] sm:$0xf]
        %v3650 = vld [vmem:[%s7 + $0x104] sm:$0xf]
        %v3651 = vld [vmem:[%s7 + $0x108] sm:$0xf]
        %v3652 = vld [vmem:[%s7 + $0x10c] sm:$0xf]
        %v3653 = vld [vmem:[%s7 + $0x110] sm:$0xf]
        %v3654 = vld [vmem:[%s7 + $0x114] sm:$0xf]
        %v3655 = vld [vmem:[%s7 + $0x118] sm:$0xf]
        %v3656 = vld [vmem:[%s7 + $0x11c] sm:$0xf]
        %v3657 = vld [vmem:[%s7 + $0x120] sm:$0xf]
        %v3658 = vld [vmem:[%s7 + $0x124] sm:$0xf]
        %v3659 = vld [vmem:[%s7 + $0x128] sm:$0xf]
        %v3660 = vld [vmem:[%s7 + $0x12c] sm:$0xf]
        %v3661 = vld [vmem:[%s7 + $0x130] sm:$0xf]
        %v3662 = vld [vmem:[%s7 + $0x134] sm:$0xf]
        %v3663 = vld [vmem:[%s7 + $0x138] sm:$0xf]
        %v3664 = vld [vmem:[%s7 + $0x13c] sm:$0xf]
        %v3665 = vld [vmem:[%s7 + $0x140] sm:$0xf]
        %v3666 = vld [vmem:[%s7 + $0x144] sm:$0xf]
        %v3667 = vld [vmem:[%s7 + $0x148] sm:$0xf]
        %v3668 = vld [vmem:[%s7 + $0x14c] sm:$0xf]
        %v3669 = vld [vmem:[%s7 + $0x150] sm:$0xf]
        %v3670 = vld [vmem:[%s7 + $0x154] sm:$0xf]
        %v3671 = vld [vmem:[%s7 + $0x158] sm:$0xf]
        %v3672 = vld [vmem:[%s7 + $0x15c] sm:$0xf]
        %v3673 = vld [vmem:[%s7 + $0x160] sm:$0xf]
        %v3674 = vld [vmem:[%s7 + $0x164] sm:$0xf]
        %v3675 = vld [vmem:[%s7 + $0x168] sm:$0xf]
        %v3676 = vld [vmem:[%s7 + $0x16c] sm:$0xf]
        %v3677 = vld [vmem:[%s7 + $0x170] sm:$0xf]
        %v3678 = vld [vmem:[%s7 + $0x174] sm:$0xf]
        %v3679 = vld [vmem:[%s7 + $0x178] sm:$0xf]
        %v3680 = vld [vmem:[%s7 + $0x17c] sm:$0xf]
        %v3681 = vld [vmem:[%s7 + $0x180] sm:$0xf]
        %v3682 = vld [vmem:[%s7 + $0x184] sm:$0xf]
        %v3683 = vld [vmem:[%s7 + $0x188] sm:$0xf]
        %v3684 = vld [vmem:[%s7 + $0x18c] sm:$0xf]
        %v3685 = vld [vmem:[%s7 + $0x190] sm:$0xf]
        %v3686 = vld [vmem:[%s7 + $0x194] sm:$0xf]
        %v3687 = vld [vmem:[%s7 + $0x198] sm:$0xf]
        %v3688 = vld [vmem:[%s7 + $0x19c] sm:$0xf]
        %v3689 = vld [vmem:[%s7 + $0x1a0] sm:$0xf]
        %v3690 = vld [vmem:[%s7 + $0x1a4] sm:$0xf]
        %v3691 = vld [vmem:[%s7 + $0x1a8] sm:$0xf]
        %v3692 = vld [vmem:[%s7 + $0x1ac] sm:$0xf]
        %v3693 = vld [vmem:[%s7 + $0x1b0] sm:$0xf]
        %v3694 = vld [vmem:[%s7 + $0x1b4] sm:$0xf]
        %v3695 = vld [vmem:[%s7 + $0x1b8] sm:$0xf]
        %v3696 = vld [vmem:[%s7 + $0x1bc] sm:$0xf]
        %v3697 = vld [vmem:[%s7 + $0x1c0] sm:$0xf]
        %v3698 = vld [vmem:[%s7 + $0x1c4] sm:$0xf]
        %v3699 = vld [vmem:[%s7 + $0x1c8] sm:$0xf]
        %v3700 = vld [vmem:[%s7 + $0x1cc] sm:$0xf]
        %v3701 = vld [vmem:[%s7 + $0x1d0] sm:$0xf]
        %v3702 = vld [vmem:[%s7 + $0x1d4] sm:$0xf]
        %v3703 = vld [vmem:[%s7 + $0x1d8] sm:$0xf]
        %v3704 = vld [vmem:[%s7 + $0x1dc] sm:$0xf]
        %v3705 = vld [vmem:[%s7 + $0x1e0] sm:$0xf]
        %v3706 = vld [vmem:[%s7 + $0x1e4] sm:$0xf]
        %v3707 = vld [vmem:[%s7 + $0x1e8] sm:$0xf]
        %v3708 = vld [vmem:[%s7 + $0x1ec] sm:$0xf]
        %v3709 = vld [vmem:[%s7 + $0x1f0] sm:$0xf]
        %v3710 = vld [vmem:[%s7 + $0x1f4] sm:$0xf]
        %v3711 = vld [vmem:[%s7 + $0x1f8] sm:$0xf]
        %v3712 = vld [vmem:[%s7 + $0x1fc] sm:$0xf]
        %v3713 = vld [vmem:[%s8] sm:$0x1]
        %v3842 = vunpack.c.l.b16 %v3585
        %v3843 = vunpack.c.l.b16 %v3586
        %v3844 = vunpack.c.l.b16 %v3587
        %v3845 = vunpack.c.l.b16 %v3588
        %v3846 = vunpack.c.l.b16 %v3589
        %v3847 = vunpack.c.l.b16 %v3590
        %v3848 = vunpack.c.l.b16 %v3591
        %v3849 = vunpack.c.l.b16 %v3592
        %v3850 = vunpack.c.l.b16 %v3593
        %v3851 = vunpack.c.l.b16 %v3594
        %v3852 = vunpack.c.l.b16 %v3595
        %v3853 = vunpack.c.l.b16 %v3596
        %v3854 = vunpack.c.l.b16 %v3597
        %v3855 = vunpack.c.l.b16 %v3598
        %v3856 = vunpack.c.l.b16 %v3599
        %v3857 = vunpack.c.l.b16 %v3600
        %v3858 = vunpack.c.l.b16 %v3601
        %v3859 = vunpack.c.l.b16 %v3602
        %v3860 = vunpack.c.l.b16 %v3603
        %v3861 = vunpack.c.l.b16 %v3604
        %v3862 = vunpack.c.l.b16 %v3605
        %v3863 = vunpack.c.l.b16 %v3606
        %v3864 = vunpack.c.l.b16 %v3607
        %v3865 = vunpack.c.l.b16 %v3608
        %v3866 = vunpack.c.l.b16 %v3609
        %v3867 = vunpack.c.l.b16 %v3610
        %v3868 = vunpack.c.l.b16 %v3611
        %v3869 = vunpack.c.l.b16 %v3612
        %v3870 = vunpack.c.l.b16 %v3613
        %v3871 = vunpack.c.l.b16 %v3614
        %v3872 = vunpack.c.l.b16 %v3615
        %v3873 = vunpack.c.l.b16 %v3616
        %v3874 = vunpack.c.l.b16 %v3617
        %v3875 = vunpack.c.l.b16 %v3618
        %v3876 = vunpack.c.l.b16 %v3619
        %v3877 = vunpack.c.l.b16 %v3620
        %v3878 = vunpack.c.l.b16 %v3621
        %v3879 = vunpack.c.l.b16 %v3622
        %v3880 = vunpack.c.l.b16 %v3623
        %v3881 = vunpack.c.l.b16 %v3624
        %v3882 = vunpack.c.l.b16 %v3625
        %v3883 = vunpack.c.l.b16 %v3626
        %v3884 = vunpack.c.l.b16 %v3627
        %v3885 = vunpack.c.l.b16 %v3628
        %v3886 = vunpack.c.l.b16 %v3629
        %v3887 = vunpack.c.l.b16 %v3630
        %v3888 = vunpack.c.l.b16 %v3631
        %v3889 = vunpack.c.l.b16 %v3632
        %v3890 = vunpack.c.l.b16 %v3633
        %v3891 = vunpack.c.l.b16 %v3634
        %v3892 = vunpack.c.l.b16 %v3635
        %v3893 = vunpack.c.l.b16 %v3636
        %v3894 = vunpack.c.l.b16 %v3637
        %v3895 = vunpack.c.l.b16 %v3638
        %v3896 = vunpack.c.l.b16 %v3639
        %v3897 = vunpack.c.l.b16 %v3640
        %v3898 = vunpack.c.l.b16 %v3641
        %v3899 = vunpack.c.l.b16 %v3642
        %v3900 = vunpack.c.l.b16 %v3643
        %v3901 = vunpack.c.l.b16 %v3644
        %v3902 = vunpack.c.l.b16 %v3645
        %v3903 = vunpack.c.l.b16 %v3646
        %v3904 = vunpack.c.l.b16 %v3647
        %v3905 = vunpack.c.l.b16 %v3648
        %v3906 = vunpack.c.l.b16 %v3649
        %v3907 = vunpack.c.l.b16 %v3650
        %v3908 = vunpack.c.l.b16 %v3651
        %v3909 = vunpack.c.l.b16 %v3652
        %v3910 = vunpack.c.l.b16 %v3653
        %v3911 = vunpack.c.l.b16 %v3654
        %v3912 = vunpack.c.l.b16 %v3655
        %v3913 = vunpack.c.l.b16 %v3656
        %v3914 = vunpack.c.l.b16 %v3657
        %v3915 = vunpack.c.l.b16 %v3658
        %v3916 = vunpack.c.l.b16 %v3659
        %v3917 = vunpack.c.l.b16 %v3660
        %v3918 = vunpack.c.l.b16 %v3661
        %v3919 = vunpack.c.l.b16 %v3662
        %v3920 = vunpack.c.l.b16 %v3663
        %v3921 = vunpack.c.l.b16 %v3664
        %v3922 = vunpack.c.l.b16 %v3665
        %v3923 = vunpack.c.l.b16 %v3666
        %v3924 = vunpack.c.l.b16 %v3667
        %v3925 = vunpack.c.l.b16 %v3668
        %v3926 = vunpack.c.l.b16 %v3669
        %v3927 = vunpack.c.l.b16 %v3670
        %v3928 = vunpack.c.l.b16 %v3671
        %v3929 = vunpack.c.l.b16 %v3672
        %v3930 = vunpack.c.l.b16 %v3673
        %v3931 = vunpack.c.l.b16 %v3674
        %v3932 = vunpack.c.l.b16 %v3675
        %v3933 = vunpack.c.l.b16 %v3676
        %v3934 = vunpack.c.l.b16 %v3677
        %v3935 = vunpack.c.l.b16 %v3678
        %v3936 = vunpack.c.l.b16 %v3679
        %v3937 = vunpack.c.l.b16 %v3680
        %v3938 = vunpack.c.l.b16 %v3681
        %v3939 = vunpack.c.l.b16 %v3682
        %v3940 = vunpack.c.l.b16 %v3683
        %v3941 = vunpack.c.l.b16 %v3684
        %v3942 = vunpack.c.l.b16 %v3685
        %v3943 = vunpack.c.l.b16 %v3686
        %v3944 = vunpack.c.l.b16 %v3687
        %v3945 = vunpack.c.l.b16 %v3688
        %v3946 = vunpack.c.l.b16 %v3689
        %v3947 = vunpack.c.l.b16 %v3690
        %v3948 = vunpack.c.l.b16 %v3691
        %v3949 = vunpack.c.l.b16 %v3692
        %v3950 = vunpack.c.l.b16 %v3693
        %v3951 = vunpack.c.l.b16 %v3694
        %v3952 = vunpack.c.l.b16 %v3695
        %v3953 = vunpack.c.l.b16 %v3696
        %v3954 = vunpack.c.l.b16 %v3697
        %v3955 = vunpack.c.l.b16 %v3698
        %v3956 = vunpack.c.l.b16 %v3699
        %v3957 = vunpack.c.l.b16 %v3700
        %v3958 = vunpack.c.l.b16 %v3701
        %v3959 = vunpack.c.l.b16 %v3702
        %v3960 = vunpack.c.l.b16 %v3703
        %v3961 = vunpack.c.l.b16 %v3704
        %v3962 = vunpack.c.l.b16 %v3705
        %v3963 = vunpack.c.l.b16 %v3706
        %v3964 = vunpack.c.l.b16 %v3707
        %v3965 = vunpack.c.l.b16 %v3708
        %v3966 = vunpack.c.l.b16 %v3709
        %v3967 = vunpack.c.l.b16 %v3710
        %v3968 = vunpack.c.l.b16 %v3711
        %v3969 = vunpack.c.l.b16 %v3712
        %v3970 = vpack.c.b16 %v3843, %v3842
        %v3971 = vpack.c.b16 %v3845, %v3844
        %v3972 = vpack.c.b16 %v3847, %v3846
        %v3973 = vpack.c.b16 %v3849, %v3848
        %v3974 = vpack.c.b16 %v3851, %v3850
        %v3975 = vpack.c.b16 %v3853, %v3852
        %v3976 = vpack.c.b16 %v3855, %v3854
        %v3977 = vpack.c.b16 %v3857, %v3856
        %v3978 = vpack.c.b16 %v3859, %v3858
        %v3979 = vpack.c.b16 %v3861, %v3860
        %v3980 = vpack.c.b16 %v3863, %v3862
        %v3981 = vpack.c.b16 %v3865, %v3864
        %v3982 = vpack.c.b16 %v3867, %v3866
        %v3983 = vpack.c.b16 %v3869, %v3868
        %v3984 = vpack.c.b16 %v3871, %v3870
        %v3985 = vpack.c.b16 %v3873, %v3872
        %v3986 = vpack.c.b16 %v3875, %v3874
        %v3987 = vpack.c.b16 %v3877, %v3876
        %v3988 = vpack.c.b16 %v3879, %v3878
        %v3989 = vpack.c.b16 %v3881, %v3880
        %v3990 = vpack.c.b16 %v3883, %v3882
        %v3991 = vpack.c.b16 %v3885, %v3884
        %v3992 = vpack.c.b16 %v3887, %v3886
        %v3993 = vpack.c.b16 %v3889, %v3888
        %v3994 = vpack.c.b16 %v3891, %v3890
        %v3995 = vpack.c.b16 %v3893, %v3892
        %v3996 = vpack.c.b16 %v3895, %v3894
        %v3997 = vpack.c.b16 %v3897, %v3896
        %v3998 = vpack.c.b16 %v3899, %v3898
        %v3999 = vpack.c.b16 %v3901, %v3900
        %v4000 = vpack.c.b16 %v3903, %v3902
        %v4001 = vpack.c.b16 %v3905, %v3904
        %v4002 = vpack.c.b16 %v3907, %v3906
        %v4003 = vpack.c.b16 %v3909, %v3908
        %v4004 = vpack.c.b16 %v3911, %v3910
        %v4005 = vpack.c.b16 %v3913, %v3912
        %v4006 = vpack.c.b16 %v3915, %v3914
        %v4007 = vpack.c.b16 %v3917, %v3916
        %v4008 = vpack.c.b16 %v3919, %v3918
        %v4009 = vpack.c.b16 %v3921, %v3920
        %v4010 = vpack.c.b16 %v3923, %v3922
        %v4011 = vpack.c.b16 %v3925, %v3924
        %v4012 = vpack.c.b16 %v3927, %v3926
        %v4013 = vpack.c.b16 %v3929, %v3928
        %v4014 = vpack.c.b16 %v3931, %v3930
        %v4015 = vpack.c.b16 %v3933, %v3932
        %v4016 = vpack.c.b16 %v3935, %v3934
        %v4017 = vpack.c.b16 %v3937, %v3936
        %v4018 = vpack.c.b16 %v3939, %v3938
        %v4019 = vpack.c.b16 %v3941, %v3940
        %v4020 = vpack.c.b16 %v3943, %v3942
        %v4021 = vpack.c.b16 %v3945, %v3944
        %v4022 = vpack.c.b16 %v3947, %v3946
        %v4023 = vpack.c.b16 %v3949, %v3948
        %v4024 = vpack.c.b16 %v3951, %v3950
        %v4025 = vpack.c.b16 %v3953, %v3952
        %v4026 = vpack.c.b16 %v3955, %v3954
        %v4027 = vpack.c.b16 %v3957, %v3956
        %v4028 = vpack.c.b16 %v3959, %v3958
        %v4029 = vpack.c.b16 %v3961, %v3960
        %v4030 = vpack.c.b16 %v3963, %v3962
        %v4031 = vpack.c.b16 %v3965, %v3964
        %v4032 = vpack.c.b16 %v3967, %v3966
        %v4033 = vpack.c.b16 %v3969, %v3968
        %4098 = vmatprep.subr.bf16.mxu0 0
        %4099 = vmatpush1.bf16.msra.mxu0 %v3970
        %4100 = vmatprep.subr.bf16.mxu0 0
        %4101 = vmatpush1.bf16.msra.mxu0 %v3971
        %4102 = vmatprep.subr.bf16.mxu0 0
        %4103 = vmatpush1.bf16.msra.mxu0 %v3972
        %4104 = vmatprep.subr.bf16.mxu0 0
        %4105 = vmatpush1.bf16.msra.mxu0 %v3973
        %4106 = vmatprep.subr.bf16.mxu0 0
        %4107 = vmatpush1.bf16.msra.mxu0 %v3974
        %4108 = vmatprep.subr.bf16.mxu0 0
        %4109 = vmatpush1.bf16.msra.mxu0 %v3975
        %4110 = vmatprep.subr.bf16.mxu0 0
        %4111 = vmatpush1.bf16.msra.mxu0 %v3976
        %4112 = vmatprep.subr.bf16.mxu0 0
        %4113 = vmatpush1.bf16.msra.mxu0 %v3977
        %4114 = vmatprep.subr.bf16.mxu0 0
        %4115 = vmatpush1.bf16.msra.mxu0 %v3978
        %4116 = vmatprep.subr.bf16.mxu0 0
        %4117 = vmatpush1.bf16.msra.mxu0 %v3979
        %4118 = vmatprep.subr.bf16.mxu0 0
        %4119 = vmatpush1.bf16.msra.mxu0 %v3980
        %4120 = vmatprep.subr.bf16.mxu0 0
        %4121 = vmatpush1.bf16.msra.mxu0 %v3981
        %4122 = vmatprep.subr.bf16.mxu0 0
        %4123 = vmatpush1.bf16.msra.mxu0 %v3982
        %4124 = vmatprep.subr.bf16.mxu0 0
        %4125 = vmatpush1.bf16.msra.mxu0 %v3983
        %4126 = vmatprep.subr.bf16.mxu0 0
        %4127 = vmatpush1.bf16.msra.mxu0 %v3984
        %4128 = vmatprep.subr.bf16.mxu0 0
        %4129 = vmatpush1.bf16.msra.mxu0 %v3985
        %4130 = vmatprep.mubr.bf16.mxu0 %v3578
        %4131 = vmatmul.mubr.bf16.gmra.mrb[0].mxu0 %v3577
        %v4132 = vpop.f32.mrb[0].mxu0
        %v4133 = vadd.f32 %v3713, %v4132
        %v4134 = vpop.f32.mrb[0].mxu0
        %v4135 = vpop.f32.mrb[0].mxu0
        %v4136 = vpop.f32.mrb[0].mxu0
        %4137 = vdwg.mxu0
        %4138 = vmatprep.subr.bf16.mxu0 0
        %4139 = vmatpush1.bf16.msra.mxu0 %v3986
        %4140 = vmatprep.subr.bf16.mxu0 0
        %4141 = vmatpush1.bf16.msra.mxu0 %v3987
        %4142 = vmatprep.subr.bf16.mxu0 0
        %4143 = vmatpush1.bf16.msra.mxu0 %v3988
        %4144 = vmatprep.subr.bf16.mxu0 0
        %4145 = vmatpush1.bf16.msra.mxu0 %v3989
        %4146 = vmatprep.subr.bf16.mxu0 0
        %4147 = vmatpush1.bf16.msra.mxu0 %v3990
        %4148 = vmatprep.subr.bf16.mxu0 0
        %4149 = vmatpush1.bf16.msra.mxu0 %v3991
        %4150 = vmatprep.subr.bf16.mxu0 0
        %4151 = vmatpush1.bf16.msra.mxu0 %v3992
        %4152 = vmatprep.subr.bf16.mxu0 0
        %4153 = vmatpush1.bf16.msra.mxu0 %v3993
        %4154 = vmatprep.subr.bf16.mxu0 0
        %4155 = vmatpush1.bf16.msra.mxu0 %v3994
        %4156 = vmatprep.subr.bf16.mxu0 0
        %4157 = vmatpush1.bf16.msra.mxu0 %v3995
        %4158 = vmatprep.subr.bf16.mxu0 0
        %4159 = vmatpush1.bf16.msra.mxu0 %v3996
        %4160 = vmatprep.subr.bf16.mxu0 0
        %4161 = vmatpush1.bf16.msra.mxu0 %v3997
        %4162 = vmatprep.subr.bf16.mxu0 0
        %4163 = vmatpush1.bf16.msra.mxu0 %v3998
        %4164 = vmatprep.subr.bf16.mxu0 0
        %4165 = vmatpush1.bf16.msra.mxu0 %v3999
        %4166 = vmatprep.subr.bf16.mxu0 0
        %4167 = vmatpush1.bf16.msra.mxu0 %v4000
        %4168 = vmatprep.subr.bf16.mxu0 0
        %4169 = vmatpush1.bf16.msra.mxu0 %v4001
        %4170 = vmatprep.mubr.bf16.mxu0 %v3580
        %4171 = vmatmul.mubr.bf16.gmra.mrb[0].mxu0 %v3579
        %v4172 = vpop.f32.mrb[0].mxu0
        %v4173 = vadd.f32 %v4133, %v4172
        %v4174 = vpop.f32.mrb[0].mxu0
        %v4175 = vpop.f32.mrb[0].mxu0
        %v4176 = vpop.f32.mrb[0].mxu0
        %4177 = vdwg.mxu0
        %4178 = vmatprep.subr.bf16.mxu0 0
        %4179 = vmatpush1.bf16.msra.mxu0 %v4002
        %4180 = vmatprep.subr.bf16.mxu0 0
        %4181 = vmatpush1.bf16.msra.mxu0 %v4003
        %4182 = vmatprep.subr.bf16.mxu0 0
        %4183 = vmatpush1.bf16.msra.mxu0 %v4004
        %4184 = vmatprep.subr.bf16.mxu0 0
        %4185 = vmatpush1.bf16.msra.mxu0 %v4005
        %4186 = vmatprep.subr.bf16.mxu0 0
        %4187 = vmatpush1.bf16.msra.mxu0 %v4006
        %4188 = vmatprep.subr.bf16.mxu0 0
        %4189 = vmatpush1.bf16.msra.mxu0 %v4007
        %4190 = vmatprep.subr.bf16.mxu0 0
        %4191 = vmatpush1.bf16.msra.mxu0 %v4008
        %4192 = vmatprep.subr.bf16.mxu0 0
        %4193 = vmatpush1.bf16.msra.mxu0 %v4009
        %4194 = vmatprep.subr.bf16.mxu0 0
        %4195 = vmatpush1.bf16.msra.mxu0 %v4010
        %4196 = vmatprep.subr.bf16.mxu0 0
        %4197 = vmatpush1.bf16.msra.mxu0 %v4011
        %4198 = vmatprep.subr.bf16.mxu0 0
        %4199 = vmatpush1.bf16.msra.mxu0 %v4012
        %4200 = vmatprep.subr.bf16.mxu0 0
        %4201 = vmatpush1.bf16.msra.mxu0 %v4013
        %4202 = vmatprep.subr.bf16.mxu0 0
        %4203 = vmatpush1.bf16.msra.mxu0 %v4014
        %4204 = vmatprep.subr.bf16.mxu0 0
        %4205 = vmatpush1.bf16.msra.mxu0 %v4015
        %4206 = vmatprep.subr.bf16.mxu0 0
        %4207 = vmatpush1.bf16.msra.mxu0 %v4016
        %4208 = vmatprep.subr.bf16.mxu0 0
        %4209 = vmatpush1.bf16.msra.mxu0 %v4017
        %4210 = vmatprep.mubr.bf16.mxu0 %v3582
        %4211 = vmatmul.mubr.bf16.gmra.mrb[0].mxu0 %v3581
        %v4212 = vpop.f32.mrb[0].mxu0
        %v4213 = vadd.f32 %v4173, %v4212
        %v4214 = vpop.f32.mrb[0].mxu0
        %v4215 = vpop.f32.mrb[0].mxu0
        %v4216 = vpop.f32.mrb[0].mxu0
        %4217 = vdwg.mxu0
        %4218 = vmatprep.subr.bf16.mxu0 0
        %4219 = vmatpush1.bf16.msra.mxu0 %v4018
        %4220 = vmatprep.subr.bf16.mxu0 0
        %4221 = vmatpush1.bf16.msra.mxu0 %v4019
        %4222 = vmatprep.subr.bf16.mxu0 0
        %4223 = vmatpush1.bf16.msra.mxu0 %v4020
        %4224 = vmatprep.subr.bf16.mxu0 0
        %4225 = vmatpush1.bf16.msra.mxu0 %v4021
        %4226 = vmatprep.subr.bf16.mxu0 0
        %4227 = vmatpush1.bf16.msra.mxu0 %v4022
        %4228 = vmatprep.subr.bf16.mxu0 0
        %4229 = vmatpush1.bf16.msra.mxu0 %v4023
        %4230 = vmatprep.subr.bf16.mxu0 0
        %4231 = vmatpush1.bf16.msra.mxu0 %v4024
        %4232 = vmatprep.subr.bf16.mxu0 0
        %4233 = vmatpush1.bf16.msra.mxu0 %v4025
        %4234 = vmatprep.subr.bf16.mxu0 0
        %4235 = vmatpush1.bf16.msra.mxu0 %v4026
        %4236 = vmatprep.subr.bf16.mxu0 0
        %4237 = vmatpush1.bf16.msra.mxu0 %v4027
        %4238 = vmatprep.subr.bf16.mxu0 0
        %4239 = vmatpush1.bf16.msra.mxu0 %v4028
        %4240 = vmatprep.subr.bf16.mxu0 0
        %4241 = vmatpush1.bf16.msra.mxu0 %v4029
        %4242 = vmatprep.subr.bf16.mxu0 0
        %4243 = vmatpush1.bf16.msra.mxu0 %v4030
        %4244 = vmatprep.subr.bf16.mxu0 0
        %4245 = vmatpush1.bf16.msra.mxu0 %v4031
        %4246 = vmatprep.subr.bf16.mxu0 0
        %4247 = vmatpush1.bf16.msra.mxu0 %v4032
        %4248 = vmatprep.subr.bf16.mxu0 0
        %4249 = vmatpush1.bf16.msra.mxu0 %v4033
        %4250 = vmatprep.mubr.bf16.mxu0 %v3584
        %4251 = vmatmul.mubr.bf16.gmra.mrb[0].mxu0 %v3583
        %v4252 = vpop.f32.mrb[0].mxu0
        %v4253 = vadd.f32 %v4213, %v4252
        %v4254 = vpop.f32.mrb[0].mxu0
        %v4255 = vpop.f32.mrb[0].mxu0
        %v4256 = vpop.f32.mrb[0].mxu0
        %4257 = vdwg.mxu0
        %4258 = vst [vmem:[%s358] sm:$0x1] %v4253
        %p4259 = scmp.lt.s32.totalorder %s25, 1
        %s4260 = scalar_select %p4259, %s25, 1
        %s4261 = smul.addr %s4260, 4
        %s4262 = scalar_lea.vmem %s9, %s4261
        %s4263 = sand.u32 %s253, 1
        %s4264 = scalar_lea.sflag [#allocation3], %s4263
        %s4265 = sand.u32 %s253, 1
        %s4266 = scalar_lea.vmem [#allocation2], %s4265
        // Predicated region
        $region57: #{forward.4} parent=55 // pred_check
          %p4267 = pneg %p237
        $region58: #{forward.4} parent=55 // pred_check_branch
          %4269 = sbr.rel (%p4267) target = $region60
        $region59: #{forward.4} parent=55 // pred_region
          _
        $region60: #{forward.4} parent=55 // pred_fallthru
          _
        // Predicated region
        $region61: #{forward.4} parent=55 // pred_check
          %p4270 = pneg %p263
        $region62: #{forward.4} parent=55 // pred_check_branch
          %4272 = sbr.rel (%p4270) target = $region64
        $region63: #{forward.4} parent=55 // pred_region
          %s4274 = ssub.s32 16, 16
          %4275 = vsyncadd %s4264, %s4274
          %s4276 = smul.addr %s25, 16
          %s4277 = scalar_lea.hbm %s10, %s4276
          %s4279 = sshll.u32 %s4266, 4
          %s4280 = int_to_ptr.vmem [resolvable:$true] %s4279
          %4282 = dma.vmem_to_hbm [thread:$0]  %s4280, 16, %s4277, %s4264
        $region64: #{forward.4} parent=55 // pred_fallthru
          _
      $region56: #{forward.4} parent=5 // pred_fallthru
        _
      %p4283 = scmp.le.s32.totalorder 2, %s20
      // Predicated region
      $region65: #{forward.4} parent=5 // pred_check
        %p4284 = pneg %p4283
      $region66: #{forward.4} parent=5 // pred_check_branch
        %4286 = sbr.rel (%p4284) target = $region68
      $region67: #{forward.4} parent=5 // pred_region
        %s4287 = ssub.s32 %s20, 2
        // Predicated region
        $region69: #{forward.4} parent=67 // pred_check
          %p4288 = pneg %p243
        $region70: #{forward.4} parent=67 // pred_check_branch
          %4290 = sbr.rel (%p4288) target = $region72
        $region71: #{forward.4} parent=67 // pred_region
          %p4291 = scmp.lt.s32.totalorder %s26, 1
          %s4292 = scalar_select %p4291, %s26, 1
          %s4293 = smul.addr %s4292, 4
          %s4294 = scalar_lea.vmem %s9, %s4293
        $region72: #{forward.4} parent=67 // pred_fallthru
          _
        // Predicated region
        $region73: #{forward.4} parent=67 // pred_check
          %p4295 = pneg %p269
        $region74: #{forward.4} parent=67 // pred_check_branch
          %4297 = sbr.rel (%p4295) target = $region76
        $region75: #{forward.4} parent=67 // pred_region
          %s4298 = sand.u32 %s254, 1
          %s4299 = scalar_lea.sflag [#allocation3], %s4298
          %s4300 = sand.u32 %s254, 1
          %s4301 = scalar_lea.vmem [#allocation2], %s4300
          %4302 = dma.done %s4299, 16
        $region76: #{forward.4} parent=67 // pred_fallthru
          _
      $region68: #{forward.4} parent=5 // pred_fallthru
        _
    $region6: #{forward.4} parent=1 // loop_footer
      %s24 = sadd.s32 1, %s20
    $region7: #{forward.4} parent=1 // loop_footer_branch
      %19 = sbr.rel target = $region3
    $region8: #{forward.4} parent=1 // loop_exit
      _
    %4303 = vsyncpa [#allocation3], 1
    %s4304 = scalar_lea.sflag [#allocation3], 1
    %4305 = vsyncpa %s4304, 1

</llo_original>
